<compile_context>
chip_gen: v7x
topology: tpu7x:2x2x1
jax: 0.10.0
libtpu: 0.0.40
codegen_flags: <defaults>
</compile_context>

<pallas_src>
import functools
import math

import jax
import jax.numpy as jnp
from jax.experimental import pallas as pl
from jax.experimental.pallas import tpu as pltpu

_MIB = 1024 * 1024


def _vmem_capacity_bytes():
    """Physical VMEM of the attached TPU generation, with a safe fallback."""
    try:
        cap = int(pltpu.get_tpu_info().vmem_capacity_bytes)
        if cap > 0:
            return cap
    except Exception:
        pass
    return 64 * _MIB  # conservative fallback: v7x has the smallest VMEM (64 MiB)


def _gelu_tanh(x):
    # PyTorch F.gelu(..., approximate='tanh'):
    #   0.5 * x * (1 + tanh(sqrt(2/pi) * (x + 0.044715 * x^3)))
    c = math.sqrt(2.0 / math.pi)
    return 0.5 * x * (1.0 + jnp.tanh(c * (x + 0.044715 * (x * x * x))))


# ------------------------------- kernels -------------------------------------


def _addmm_gelu_kernel_single_k(x_ref, w_ref, b_ref, o_ref, *, precision):
    # K fits in one tile: a single MXU reduction, bias + GELU fused in the
    # epilogue (GELU overlaps the next tile's DMA — different VLIW slots).
    acc = jnp.dot(x_ref[...], w_ref[...],
                  preferred_element_type=jnp.float32, precision=precision)
    acc = acc + b_ref[...].astype(jnp.float32)
    o_ref[...] = _gelu_tanh(acc).astype(o_ref.dtype)


def _addmm_gelu_kernel_multi_k_f32out(x_ref, w_ref, b_ref, o_ref, *, precision):
    # grid = (M//tm, N//tn, K//tk), K innermost.  The output block index is
    # k-invariant, so o_ref stays resident in VMEM across the reduction and is
    # used directly as the f32 accumulator: no scratch, no epilogue copy.
    k = pl.program_id(2)

    @pl.when(k == 0)
    def _():
        o_ref[...] = b_ref[...].astype(jnp.float32)  # fold bias into the init

    o_ref[...] += jnp.dot(x_ref[...], w_ref[...],
                          preferred_element_type=jnp.float32,
                          precision=precision)

    @pl.when(k == pl.num_programs(2) - 1)
    def _():
        o_ref[...] = _gelu_tanh(o_ref[...])


def _addmm_gelu_kernel_multi_k_scratch(x_ref, w_ref, b_ref, o_ref, acc_ref, *,
                                       precision):
    # Same as above, but for non-f32 outputs: accumulate in an f32 VMEM scratch.
    k = pl.program_id(2)

    @pl.when(k == 0)
    def _():
        acc_ref[...] = b_ref[...].astype(jnp.float32)

    acc_ref[...] += jnp.dot(x_ref[...], w_ref[...],
                            preferred_element_type=jnp.float32,
                            precision=precision)

    @pl.when(k == pl.num_programs(2) - 1)
    def _():
        o_ref[...] = _gelu_tanh(acc_ref[...]).astype(o_ref.dtype)


# ---------------------------- tile selection ----------------------------------


def _tile_candidates(dim, cap=None):
    """Tile sizes for `dim`, largest first: the full extent plus every
    128-multiple divisor <= cap (the (8,128) rule: multiple of 128 or full)."""
    cap = dim if cap is None else min(cap, dim)
    cands = []
    if dim <= cap:
        cands.append(dim)
    t = (cap // 128) * 128
    while t >= 128:
        if dim % t == 0 and t not in cands:
            cands.append(t)
        t -= 128
    if not cands:
        cands.append(dim)
    return cands


def _footprint_bytes(tm, tn, tk, in_itemsize, out_itemsize, acc_scratch):
    # Double-buffered x / weight / bias input tiles + double-buffered output
    # tile (+ one f32 accumulator scratch tile when it is needed).
    b = 2 * in_itemsize * (tm * tk + tk * tn + tm * tn)
    b += 2 * out_itemsize * tm * tn
    if acc_scratch:
        b += 4 * tm * tn
    return b


def _pick_tiles(M, N, K, in_itemsize, out_itemsize, out_is_f32, budget):
    """Pick (tm, tn, tk) against the generation-aware VMEM budget.

    Preference order:
      1. K collapsed (tk == K): one MXU reduction per output tile, no carry.
      2. tm as large as possible -> the (K, N) weight streams only M//tm times
         from HBM (exactly once when tm == M); HBM traffic is what binds.
      3. >= 2 output tiles overall so v7x's two TensorCores both get work.
      4. Larger (lane-dense) tn -> fewer grid steps, unmasked stores.
    """
    best_key, best = None, None
    for tm in _tile_candidates(M):
        for tn in _tile_candidates(N):
            if _footprint_bytes(tm, tn, K, in_itemsize, out_itemsize,
                                False) > budget:
                continue
            n_tiles = (M // tm) * (N // tn)
            key = (M // tm, 0 if n_tiles >= 2 else 1, -tn)
            if best_key is None or key < best_key:
                best_key, best = key, (tm, tn, K)
    if best is not None:
        return best

    # K too large to collapse: tile the reduction too, shrinking tm/tn as needed
    # so the whole footprint (incl. any accumulator scratch) fits the budget.
    for tm_cap, tn_cap in ((512, 512), (512, 256), (256, 256), (256, 128),
                           (128, 128)):
        tm = _tile_candidates(M, tm_cap)[0]
        tn = _tile_candidates(N, tn_cap)[0]
        for tk_cap in (4096, 2048, 1024, 512, 256, 128):
            tk = _tile_candidates(K, tk_cap)[0]
            needs_acc = (tk != K) and (not out_is_f32)
            if _footprint_bytes(tm, tn, tk, in_itemsize, out_itemsize,
                                needs_acc) <= budget:
                return tm, tn, tk
    return (_tile_candidates(M, 128)[0], _tile_candidates(N, 128)[0],
            _tile_candidates(K, 128)[0])


# -------------------------------- wrapper -------------------------------------


@functools.partial(jax.jit, static_argnames=("tm", "tn", "tk", "precision"))
def matmul_relu_model(x, weight, bias, *, tm=None, tn=None, tk=None,
                      precision=jax.lax.Precision.HIGHEST):
    M, K = x.shape
    K2, N = weight.shape
    assert K == K2, "x and weight contraction dims must match"
    assert bias.shape == (M, N), "bias must be (M, N), as in torch.addmm"

    out_dtype = x.dtype
    in_itemsize = jnp.dtype(x.dtype).itemsize
    out_itemsize = jnp.dtype(out_dtype).itemsize
    out_is_f32 = out_dtype == jnp.float32

    capacity = _vmem_capacity_bytes()
    budget = capacity * 13 // 20  # ~65% of physical VMEM for our tiles

    atm, atn, atk = _pick_tiles(M, N, K, in_itemsize, out_itemsize,
                                out_is_f32, budget)
    tm = atm if tm is None else tm
    tn = atn if tn is None else tn
    tk = atk if tk is None else tk
    assert M % tm == 0 and N % tn == 0 and K % tk == 0, (
        "tile sizes must divide (M, N, K); no padding path implemented")

    needs_scratch = (tk != K) and not out_is_f32
    footprint = _footprint_bytes(tm, tn, tk, in_itemsize, out_itemsize,
                                 needs_scratch)
    # Leave headroom under the physical ceiling for Mosaic internal scratch.
    vmem_limit = int(min(capacity * 17 // 20,
                         max(32 * _MIB, footprint + 8 * _MIB)))

    # Advisory hint so XLA schedules surrounding ops sensibly.
    cost = pl.CostEstimate(
        flops=2 * M * N * K,
        transcendentals=M * N,  # one tanh per output element
        bytes_accessed=(in_itemsize * (M * K + (M // tm) * K * N + M * N)
                        + out_itemsize * M * N),
    )

    if tk == K:
        # K collapsed: 2-D grid, no accumulator, no reduction axis.
        kernel = functools.partial(_addmm_gelu_kernel_single_k,
                                   precision=precision)
        grid_spec = pltpu.PrefetchScalarGridSpec(
            num_scalar_prefetch=0,
            grid=(M // tm, N // tn),
            in_specs=[
                pl.BlockSpec((tm, K), lambda i, j: (i, 0)),    # x (j-invariant)
                pl.BlockSpec((K, tn), lambda i, j: (0, j)),    # weight slab
                pl.BlockSpec((tm, tn), lambda i, j: (i, j)),   # bias
            ],
            out_specs=pl.BlockSpec((tm, tn), lambda i, j: (i, j)),
        )
        dim_sem = ("parallel", "parallel")
    else:
        if out_is_f32:
            kernel = functools.partial(_addmm_gelu_kernel_multi_k_f32out,
                                       precision=precision)
            scratch = []
        else:
            kernel = functools.partial(_addmm_gelu_kernel_multi_k_scratch,
                                       precision=precision)
            scratch = [pltpu.VMEM((tm, tn), jnp.float32)]
        grid_spec = pltpu.PrefetchScalarGridSpec(
            num_scalar_prefetch=0,
            grid=(M // tm, N // tn, K // tk),
            in_specs=[
                pl.BlockSpec((tm, tk), lambda i, j, k: (i, k)),   # x
                pl.BlockSpec((tk, tn), lambda i, j, k: (k, j)),   # weight
                pl.BlockSpec((tm, tn), lambda i, j, k: (i, j)),   # bias (k-inv)
            ],
            out_specs=pl.BlockSpec((tm, tn), lambda i, j, k: (i, j)),
            scratch_shapes=scratch,
        )
        dim_sem = ("parallel", "parallel", "arbitrary")

    return pl.pallas_call(
        kernel,
        out_shape=jax.ShapeDtypeStruct((M, N), out_dtype),
        grid_spec=grid_spec,
        compiler_params=pltpu.CompilerParams(
            dimension_semantics=dim_sem,
            vmem_limit_bytes=vmem_limit,
        ),
        cost_estimate=cost,
    )(x, weight, bias)


if __name__ == "__main__":
    # Small shape consistent with the module: addmm requires bias (M, N) to be
    # (S, S), so M == N == K == input_size.  The module ships 1024; use 256 here.
    input_size = 256

    key = jax.random.PRNGKey(0)
    kx, kw, kb = jax.random.split(key, 3)
    x = jax.random.normal(kx, (input_size, input_size), dtype=jnp.float32)
    weight = jax.random.normal(kw, (input_size, input_size), dtype=jnp.float32)
    bias = jax.random.normal(kb, (input_size, input_size), dtype=jnp.float32)

    # Full-precision reference (matches the kernel's default precision=HIGHEST).
    tmp = jnp.dot(x, weight, precision=jax.lax.Precision.HIGHEST) + bias
    c = math.sqrt(2.0 / math.pi)
    ref = 0.5 * tmp * (1.0 + jnp.tanh(c * (tmp + 0.044715 * tmp ** 3)))

    # 1) Auto-tiled single-K path.  At 256^3 this picks tm=256, tn=128 ->
    #    grid (1, 2), so both v7x TensorCores get a tile (x is j-invariant, so
    #    the split adds no HBM traffic).  Explicit HIGHEST MXU precision ->
    #    tight tolerance against the HIGHEST reference.
    out = jax.block_until_ready(matmul_relu_model(x, weight, bias))
    assert jnp.allclose(out, ref, atol=2e-3, rtol=2e-3), "single-K path mismatch"

    # 2) Forced K-tiled path (grid (2,2,2)): accumulates straight into the
    #    resident f32 output block (no scratch), using the explicit single-pass
    #    MXU precision that keeps v5e HBM-bound.  The tolerance is loosened
    #    deliberately to the bf16-truncation level — the precision trade is
    #    explicit, not accidental.
    out_fast = jax.block_until_ready(
        matmul_relu_model(x, weight, bias, tm=128, tn=128, tk=128,
                          precision=jax.lax.Precision.DEFAULT))
    assert jnp.allclose(out_fast, ref, atol=2.5e-1, rtol=2e-2), \
        "multi-K path mismatch"

    print("KERNEL_OK")
</pallas_src>

<mosaic_0001>
module attributes {stable_mosaic.version = 11 : i64} {
  func.func @_addmm_gelu_kernel_single_k(%arg0: i32, %arg1: i32, %arg2: memref<256x256xf32, #tpu.memory_space<vmem>>, %arg3: memref<256x128xf32, #tpu.memory_space<vmem>>, %arg4: memref<256x128xf32, #tpu.memory_space<vmem>>, %arg5: memref<256x128xf32, #tpu.memory_space<vmem>>) attributes {dimension_semantics = [#tpu.dimension_semantics<parallel>, #tpu.dimension_semantics<parallel>], iteration_bounds = array<i64: 1, 2>, scalar_prefetch = 0 : i64, scratch_operands = 0 : i64, tpu.core_type = #tpu.core_type<tc>, window_params = [{transform_indices = @transform_0, window_bounds = array<i64: 256, 256>}, {transform_indices = @transform_1, window_bounds = array<i64: 256, 128>}, {transform_indices = @transform_2, window_bounds = array<i64: 256, 128>}, {transform_indices = @transform_3, window_bounds = array<i64: 256, 128>}]} {
    %c0 = arith.constant 0 : index
    %c0_0 = arith.constant 0 : index
    %0 = vector.load %arg2[%c0, %c0_0] : memref<256x256xf32, #tpu.memory_space<vmem>>, vector<256x256xf32>
    %c0_1 = arith.constant 0 : index
    %c0_2 = arith.constant 0 : index
    %1 = vector.load %arg3[%c0_1, %c0_2] : memref<256x128xf32, #tpu.memory_space<vmem>>, vector<256x128xf32>
    %cst = arith.constant dense<0.000000e+00> : vector<256x128xf32>
    %2 = tpu.matmul %0, %1, %cst {dimension_numbers = #tpu.dot_dimension_numbers<[1], [0], [0], [1], [0, 0, 1, 1], [], []>, precision = #tpu.contract_precision<fp32>} : vector<256x256xf32>, vector<256x128xf32>, vector<256x128xf32> -> vector<256x128xf32>
    %c0_3 = arith.constant 0 : index
    %c0_4 = arith.constant 0 : index
    %3 = vector.load %arg4[%c0_3, %c0_4] : memref<256x128xf32, #tpu.memory_space<vmem>>, vector<256x128xf32>
    %4 = arith.addf %2, %3 : vector<256x128xf32>
    %cst_5 = arith.constant 5.000000e-01 : f32
    %5 = vector.broadcast %cst_5 : f32 to vector<256x128xf32>
    %6 = arith.mulf %5, %4 : vector<256x128xf32>
    %7 = arith.mulf %4, %4 : vector<256x128xf32>
    %8 = arith.mulf %7, %4 : vector<256x128xf32>
    %cst_6 = arith.constant 4.471500e-02 : f32
    %9 = vector.broadcast %cst_6 : f32 to vector<256x128xf32>
    %10 = arith.mulf %9, %8 : vector<256x128xf32>
    %11 = arith.addf %4, %10 : vector<256x128xf32>
    %cst_7 = arith.constant 0.797884583 : f32
    %12 = vector.broadcast %cst_7 : f32 to vector<256x128xf32>
    %13 = arith.mulf %12, %11 : vector<256x128xf32>
    %14 = math.tanh %13 : vector<256x128xf32>
    %cst_8 = arith.constant 1.000000e+00 : f32
    %15 = vector.broadcast %cst_8 : f32 to vector<256x128xf32>
    %16 = arith.addf %15, %14 : vector<256x128xf32>
    %17 = arith.mulf %6, %16 : vector<256x128xf32>
    %c0_9 = arith.constant 0 : index
    %c0_10 = arith.constant 0 : index
    %18 = vector.load %arg5[%c0_9, %c0_10] : memref<256x128xf32, #tpu.memory_space<vmem>>, vector<256x128xf32>
    tpu.vector_store %arg5[%c0_9, %c0_10], %17 {strides = array<i32>} : memref<256x128xf32, #tpu.memory_space<vmem>>, vector<256x128xf32>,
    return
  }
  func.func @transform_0(%arg0: i32, %arg1: i32) -> (i32, i32) {
    %c0_i32 = arith.constant 0 : i32
    %c0_i32_0 = arith.constant 0 : i32
    return %arg0, %c0_i32 : i32, i32
  }
  func.func @transform_1(%arg0: i32, %arg1: i32) -> (i32, i32) {
    %c0_i32 = arith.constant 0 : i32
    %c0_i32_0 = arith.constant 0 : i32
    return %c0_i32, %arg1 : i32, i32
  }
  func.func @transform_2(%arg0: i32, %arg1: i32) -> (i32, i32) {
    %c0_i32 = arith.constant 0 : i32
    return %arg0, %arg1 : i32, i32
  }
  func.func @transform_3(%arg0: i32, %arg1: i32) -> (i32, i32) {
    %c0_i32 = arith.constant 0 : i32
    return %arg0, %arg1 : i32, i32
  }
}

</mosaic_0001>

<llo_original>
// kernel: matmul_relu_model.1
$region0: #{matmul_relu_model.1}
  #allocation0 [shape = 'u32[]', space=smem, size = 0x4, offset = 0x4, fixed_abs, tag = 'smem constant byte address 0x4 - core index']
  #allocation1 [shape = 'u32[144,128]{1,0:T(1,128)}', space=vmem, size = 0x12000, scoped, tag = 'internal scratch']
  %s0 = inlined_call_operand.hbm [shape: f32[256,256], index: 0, kind: input, shape index: {}]
  %s1 = inlined_call_operand.hbm [shape: f32[256,256], index: 1, kind: input, shape index: {}]
  %s2 = inlined_call_operand.hbm [shape: f32[256,256], index: 2, kind: input, shape index: {}]
  %s3 = inlined_call_operand.hbm [shape: f32[256,256], index: 3, kind: output, shape index: {}]
  %s4 = sld [smem:[#allocation0]]
  $region57: #{matmul_relu_model.1} parent=0
    _
  %s6 = ssub.s32 1, %s4
  %s7 = scalar_select 0, %s6, %s4
  $region1: #{matmul_relu_model.1} parent=0
    #allocation2 [shape = 'u8[262144]{0}', space=vmem, size = 0x40000, scoped, tag = 'input window, operand 0, single buffered']
    #allocation3 [shape = 's32[2]{0}', space=sflag, size = 0x8, scoped, tag = 'scoped memory for matmul_relu_model.1']
    #allocation4 [shape = 's32[2]{0}', space=sflag, size = 0x8, scoped, tag = 'scoped memory for matmul_relu_model.1']
    #allocation5 [shape = 'u8[262144]{0}', space=vmem, size = 0x40000, scoped, tag = 'input window, operand 1']
    #allocation6 [shape = 's32[2]{0}', space=sflag, size = 0x8, scoped, tag = 'scoped memory for matmul_relu_model.1']
    #allocation7 [shape = 'u8[262144]{0}', space=vmem, size = 0x40000, scoped, tag = 'input window, operand 2']
    #allocation8 [shape = 'u8[262144]{0}', space=vmem, size = 0x40000, scoped, tag = 'output window, operand 0']
    %8 = vsyncpa [#allocation3], 0
    %9 = vsyncpa [#allocation6], 0
    %s10 = scalar_lea.sflag [#allocation6], 1
    %11 = vsyncpa %s10, 0
    %12 = vsyncpa [#allocation4], 0
    %s13 = scalar_lea.sflag [#allocation4], 1
    %14 = vsyncpa %s13, 0
    loop: start=0, step=1, limit=4
    $region2: #{matmul_relu_model.1} parent=1 // loop_pre_header
      _
    $region3: #{matmul_relu_model.1} parent=1 // loop_header
      %s16 = sphi 0, %s20
      %p17 = scmp.ge.s32.totalorder %s16, 4
      %s23 = sphi 0, %s35
      %s24 = sphi 0, %s31
      %s25 = sphi 0, %s23
      %s26 = sphi 0, %s24
      %s27 = sphi 0, %s25
      %s28 = sphi 0, %s26
      %s38 = sphi 0, %s40
      %s41 = sphi 0, %s38
      %s42 = sphi 0, %s41
      %s58 = sphi 0, %s42
      %s64 = sphi 0, %s66
      %s67 = sphi 0, %s64
      %s68 = sphi 0, %s67
      %s84 = sphi 0, %s68
      %s92 = sphi 0, %s94
      %s95 = sphi 0, %s92
      %s96 = sphi 0, %s95
      %s112 = sphi 0, %s96
      %s120 = sphi 0, %s122
      %s123 = sphi 0, %s120
      %s124 = sphi 0, %s123
      %s140 = sphi 0, %s124
    $region4: #{matmul_relu_model.1} parent=1 // loop_header_branch
      %19 = sbr.rel (%p17) target = $region8
    $region5: #{matmul_relu_model.1} parent=1 // loop_body
      %s21 = ssub.s32 %s16, 1
      %s22 = ssub.s32 %s16, 2
      %s29 = sadd.s32 1, %s24
      %p30 = scmp.ge.s32.totalorder %s29, 2
      %s31 = scalar_select %p30, 0, %s29
      %s32 = sadd.s32 1, %s23
      %s33 = scalar_select %p30, %s32, %s23
      %p34 = scmp.ge.s32.totalorder %s33, 1
      %s35 = scalar_select %p34, 0, %s33
      %s36 = ssub.s32 %s23, %s35
      %p37 = scmp.eq.s32.totalorder %s36, 0
      %s39 = sadd.s32 %s38, 1
      %s40 = scalar_select %p37, %s38, %s39
      %p43 = pneg %p37
      %p44 = scmp.eq.s32.totalorder %s16, 1
      %p45 = por %p43, %p44
      %p46 = scmp.ne.s32.totalorder %s38, %s41
      %p47 = scmp.eq.s32.totalorder %s16, 0
      %p48 = por %p46, %p47
      %p49 = scmp.ne.s32.totalorder %s38, %s41
      %p50 = scmp.eq.s32.totalorder %s21, 1
      %p51 = por %p49, %p50
      %p52 = scmp.ne.s32.totalorder %s41, %s42
      %p53 = scmp.eq.s32.totalorder %s21, 0
      %p54 = por %p52, %p53
      %p55 = scmp.ne.s32.totalorder %s41, %s42
      %p56 = scmp.eq.s32.totalorder %s22, 1
      %p57 = por %p55, %p56
      %p59 = scmp.ne.s32.totalorder %s42, %s58
      %p60 = scmp.eq.s32.totalorder %s22, 0
      %p61 = por %p59, %p60
      %s62 = ssub.s32 %s24, %s31
      %p63 = scmp.eq.s32.totalorder %s62, 0
      %s65 = sadd.s32 %s64, 1
      %s66 = scalar_select %p63, %s64, %s65
      %p69 = pneg %p63
      %p70 = scmp.eq.s32.totalorder %s16, 1
      %p71 = por %p69, %p70
      %p72 = scmp.ne.s32.totalorder %s64, %s67
      %p73 = scmp.eq.s32.totalorder %s16, 0
      %p74 = por %p72, %p73
      %p75 = scmp.ne.s32.totalorder %s64, %s67
      %p76 = scmp.eq.s32.totalorder %s21, 1
      %p77 = por %p75, %p76
      %p78 = scmp.ne.s32.totalorder %s67, %s68
      %p79 = scmp.eq.s32.totalorder %s21, 0
      %p80 = por %p78, %p79
      %p81 = scmp.ne.s32.totalorder %s67, %s68
      %p82 = scmp.eq.s32.totalorder %s22, 1
      %p83 = por %p81, %p82
      %p85 = scmp.ne.s32.totalorder %s68, %s84
      %p86 = scmp.eq.s32.totalorder %s22, 0
      %p87 = por %p85, %p86
      %s88 = ssub.s32 %s23, %s35
      %s89 = ssub.s32 %s24, %s31
      %s90 = sor.u32 %s88, %s89
      %p91 = scmp.eq.s32.totalorder %s90, 0
      %s93 = sadd.s32 %s92, 1
      %s94 = scalar_select %p91, %s92, %s93
      %p97 = pneg %p91
      %p98 = scmp.eq.s32.totalorder %s16, 1
      %p99 = por %p97, %p98
      %p100 = scmp.ne.s32.totalorder %s92, %s95
      %p101 = scmp.eq.s32.totalorder %s16, 0
      %p102 = por %p100, %p101
      %p103 = scmp.ne.s32.totalorder %s92, %s95
      %p104 = scmp.eq.s32.totalorder %s21, 1
      %p105 = por %p103, %p104
      %p106 = scmp.ne.s32.totalorder %s95, %s96
      %p107 = scmp.eq.s32.totalorder %s21, 0
      %p108 = por %p106, %p107
      %p109 = scmp.ne.s32.totalorder %s95, %s96
      %p110 = scmp.eq.s32.totalorder %s22, 1
      %p111 = por %p109, %p110
      %p113 = scmp.ne.s32.totalorder %s96, %s112
      %p114 = scmp.eq.s32.totalorder %s22, 0
      %p115 = por %p113, %p114
      %s116 = ssub.s32 %s23, %s35
      %s117 = ssub.s32 %s24, %s31
      %s118 = sor.u32 %s116, %s117
      %p119 = scmp.eq.s32.totalorder %s118, 0
      %s121 = sadd.s32 %s120, 1
      %s122 = scalar_select %p119, %s120, %s121
      %p125 = pneg %p119
      %p126 = scmp.eq.s32.totalorder %s16, 1
      %p127 = por %p125, %p126
      %p128 = scmp.ne.s32.totalorder %s120, %s123
      %p129 = scmp.eq.s32.totalorder %s16, 0
      %p130 = por %p128, %p129
      %p131 = scmp.ne.s32.totalorder %s120, %s123
      %p132 = scmp.eq.s32.totalorder %s21, 1
      %p133 = por %p131, %p132
      %p134 = scmp.ne.s32.totalorder %s123, %s124
      %p135 = scmp.eq.s32.totalorder %s21, 0
      %p136 = por %p134, %p135
      %p137 = scmp.ne.s32.totalorder %s123, %s124
      %p138 = scmp.eq.s32.totalorder %s22, 1
      %p139 = por %p137, %p138
      %p141 = scmp.ne.s32.totalorder %s124, %s140
      %p142 = scmp.eq.s32.totalorder %s22, 0
      %p143 = por %p141, %p142
      %p144 = scmp.le.s32.totalorder 1, %s16
      %p145 = scmp.lt.s32.totalorder %s16, 3
      %p146 = pnand %p144, %p145
      %p147 = pneg %p146
      // Predicated region
      $region9: #{matmul_relu_model.1} parent=5 // pred_check
        _
      $region10: #{matmul_relu_model.1} parent=5 // pred_check_branch
        %149 = sbr.rel (%p146) target = $region12
      $region11: #{matmul_relu_model.1} parent=5 // pred_region
        %s150 = ssub.s32 %s16, 1
        // Predicated region
        $region13: #{matmul_relu_model.1} parent=11 // pred_check
          %p151 = pneg %p54
        $region14: #{matmul_relu_model.1} parent=11 // pred_check_branch
          %153 = sbr.rel (%p151) target = $region16
        $region15: #{matmul_relu_model.1} parent=11 // pred_region
          %s154 = smul.u32 32, %s25
          %s156 = ssub.s32 8192, 8192
          %157 = vsyncadd [#allocation3], %s156
          %s158 = smul.addr %s154, 2
          %s159 = smul.addr %s158, 128
          %s160 = scalar_lea.hbm %s0, %s159
          %s161 = sshll.u32 [#allocation2], 4
          %s162 = int_to_ptr.vmem [resolvable:$true] %s161
          %167 = dma.hbm_to_vmem [thread:$0]  %s160, 8192, %s162, [#allocation3], 256, 256, 16
        $region16: #{matmul_relu_model.1} parent=11 // pred_fallthru
          _
      $region12: #{matmul_relu_model.1} parent=5 // pred_fallthru
        _
      %p168 = scmp.lt.s32.totalorder %s16, 2
      // Predicated region
      $region17: #{matmul_relu_model.1} parent=5 // pred_check
        %p169 = pneg %p168
      $region18: #{matmul_relu_model.1} parent=5 // pred_check_branch
        %171 = sbr.rel (%p169) target = $region20
      $region19: #{matmul_relu_model.1} parent=5 // pred_region
        // Predicated region
        $region21: #{matmul_relu_model.1} parent=19 // pred_check
          %p172 = pneg %p74
        $region22: #{matmul_relu_model.1} parent=19 // pred_check_branch
          %174 = sbr.rel (%p172) target = $region24
        $region23: #{matmul_relu_model.1} parent=19 // pred_region
          %s175 = sand.u32 %s16, 1
          %s176 = scalar_lea.sflag [#allocation6], %s175
          %s177 = sand.u32 %s64, 1
          %s178 = smul.addr %s177, 256
          %s179 = scalar_lea.vmem [#allocation5], %s178
          %s181 = ssub.s32 4096, 4096
          %182 = vsyncadd %s176, %s181
          %s183 = smul.addr %s24, 128
          %s184 = scalar_lea.hbm %s1, %s183
          %s185 = sshll.u32 %s179, 4
          %s186 = int_to_ptr.vmem [resolvable:$true] %s185
          %191 = dma.hbm_to_vmem [thread:$0]  %s184, 4096, %s186, %s176, 256, 128, 8
        $region24: #{matmul_relu_model.1} parent=19 // pred_fallthru
          _
        // Predicated region
        $region25: #{matmul_relu_model.1} parent=19 // pred_check
          %p192 = pneg %p102
        $region26: #{matmul_relu_model.1} parent=19 // pred_check_branch
          %194 = sbr.rel (%p192) target = $region28
        $region27: #{matmul_relu_model.1} parent=19 // pred_region
          %s195 = sand.u32 %s16, 1
          %s196 = scalar_lea.sflag [#allocation6], %s195
          %s197 = sand.u32 %s92, 1
          %s198 = smul.addr %s197, 256
          %s199 = scalar_lea.vmem [#allocation7], %s198
          %s200 = smul.u32 32, %s23
          %s202 = ssub.s32 4096, 4096
          %203 = vsyncadd %s196, %s202
          %s204 = smul.addr %s200, 2
          %s205 = sadd.s32 %s24, %s204
          %s206 = smul.addr %s205, 128
          %s207 = scalar_lea.hbm %s2, %s206
          %s208 = sshll.u32 %s199, 4
          %s209 = int_to_ptr.vmem [resolvable:$true] %s208
          %214 = dma.hbm_to_vmem [thread:$0]  %s207, 4096, %s209, %s196, 256, 128, 8
        $region28: #{matmul_relu_model.1} parent=19 // pred_fallthru
          _
      $region20: #{matmul_relu_model.1} parent=5 // pred_fallthru
        _
      %p215 = scmp.le.s32.totalorder 1, %s16
      %p216 = scmp.lt.s32.totalorder %s16, 3
      %p217 = pnand %p215, %p216
      %p218 = pneg %p217
      // Predicated region
      $region29: #{matmul_relu_model.1} parent=5 // pred_check
        _
      $region30: #{matmul_relu_model.1} parent=5 // pred_check_branch
        %220 = sbr.rel (%p217) target = $region32
      $region31: #{matmul_relu_model.1} parent=5 // pred_region
        %s221 = ssub.s32 %s16, 1
        // Predicated region
        $region33: #{matmul_relu_model.1} parent=31 // pred_check
          %p222 = pneg %p54
        $region34: #{matmul_relu_model.1} parent=31 // pred_check_branch
          %224 = sbr.rel (%p222) target = $region36
        $region35: #{matmul_relu_model.1} parent=31 // pred_region
          %225 = dma.done [#allocation3], 8192
        $region36: #{matmul_relu_model.1} parent=31 // pred_fallthru
          _
        %s226 = sand.u32 %s21, 1
        %s227 = scalar_lea.sflag [#allocation6], %s226
        %s228 = sand.u32 %s67, 1
        %s229 = smul.addr %s228, 256
        %s230 = scalar_lea.vmem [#allocation5], %s229
        // Predicated region
        $region37: #{matmul_relu_model.1} parent=31 // pred_check
          %p231 = pneg %p80
        $region38: #{matmul_relu_model.1} parent=31 // pred_check_branch
          %233 = sbr.rel (%p231) target = $region40
        $region39: #{matmul_relu_model.1} parent=31 // pred_region
          %234 = dma.done %s227, 4096
        $region40: #{matmul_relu_model.1} parent=31 // pred_fallthru
          _
        %s235 = sand.u32 %s21, 1
        %s236 = scalar_lea.sflag [#allocation6], %s235
        %s237 = sand.u32 %s95, 1
        %s238 = smul.addr %s237, 256
        %s239 = scalar_lea.vmem [#allocation7], %s238
        // Predicated region
        $region41: #{matmul_relu_model.1} parent=31 // pred_check
          %p240 = pneg %p108
        $region42: #{matmul_relu_model.1} parent=31 // pred_check_branch
          %242 = sbr.rel (%p240) target = $region44
        $region43: #{matmul_relu_model.1} parent=31 // pred_region
          %243 = dma.done %s236, 4096
        $region44: #{matmul_relu_model.1} parent=31 // pred_fallthru
          _
        %p244 = pneg %p54
        %p245 = pneg %p51
        %s246 = sand.u32 %s21, 1
        %s247 = scalar_lea.sflag [#allocation6], %s246
        %s248 = sand.u32 %s67, 1
        %s249 = smul.addr %s248, 256
        %s250 = scalar_lea.vmem [#allocation5], %s249
        %p251 = pneg %p80
        %p252 = pneg %p77
        %s253 = sand.u32 %s21, 1
        %s254 = scalar_lea.sflag [#allocation6], %s253
        %s255 = sand.u32 %s95, 1
        %s256 = smul.addr %s255, 256
        %s257 = scalar_lea.vmem [#allocation7], %s256
        %p258 = pneg %p108
        %p259 = pneg %p105
        %p260 = pneg %p136
        %p261 = pneg %p133
        %s262 = sand.u32 %s123, 1
        %s263 = scalar_lea.sflag [#allocation4], %s262
        %s264 = sand.u32 %s123, 1
        %s265 = smul.addr %s264, 256
        %s266 = scalar_lea.vmem [#allocation8], %s265
        %s267 = smul.u32 32, %s25
        %s268 = smul.u32 32, %s25
        %s269 = smul.u32 32, %s25
        %v270 = vld [vmem:[#allocation2] sm:$0xff]
        %v271 = vld [vmem:[#allocation2 + $0x8] sm:$0xff]
        %v272 = vld [vmem:[#allocation2 + $0x10] sm:$0xff]
        %v273 = vld [vmem:[#allocation2 + $0x18] sm:$0xff]
        %v274 = vld [vmem:[#allocation2 + $0x20] sm:$0xff]
        %v275 = vld [vmem:[#allocation2 + $0x28] sm:$0xff]
        %v276 = vld [vmem:[#allocation2 + $0x30] sm:$0xff]
        %v277 = vld [vmem:[#allocation2 + $0x38] sm:$0xff]
        %v278 = vld [vmem:[#allocation2 + $0x40] sm:$0xff]
        %v279 = vld [vmem:[#allocation2 + $0x48] sm:$0xff]
        %v280 = vld [vmem:[#allocation2 + $0x50] sm:$0xff]
        %v281 = vld [vmem:[#allocation2 + $0x58] sm:$0xff]
        %v282 = vld [vmem:[#allocation2 + $0x60] sm:$0xff]
        %v283 = vld [vmem:[#allocation2 + $0x68] sm:$0xff]
        %v284 = vld [vmem:[#allocation2 + $0x70] sm:$0xff]
        %v285 = vld [vmem:[#allocation2 + $0x78] sm:$0xff]
        %v286 = vld [vmem:[#allocation2 + $0x80] sm:$0xff]
        %v287 = vld [vmem:[#allocation2 + $0x88] sm:$0xff]
        %v288 = vld [vmem:[#allocation2 + $0x90] sm:$0xff]
        %v289 = vld [vmem:[#allocation2 + $0x98] sm:$0xff]
        %v290 = vld [vmem:[#allocation2 + $0xa0] sm:$0xff]
        %v291 = vld [vmem:[#allocation2 + $0xa8] sm:$0xff]
        %v292 = vld [vmem:[#allocation2 + $0xb0] sm:$0xff]
        %v293 = vld [vmem:[#allocation2 + $0xb8] sm:$0xff]
        %v294 = vld [vmem:[#allocation2 + $0xc0] sm:$0xff]
        %v295 = vld [vmem:[#allocation2 + $0xc8] sm:$0xff]
        %v296 = vld [vmem:[#allocation2 + $0xd0] sm:$0xff]
        %v297 = vld [vmem:[#allocation2 + $0xd8] sm:$0xff]
        %v298 = vld [vmem:[#allocation2 + $0xe0] sm:$0xff]
        %v299 = vld [vmem:[#allocation2 + $0xe8] sm:$0xff]
        %v300 = vld [vmem:[#allocation2 + $0xf0] sm:$0xff]
        %v301 = vld [vmem:[#allocation2 + $0xf8] sm:$0xff]
        %v302 = vld [vmem:[#allocation2 + $0x100] sm:$0xff]
        %v303 = vld [vmem:[#allocation2 + $0x108] sm:$0xff]
        %v304 = vld [vmem:[#allocation2 + $0x110] sm:$0xff]
        %v305 = vld [vmem:[#allocation2 + $0x118] sm:$0xff]
        %v306 = vld [vmem:[#allocation2 + $0x120] sm:$0xff]
        %v307 = vld [vmem:[#allocation2 + $0x128] sm:$0xff]
        %v308 = vld [vmem:[#allocation2 + $0x130] sm:$0xff]
        %v309 = vld [vmem:[#allocation2 + $0x138] sm:$0xff]
        %v310 = vld [vmem:[#allocation2 + $0x140] sm:$0xff]
        %v311 = vld [vmem:[#allocation2 + $0x148] sm:$0xff]
        %v312 = vld [vmem:[#allocation2 + $0x150] sm:$0xff]
        %v313 = vld [vmem:[#allocation2 + $0x158] sm:$0xff]
        %v314 = vld [vmem:[#allocation2 + $0x160] sm:$0xff]
        %v315 = vld [vmem:[#allocation2 + $0x168] sm:$0xff]
        %v316 = vld [vmem:[#allocation2 + $0x170] sm:$0xff]
        %v317 = vld [vmem:[#allocation2 + $0x178] sm:$0xff]
        %v318 = vld [vmem:[#allocation2 + $0x180] sm:$0xff]
        %v319 = vld [vmem:[#allocation2 + $0x188] sm:$0xff]
        %v320 = vld [vmem:[#allocation2 + $0x190] sm:$0xff]
        %v321 = vld [vmem:[#allocation2 + $0x198] sm:$0xff]
        %v322 = vld [vmem:[#allocation2 + $0x1a0] sm:$0xff]
        %v323 = vld [vmem:[#allocation2 + $0x1a8] sm:$0xff]
        %v324 = vld [vmem:[#allocation2 + $0x1b0] sm:$0xff]
        %v325 = vld [vmem:[#allocation2 + $0x1b8] sm:$0xff]
        %v326 = vld [vmem:[#allocation2 + $0x1c0] sm:$0xff]
        %v327 = vld [vmem:[#allocation2 + $0x1c8] sm:$0xff]
        %v328 = vld [vmem:[#allocation2 + $0x1d0] sm:$0xff]
        %v329 = vld [vmem:[#allocation2 + $0x1d8] sm:$0xff]
        %v330 = vld [vmem:[#allocation2 + $0x1e0] sm:$0xff]
        %v331 = vld [vmem:[#allocation2 + $0x1e8] sm:$0xff]
        %v332 = vld [vmem:[#allocation2 + $0x1f0] sm:$0xff]
        %v333 = vld [vmem:[#allocation2 + $0x1f8] sm:$0xff]
        %v334 = vld [vmem:[%s230] sm:$0xff]
        %v335 = vld [vmem:[%s230 + $0x8] sm:$0xff]
        %v336 = vld [vmem:[%s230 + $0x10] sm:$0xff]
        %v337 = vld [vmem:[%s230 + $0x18] sm:$0xff]
        %v338 = vld [vmem:[%s230 + $0x20] sm:$0xff]
        %v339 = vld [vmem:[%s230 + $0x28] sm:$0xff]
        %v340 = vld [vmem:[%s230 + $0x30] sm:$0xff]
        %v341 = vld [vmem:[%s230 + $0x38] sm:$0xff]
        %v342 = vld [vmem:[%s230 + $0x40] sm:$0xff]
        %v343 = vld [vmem:[%s230 + $0x48] sm:$0xff]
        %v344 = vld [vmem:[%s230 + $0x50] sm:$0xff]
        %v345 = vld [vmem:[%s230 + $0x58] sm:$0xff]
        %v346 = vld [vmem:[%s230 + $0x60] sm:$0xff]
        %v347 = vld [vmem:[%s230 + $0x68] sm:$0xff]
        %v348 = vld [vmem:[%s230 + $0x70] sm:$0xff]
        %v349 = vld [vmem:[%s230 + $0x78] sm:$0xff]
        %v350 = vld [vmem:[%s230 + $0x80] sm:$0xff]
        %v351 = vld [vmem:[%s230 + $0x88] sm:$0xff]
        %v352 = vld [vmem:[%s230 + $0x90] sm:$0xff]
        %v353 = vld [vmem:[%s230 + $0x98] sm:$0xff]
        %v354 = vld [vmem:[%s230 + $0xa0] sm:$0xff]
        %v355 = vld [vmem:[%s230 + $0xa8] sm:$0xff]
        %v356 = vld [vmem:[%s230 + $0xb0] sm:$0xff]
        %v357 = vld [vmem:[%s230 + $0xb8] sm:$0xff]
        %v358 = vld [vmem:[%s230 + $0xc0] sm:$0xff]
        %v359 = vld [vmem:[%s230 + $0xc8] sm:$0xff]
        %v360 = vld [vmem:[%s230 + $0xd0] sm:$0xff]
        %v361 = vld [vmem:[%s230 + $0xd8] sm:$0xff]
        %v362 = vld [vmem:[%s230 + $0xe0] sm:$0xff]
        %v363 = vld [vmem:[%s230 + $0xe8] sm:$0xff]
        %v364 = vld [vmem:[%s230 + $0xf0] sm:$0xff]
        %v365 = vld [vmem:[%s230 + $0xf8] sm:$0xff]
        %v366 = vld [vmem:[%s239] sm:$0xff]
        %v367 = vld [vmem:[%s239 + $0x8] sm:$0xff]
        %v368 = vld [vmem:[%s239 + $0x10] sm:$0xff]
        %v369 = vld [vmem:[%s239 + $0x18] sm:$0xff]
        %v370 = vld [vmem:[%s239 + $0x20] sm:$0xff]
        %v371 = vld [vmem:[%s239 + $0x28] sm:$0xff]
        %v372 = vld [vmem:[%s239 + $0x30] sm:$0xff]
        %v373 = vld [vmem:[%s239 + $0x38] sm:$0xff]
        %v374 = vld [vmem:[%s239 + $0x40] sm:$0xff]
        %v375 = vld [vmem:[%s239 + $0x48] sm:$0xff]
        %v376 = vld [vmem:[%s239 + $0x50] sm:$0xff]
        %v377 = vld [vmem:[%s239 + $0x58] sm:$0xff]
        %v378 = vld [vmem:[%s239 + $0x60] sm:$0xff]
        %v379 = vld [vmem:[%s239 + $0x68] sm:$0xff]
        %v380 = vld [vmem:[%s239 + $0x70] sm:$0xff]
        %v381 = vld [vmem:[%s239 + $0x78] sm:$0xff]
        %v382 = vld [vmem:[%s239 + $0x80] sm:$0xff]
        %v383 = vld [vmem:[%s239 + $0x88] sm:$0xff]
        %v384 = vld [vmem:[%s239 + $0x90] sm:$0xff]
        %v385 = vld [vmem:[%s239 + $0x98] sm:$0xff]
        %v386 = vld [vmem:[%s239 + $0xa0] sm:$0xff]
        %v387 = vld [vmem:[%s239 + $0xa8] sm:$0xff]
        %v388 = vld [vmem:[%s239 + $0xb0] sm:$0xff]
        %v389 = vld [vmem:[%s239 + $0xb8] sm:$0xff]
        %v390 = vld [vmem:[%s239 + $0xc0] sm:$0xff]
        %v391 = vld [vmem:[%s239 + $0xc8] sm:$0xff]
        %v392 = vld [vmem:[%s239 + $0xd0] sm:$0xff]
        %v393 = vld [vmem:[%s239 + $0xd8] sm:$0xff]
        %v394 = vld [vmem:[%s239 + $0xe0] sm:$0xff]
        %v395 = vld [vmem:[%s239 + $0xe8] sm:$0xff]
        %v396 = vld [vmem:[%s239 + $0xf0] sm:$0xff]
        %v397 = vld [vmem:[%s239 + $0xf8] sm:$0xff]
        %398 = vmatprep.subr.mxu0 0.0
        %v399 = vand.u32 %v334, 4294901760
        %400 = vmatpush1.msra.mxu0 %v399
        %401 = vmatprep.subr.mxu0 0.0
        %v402 = vand.u32 %v335, 4294901760
        %403 = vmatpush1.msra.mxu0 %v402
        %404 = vmatprep.subr.mxu0 0.0
        %v405 = vand.u32 %v336, 4294901760
        %406 = vmatpush1.msra.mxu0 %v405
        %407 = vmatprep.subr.mxu0 0.0
        %v408 = vand.u32 %v337, 4294901760
        %409 = vmatpush1.msra.mxu0 %v408
        %410 = vmatprep.subr.mxu0 0.0
        %v411 = vand.u32 %v338, 4294901760
        %412 = vmatpush1.msra.mxu0 %v411
        %413 = vmatprep.subr.mxu0 0.0
        %v414 = vand.u32 %v339, 4294901760
        %415 = vmatpush1.msra.mxu0 %v414
        %416 = vmatprep.subr.mxu0 0.0
        %v417 = vand.u32 %v340, 4294901760
        %418 = vmatpush1.msra.mxu0 %v417
        %419 = vmatprep.subr.mxu0 0.0
        %v420 = vand.u32 %v341, 4294901760
        %421 = vmatpush1.msra.mxu0 %v420
        %422 = vmatprep.subr.mxu0 0.0
        %v423 = vand.u32 %v342, 4294901760
        %424 = vmatpush1.msra.mxu0 %v423
        %425 = vmatprep.subr.mxu0 0.0
        %v426 = vand.u32 %v343, 4294901760
        %427 = vmatpush1.msra.mxu0 %v426
        %428 = vmatprep.subr.mxu0 0.0
        %v429 = vand.u32 %v344, 4294901760
        %430 = vmatpush1.msra.mxu0 %v429
        %431 = vmatprep.subr.mxu0 0.0
        %v432 = vand.u32 %v345, 4294901760
        %433 = vmatpush1.msra.mxu0 %v432
        %434 = vmatprep.subr.mxu0 0.0
        %v435 = vand.u32 %v346, 4294901760
        %436 = vmatpush1.msra.mxu0 %v435
        %437 = vmatprep.subr.mxu0 0.0
        %v438 = vand.u32 %v347, 4294901760
        %439 = vmatpush1.msra.mxu0 %v438
        %440 = vmatprep.subr.mxu0 0.0
        %v441 = vand.u32 %v348, 4294901760
        %442 = vmatpush1.msra.mxu0 %v441
        %443 = vmatprep.subr.mxu0 0.0
        %v444 = vand.u32 %v349, 4294901760
        %445 = vmatpush1.msra.mxu0 %v444
        %446 = vmatprep.subr.mxu0 0.0
        %v447 = vand.u32 %v350, 4294901760
        %448 = vmatpush1.msra.mxu0 %v447
        %449 = vmatprep.subr.mxu0 0.0
        %v450 = vand.u32 %v351, 4294901760
        %451 = vmatpush1.msra.mxu0 %v450
        %452 = vmatprep.subr.mxu0 0.0
        %v453 = vand.u32 %v352, 4294901760
        %454 = vmatpush1.msra.mxu0 %v453
        %455 = vmatprep.subr.mxu0 0.0
        %v456 = vand.u32 %v353, 4294901760
        %457 = vmatpush1.msra.mxu0 %v456
        %458 = vmatprep.subr.mxu0 0.0
        %v459 = vand.u32 %v354, 4294901760
        %460 = vmatpush1.msra.mxu0 %v459
        %461 = vmatprep.subr.mxu0 0.0
        %v462 = vand.u32 %v355, 4294901760
        %463 = vmatpush1.msra.mxu0 %v462
        %464 = vmatprep.subr.mxu0 0.0
        %v465 = vand.u32 %v356, 4294901760
        %466 = vmatpush1.msra.mxu0 %v465
        %467 = vmatprep.subr.mxu0 0.0
        %v468 = vand.u32 %v357, 4294901760
        %469 = vmatpush1.msra.mxu0 %v468
        %470 = vmatprep.subr.mxu0 0.0
        %v471 = vand.u32 %v358, 4294901760
        %472 = vmatpush1.msra.mxu0 %v471
        %473 = vmatprep.subr.mxu0 0.0
        %v474 = vand.u32 %v359, 4294901760
        %475 = vmatpush1.msra.mxu0 %v474
        %476 = vmatprep.subr.mxu0 0.0
        %v477 = vand.u32 %v360, 4294901760
        %478 = vmatpush1.msra.mxu0 %v477
        %479 = vmatprep.subr.mxu0 0.0
        %v480 = vand.u32 %v361, 4294901760
        %481 = vmatpush1.msra.mxu0 %v480
        %482 = vmatprep.subr.mxu0 0.0
        %v483 = vand.u32 %v362, 4294901760
        %484 = vmatpush1.msra.mxu0 %v483
        %485 = vmatprep.subr.mxu0 0.0
        %v486 = vand.u32 %v363, 4294901760
        %487 = vmatpush1.msra.mxu0 %v486
        %488 = vmatprep.subr.mxu0 0.0
        %v489 = vand.u32 %v364, 4294901760
        %490 = vmatpush1.msra.mxu0 %v489
        %491 = vmatprep.subr.mxu0 0.0
        %v492 = vand.u32 %v365, 4294901760
        %493 = vmatpush1.msra.mxu0 %v492
        %v494 = vand.u32 %v271, 4294901760
        %v495 = vsub.f32 %v271, %v494
        %v496 = vand.u32 %v495, 4294901760
        %v497 = vsub.f32 %v495, %v496
        %v498 = vand.u32 %v497, 4294901760
        %499 = vmatprep.mubr.f32.mxu0 %v498
        %v500 = vand.u32 %v270, 4294901760
        %v501 = vsub.f32 %v270, %v500
        %v502 = vand.u32 %v501, 4294901760
        %v503 = vsub.f32 %v501, %v502
        %v504 = vand.u32 %v503, 4294901760
        %505 = vmatmul.mubr.f32.gmra.mrb[0].mxu0 %v504
        %v506 = vpop.f32.mrb[0].mxu0
        %v507 = vadd.f32 %v366, %v506
        %v508 = vpop.f32.mrb[0].mxu0
        %v509 = vand.u32 %v273, 4294901760
        %v510 = vsub.f32 %v273, %v509
        %v511 = vand.u32 %v510, 4294901760
        %v512 = vsub.f32 %v510, %v511
        %v513 = vand.u32 %v512, 4294901760
        %514 = vmatprep.mubr.f32.mxu0 %v513
        %v515 = vand.u32 %v272, 4294901760
        %v516 = vsub.f32 %v272, %v515
        %v517 = vand.u32 %v516, 4294901760
        %v518 = vsub.f32 %v516, %v517
        %v519 = vand.u32 %v518, 4294901760
        %520 = vmatmul.mubr.f32.gmra.mrb[0].mxu0 %v519
        %v521 = vpop.f32.mrb[0].mxu0
        %v522 = vadd.f32 %v367, %v521
        %v523 = vpop.f32.mrb[0].mxu0
        %v524 = vand.u32 %v275, 4294901760
        %v525 = vsub.f32 %v275, %v524
        %v526 = vand.u32 %v525, 4294901760
        %v527 = vsub.f32 %v525, %v526
        %v528 = vand.u32 %v527, 4294901760
        %529 = vmatprep.mubr.f32.mxu0 %v528
        %v530 = vand.u32 %v274, 4294901760
        %v531 = vsub.f32 %v274, %v530
        %v532 = vand.u32 %v531, 4294901760
        %v533 = vsub.f32 %v531, %v532
        %v534 = vand.u32 %v533, 4294901760
        %535 = vmatmul.mubr.f32.gmra.mrb[0].mxu0 %v534
        %v536 = vpop.f32.mrb[0].mxu0
        %v537 = vadd.f32 %v368, %v536
        %v538 = vpop.f32.mrb[0].mxu0
        %v539 = vand.u32 %v277, 4294901760
        %v540 = vsub.f32 %v277, %v539
        %v541 = vand.u32 %v540, 4294901760
        %v542 = vsub.f32 %v540, %v541
        %v543 = vand.u32 %v542, 4294901760
        %544 = vmatprep.mubr.f32.mxu0 %v543
        %v545 = vand.u32 %v276, 4294901760
        %v546 = vsub.f32 %v276, %v545
        %v547 = vand.u32 %v546, 4294901760
        %v548 = vsub.f32 %v546, %v547
        %v549 = vand.u32 %v548, 4294901760
        %550 = vmatmul.mubr.f32.gmra.mrb[0].mxu0 %v549
        %v551 = vpop.f32.mrb[0].mxu0
        %v552 = vadd.f32 %v369, %v551
        %v553 = vpop.f32.mrb[0].mxu0
        %v554 = vand.u32 %v279, 4294901760
        %v555 = vsub.f32 %v279, %v554
        %v556 = vand.u32 %v555, 4294901760
        %v557 = vsub.f32 %v555, %v556
        %v558 = vand.u32 %v557, 4294901760
        %559 = vmatprep.mubr.f32.mxu0 %v558
        %v560 = vand.u32 %v278, 4294901760
        %v561 = vsub.f32 %v278, %v560
        %v562 = vand.u32 %v561, 4294901760
        %v563 = vsub.f32 %v561, %v562
        %v564 = vand.u32 %v563, 4294901760
        %565 = vmatmul.mubr.f32.gmra.mrb[0].mxu0 %v564
        %v566 = vpop.f32.mrb[0].mxu0
        %v567 = vadd.f32 %v370, %v566
        %v568 = vpop.f32.mrb[0].mxu0
        %v569 = vand.u32 %v281, 4294901760
        %v570 = vsub.f32 %v281, %v569
        %v571 = vand.u32 %v570, 4294901760
        %v572 = vsub.f32 %v570, %v571
        %v573 = vand.u32 %v572, 4294901760
        %574 = vmatprep.mubr.f32.mxu0 %v573
        %v575 = vand.u32 %v280, 4294901760
        %v576 = vsub.f32 %v280, %v575
        %v577 = vand.u32 %v576, 4294901760
        %v578 = vsub.f32 %v576, %v577
        %v579 = vand.u32 %v578, 4294901760
        %580 = vmatmul.mubr.f32.gmra.mrb[0].mxu0 %v579
        %v581 = vpop.f32.mrb[0].mxu0
        %v582 = vadd.f32 %v371, %v581
        %v583 = vpop.f32.mrb[0].mxu0
        %v584 = vand.u32 %v283, 4294901760
        %v585 = vsub.f32 %v283, %v584
        %v586 = vand.u32 %v585, 4294901760
        %v587 = vsub.f32 %v585, %v586
        %v588 = vand.u32 %v587, 4294901760
        %589 = vmatprep.mubr.f32.mxu0 %v588
        %v590 = vand.u32 %v282, 4294901760
        %v591 = vsub.f32 %v282, %v590
        %v592 = vand.u32 %v591, 4294901760
        %v593 = vsub.f32 %v591, %v592
        %v594 = vand.u32 %v593, 4294901760
        %595 = vmatmul.mubr.f32.gmra.mrb[0].mxu0 %v594
        %v596 = vpop.f32.mrb[0].mxu0
        %v597 = vadd.f32 %v372, %v596
        %v598 = vpop.f32.mrb[0].mxu0
        %v599 = vand.u32 %v285, 4294901760
        %v600 = vsub.f32 %v285, %v599
        %v601 = vand.u32 %v600, 4294901760
        %v602 = vsub.f32 %v600, %v601
        %v603 = vand.u32 %v602, 4294901760
        %604 = vmatprep.mubr.f32.mxu0 %v603
        %v605 = vand.u32 %v284, 4294901760
        %v606 = vsub.f32 %v284, %v605
        %v607 = vand.u32 %v606, 4294901760
        %v608 = vsub.f32 %v606, %v607
        %v609 = vand.u32 %v608, 4294901760
        %610 = vmatmul.mubr.f32.gmra.mrb[0].mxu0 %v609
        %v611 = vpop.f32.mrb[0].mxu0
        %v612 = vadd.f32 %v373, %v611
        %v613 = vpop.f32.mrb[0].mxu0
        %v614 = vand.u32 %v287, 4294901760
        %v615 = vsub.f32 %v287, %v614
        %v616 = vand.u32 %v615, 4294901760
        %v617 = vsub.f32 %v615, %v616
        %v618 = vand.u32 %v617, 4294901760
        %619 = vmatprep.mubr.f32.mxu0 %v618
        %v620 = vand.u32 %v286, 4294901760
        %v621 = vsub.f32 %v286, %v620
        %v622 = vand.u32 %v621, 4294901760
        %v623 = vsub.f32 %v621, %v622
        %v624 = vand.u32 %v623, 4294901760
        %625 = vmatmul.mubr.f32.gmra.mrb[0].mxu0 %v624
        %v626 = vpop.f32.mrb[0].mxu0
        %v627 = vadd.f32 %v374, %v626
        %v628 = vpop.f32.mrb[0].mxu0
        %v629 = vand.u32 %v289, 4294901760
        %v630 = vsub.f32 %v289, %v629
        %v631 = vand.u32 %v630, 4294901760
        %v632 = vsub.f32 %v630, %v631
        %v633 = vand.u32 %v632, 4294901760
        %634 = vmatprep.mubr.f32.mxu0 %v633
        %v635 = vand.u32 %v288, 4294901760
        %v636 = vsub.f32 %v288, %v635
        %v637 = vand.u32 %v636, 4294901760
        %v638 = vsub.f32 %v636, %v637
        %v639 = vand.u32 %v638, 4294901760
        %640 = vmatmul.mubr.f32.gmra.mrb[0].mxu0 %v639
        %v641 = vpop.f32.mrb[0].mxu0
        %v642 = vadd.f32 %v375, %v641
        %v643 = vpop.f32.mrb[0].mxu0
        %v644 = vand.u32 %v291, 4294901760
        %v645 = vsub.f32 %v291, %v644
        %v646 = vand.u32 %v645, 4294901760
        %v647 = vsub.f32 %v645, %v646
        %v648 = vand.u32 %v647, 4294901760
        %649 = vmatprep.mubr.f32.mxu0 %v648
        %v650 = vand.u32 %v290, 4294901760
        %v651 = vsub.f32 %v290, %v650
        %v652 = vand.u32 %v651, 4294901760
        %v653 = vsub.f32 %v651, %v652
        %v654 = vand.u32 %v653, 4294901760
        %655 = vmatmul.mubr.f32.gmra.mrb[0].mxu0 %v654
        %v656 = vpop.f32.mrb[0].mxu0
        %v657 = vadd.f32 %v376, %v656
        %v658 = vpop.f32.mrb[0].mxu0
        %v659 = vand.u32 %v293, 4294901760
        %v660 = vsub.f32 %v293, %v659
        %v661 = vand.u32 %v660, 4294901760
        %v662 = vsub.f32 %v660, %v661
        %v663 = vand.u32 %v662, 4294901760
        %664 = vmatprep.mubr.f32.mxu0 %v663
        %v665 = vand.u32 %v292, 4294901760
        %v666 = vsub.f32 %v292, %v665
        %v667 = vand.u32 %v666, 4294901760
        %v668 = vsub.f32 %v666, %v667
        %v669 = vand.u32 %v668, 4294901760
        %670 = vmatmul.mubr.f32.gmra.mrb[0].mxu0 %v669
        %v671 = vpop.f32.mrb[0].mxu0
        %v672 = vadd.f32 %v377, %v671
        %v673 = vpop.f32.mrb[0].mxu0
        %v674 = vand.u32 %v295, 4294901760
        %v675 = vsub.f32 %v295, %v674
        %v676 = vand.u32 %v675, 4294901760
        %v677 = vsub.f32 %v675, %v676
        %v678 = vand.u32 %v677, 4294901760
        %679 = vmatprep.mubr.f32.mxu0 %v678
        %v680 = vand.u32 %v294, 4294901760
        %v681 = vsub.f32 %v294, %v680
        %v682 = vand.u32 %v681, 4294901760
        %v683 = vsub.f32 %v681, %v682
        %v684 = vand.u32 %v683, 4294901760
        %685 = vmatmul.mubr.f32.gmra.mrb[0].mxu0 %v684
        %v686 = vpop.f32.mrb[0].mxu0
        %v687 = vadd.f32 %v378, %v686
        %v688 = vpop.f32.mrb[0].mxu0
        %v689 = vand.u32 %v297, 4294901760
        %v690 = vsub.f32 %v297, %v689
        %v691 = vand.u32 %v690, 4294901760
        %v692 = vsub.f32 %v690, %v691
        %v693 = vand.u32 %v692, 4294901760
        %694 = vmatprep.mubr.f32.mxu0 %v693
        %v695 = vand.u32 %v296, 4294901760
        %v696 = vsub.f32 %v296, %v695
        %v697 = vand.u32 %v696, 4294901760
        %v698 = vsub.f32 %v696, %v697
        %v699 = vand.u32 %v698, 4294901760
        %700 = vmatmul.mubr.f32.gmra.mrb[0].mxu0 %v699
        %v701 = vpop.f32.mrb[0].mxu0
        %v702 = vadd.f32 %v379, %v701
        %v703 = vpop.f32.mrb[0].mxu0
        %v704 = vand.u32 %v299, 4294901760
        %v705 = vsub.f32 %v299, %v704
        %v706 = vand.u32 %v705, 4294901760
        %v707 = vsub.f32 %v705, %v706
        %v708 = vand.u32 %v707, 4294901760
        %709 = vmatprep.mubr.f32.mxu0 %v708
        %v710 = vand.u32 %v298, 4294901760
        %v711 = vsub.f32 %v298, %v710
        %v712 = vand.u32 %v711, 4294901760
        %v713 = vsub.f32 %v711, %v712
        %v714 = vand.u32 %v713, 4294901760
        %715 = vmatmul.mubr.f32.gmra.mrb[0].mxu0 %v714
        %v716 = vpop.f32.mrb[0].mxu0
        %v717 = vadd.f32 %v380, %v716
        %v718 = vpop.f32.mrb[0].mxu0
        %v719 = vand.u32 %v301, 4294901760
        %v720 = vsub.f32 %v301, %v719
        %v721 = vand.u32 %v720, 4294901760
        %v722 = vsub.f32 %v720, %v721
        %v723 = vand.u32 %v722, 4294901760
        %724 = vmatprep.mubr.f32.mxu0 %v723
        %v725 = vand.u32 %v300, 4294901760
        %v726 = vsub.f32 %v300, %v725
        %v727 = vand.u32 %v726, 4294901760
        %v728 = vsub.f32 %v726, %v727
        %v729 = vand.u32 %v728, 4294901760
        %730 = vmatmul.mubr.f32.gmra.mrb[0].mxu0 %v729
        %v731 = vpop.f32.mrb[0].mxu0
        %v732 = vadd.f32 %v381, %v731
        %v733 = vpop.f32.mrb[0].mxu0
        %v734 = vand.u32 %v303, 4294901760
        %v735 = vsub.f32 %v303, %v734
        %v736 = vand.u32 %v735, 4294901760
        %v737 = vsub.f32 %v735, %v736
        %v738 = vand.u32 %v737, 4294901760
        %739 = vmatprep.mubr.f32.mxu0 %v738
        %v740 = vand.u32 %v302, 4294901760
        %v741 = vsub.f32 %v302, %v740
        %v742 = vand.u32 %v741, 4294901760
        %v743 = vsub.f32 %v741, %v742
        %v744 = vand.u32 %v743, 4294901760
        %745 = vmatmul.mubr.f32.gmra.mrb[0].mxu0 %v744
        %v746 = vpop.f32.mrb[0].mxu0
        %v747 = vadd.f32 %v382, %v746
        %v748 = vpop.f32.mrb[0].mxu0
        %v749 = vand.u32 %v305, 4294901760
        %v750 = vsub.f32 %v305, %v749
        %v751 = vand.u32 %v750, 4294901760
        %v752 = vsub.f32 %v750, %v751
        %v753 = vand.u32 %v752, 4294901760
        %754 = vmatprep.mubr.f32.mxu0 %v753
        %v755 = vand.u32 %v304, 4294901760
        %v756 = vsub.f32 %v304, %v755
        %v757 = vand.u32 %v756, 4294901760
        %v758 = vsub.f32 %v756, %v757
        %v759 = vand.u32 %v758, 4294901760
        %760 = vmatmul.mubr.f32.gmra.mrb[0].mxu0 %v759
        %v761 = vpop.f32.mrb[0].mxu0
        %v762 = vadd.f32 %v383, %v761
        %v763 = vpop.f32.mrb[0].mxu0
        %v764 = vand.u32 %v307, 4294901760
        %v765 = vsub.f32 %v307, %v764
        %v766 = vand.u32 %v765, 4294901760
        %v767 = vsub.f32 %v765, %v766
        %v768 = vand.u32 %v767, 4294901760
        %769 = vmatprep.mubr.f32.mxu0 %v768
        %v770 = vand.u32 %v306, 4294901760
        %v771 = vsub.f32 %v306, %v770
        %v772 = vand.u32 %v771, 4294901760
        %v773 = vsub.f32 %v771, %v772
        %v774 = vand.u32 %v773, 4294901760
        %775 = vmatmul.mubr.f32.gmra.mrb[0].mxu0 %v774
        %v776 = vpop.f32.mrb[0].mxu0
        %v777 = vadd.f32 %v384, %v776
        %v778 = vpop.f32.mrb[0].mxu0
        %v779 = vand.u32 %v309, 4294901760
        %v780 = vsub.f32 %v309, %v779
        %v781 = vand.u32 %v780, 4294901760
        %v782 = vsub.f32 %v780, %v781
        %v783 = vand.u32 %v782, 4294901760
        %784 = vmatprep.mubr.f32.mxu0 %v783
        %v785 = vand.u32 %v308, 4294901760
        %v786 = vsub.f32 %v308, %v785
        %v787 = vand.u32 %v786, 4294901760
        %v788 = vsub.f32 %v786, %v787
        %v789 = vand.u32 %v788, 4294901760
        %790 = vmatmul.mubr.f32.gmra.mrb[0].mxu0 %v789
        %v791 = vpop.f32.mrb[0].mxu0
        %v792 = vadd.f32 %v385, %v791
        %v793 = vpop.f32.mrb[0].mxu0
        %v794 = vand.u32 %v311, 4294901760
        %v795 = vsub.f32 %v311, %v794
        %v796 = vand.u32 %v795, 4294901760
        %v797 = vsub.f32 %v795, %v796
        %v798 = vand.u32 %v797, 4294901760
        %799 = vmatprep.mubr.f32.mxu0 %v798
        %v800 = vand.u32 %v310, 4294901760
        %v801 = vsub.f32 %v310, %v800
        %v802 = vand.u32 %v801, 4294901760
        %v803 = vsub.f32 %v801, %v802
        %v804 = vand.u32 %v803, 4294901760
        %805 = vmatmul.mubr.f32.gmra.mrb[0].mxu0 %v804
        %v806 = vpop.f32.mrb[0].mxu0
        %v807 = vadd.f32 %v386, %v806
        %v808 = vpop.f32.mrb[0].mxu0
        %v809 = vand.u32 %v313, 4294901760
        %v810 = vsub.f32 %v313, %v809
        %v811 = vand.u32 %v810, 4294901760
        %v812 = vsub.f32 %v810, %v811
        %v813 = vand.u32 %v812, 4294901760
        %814 = vmatprep.mubr.f32.mxu0 %v813
        %v815 = vand.u32 %v312, 4294901760
        %v816 = vsub.f32 %v312, %v815
        %v817 = vand.u32 %v816, 4294901760
        %v818 = vsub.f32 %v816, %v817
        %v819 = vand.u32 %v818, 4294901760
        %820 = vmatmul.mubr.f32.gmra.mrb[0].mxu0 %v819
        %v821 = vpop.f32.mrb[0].mxu0
        %v822 = vadd.f32 %v387, %v821
        %v823 = vpop.f32.mrb[0].mxu0
        %v824 = vand.u32 %v315, 4294901760
        %v825 = vsub.f32 %v315, %v824
        %v826 = vand.u32 %v825, 4294901760
        %v827 = vsub.f32 %v825, %v826
        %v828 = vand.u32 %v827, 4294901760
        %829 = vmatprep.mubr.f32.mxu0 %v828
        %v830 = vand.u32 %v314, 4294901760
        %v831 = vsub.f32 %v314, %v830
        %v832 = vand.u32 %v831, 4294901760
        %v833 = vsub.f32 %v831, %v832
        %v834 = vand.u32 %v833, 4294901760
        %835 = vmatmul.mubr.f32.gmra.mrb[0].mxu0 %v834
        %v836 = vpop.f32.mrb[0].mxu0
        %v837 = vadd.f32 %v388, %v836
        %v838 = vpop.f32.mrb[0].mxu0
        %v839 = vand.u32 %v317, 4294901760
        %v840 = vsub.f32 %v317, %v839
        %v841 = vand.u32 %v840, 4294901760
        %v842 = vsub.f32 %v840, %v841
        %v843 = vand.u32 %v842, 4294901760
        %844 = vmatprep.mubr.f32.mxu0 %v843
        %v845 = vand.u32 %v316, 4294901760
        %v846 = vsub.f32 %v316, %v845
        %v847 = vand.u32 %v846, 4294901760
        %v848 = vsub.f32 %v846, %v847
        %v849 = vand.u32 %v848, 4294901760
        %850 = vmatmul.mubr.f32.gmra.mrb[0].mxu0 %v849
        %v851 = vpop.f32.mrb[0].mxu0
        %v852 = vadd.f32 %v389, %v851
        %v853 = vpop.f32.mrb[0].mxu0
        %v854 = vand.u32 %v319, 4294901760
        %v855 = vsub.f32 %v319, %v854
        %v856 = vand.u32 %v855, 4294901760
        %v857 = vsub.f32 %v855, %v856
        %v858 = vand.u32 %v857, 4294901760
        %859 = vmatprep.mubr.f32.mxu0 %v858
        %v860 = vand.u32 %v318, 4294901760
        %v861 = vsub.f32 %v318, %v860
        %v862 = vand.u32 %v861, 4294901760
        %v863 = vsub.f32 %v861, %v862
        %v864 = vand.u32 %v863, 4294901760
        %865 = vmatmul.mubr.f32.gmra.mrb[0].mxu0 %v864
        %v866 = vpop.f32.mrb[0].mxu0
        %v867 = vadd.f32 %v390, %v866
        %v868 = vpop.f32.mrb[0].mxu0
        %v869 = vand.u32 %v321, 4294901760
        %v870 = vsub.f32 %v321, %v869
        %v871 = vand.u32 %v870, 4294901760
        %v872 = vsub.f32 %v870, %v871
        %v873 = vand.u32 %v872, 4294901760
        %874 = vmatprep.mubr.f32.mxu0 %v873
        %v875 = vand.u32 %v320, 4294901760
        %v876 = vsub.f32 %v320, %v875
        %v877 = vand.u32 %v876, 4294901760
        %v878 = vsub.f32 %v876, %v877
        %v879 = vand.u32 %v878, 4294901760
        %880 = vmatmul.mubr.f32.gmra.mrb[0].mxu0 %v879
        %v881 = vpop.f32.mrb[0].mxu0
        %v882 = vadd.f32 %v391, %v881
        %v883 = vpop.f32.mrb[0].mxu0
        %v884 = vand.u32 %v323, 4294901760
        %v885 = vsub.f32 %v323, %v884
        %v886 = vand.u32 %v885, 4294901760
        %v887 = vsub.f32 %v885, %v886
        %v888 = vand.u32 %v887, 4294901760
        %889 = vmatprep.mubr.f32.mxu0 %v888
        %v890 = vand.u32 %v322, 4294901760
        %v891 = vsub.f32 %v322, %v890
        %v892 = vand.u32 %v891, 4294901760
        %v893 = vsub.f32 %v891, %v892
        %v894 = vand.u32 %v893, 4294901760
        %895 = vmatmul.mubr.f32.gmra.mrb[0].mxu0 %v894
        %v896 = vpop.f32.mrb[0].mxu0
        %v897 = vadd.f32 %v392, %v896
        %v898 = vpop.f32.mrb[0].mxu0
        %v899 = vand.u32 %v325, 4294901760
        %v900 = vsub.f32 %v325, %v899
        %v901 = vand.u32 %v900, 4294901760
        %v902 = vsub.f32 %v900, %v901
        %v903 = vand.u32 %v902, 4294901760
        %904 = vmatprep.mubr.f32.mxu0 %v903
        %v905 = vand.u32 %v324, 4294901760
        %v906 = vsub.f32 %v324, %v905
        %v907 = vand.u32 %v906, 4294901760
        %v908 = vsub.f32 %v906, %v907
        %v909 = vand.u32 %v908, 4294901760
        %910 = vmatmul.mubr.f32.gmra.mrb[0].mxu0 %v909
        %v911 = vpop.f32.mrb[0].mxu0
        %v912 = vadd.f32 %v393, %v911
        %v913 = vpop.f32.mrb[0].mxu0
        %v914 = vand.u32 %v327, 4294901760
        %v915 = vsub.f32 %v327, %v914
        %v916 = vand.u32 %v915, 4294901760
        %v917 = vsub.f32 %v915, %v916
        %v918 = vand.u32 %v917, 4294901760
        %919 = vmatprep.mubr.f32.mxu0 %v918
        %v920 = vand.u32 %v326, 4294901760
        %v921 = vsub.f32 %v326, %v920
        %v922 = vand.u32 %v921, 4294901760
        %v923 = vsub.f32 %v921, %v922
        %v924 = vand.u32 %v923, 4294901760
        %925 = vmatmul.mubr.f32.gmra.mrb[0].mxu0 %v924
        %v926 = vpop.f32.mrb[0].mxu0
        %v927 = vadd.f32 %v394, %v926
        %v928 = vpop.f32.mrb[0].mxu0
        %v929 = vand.u32 %v329, 4294901760
        %v930 = vsub.f32 %v329, %v929
        %v931 = vand.u32 %v930, 4294901760
        %v932 = vsub.f32 %v930, %v931
        %v933 = vand.u32 %v932, 4294901760
        %934 = vmatprep.mubr.f32.mxu0 %v933
        %v935 = vand.u32 %v328, 4294901760
        %v936 = vsub.f32 %v328, %v935
        %v937 = vand.u32 %v936, 4294901760
        %v938 = vsub.f32 %v936, %v937
        %v939 = vand.u32 %v938, 4294901760
        %940 = vmatmul.mubr.f32.gmra.mrb[0].mxu0 %v939
        %v941 = vpop.f32.mrb[0].mxu0
        %v942 = vadd.f32 %v395, %v941
        %v943 = vpop.f32.mrb[0].mxu0
        %v944 = vand.u32 %v331, 4294901760
        %v945 = vsub.f32 %v331, %v944
        %v946 = vand.u32 %v945, 4294901760
        %v947 = vsub.f32 %v945, %v946
        %v948 = vand.u32 %v947, 4294901760
        %949 = vmatprep.mubr.f32.mxu0 %v948
        %v950 = vand.u32 %v330, 4294901760
        %v951 = vsub.f32 %v330, %v950
        %v952 = vand.u32 %v951, 4294901760
        %v953 = vsub.f32 %v951, %v952
        %v954 = vand.u32 %v953, 4294901760
        %955 = vmatmul.mubr.f32.gmra.mrb[0].mxu0 %v954
        %v956 = vpop.f32.mrb[0].mxu0
        %v957 = vadd.f32 %v396, %v956
        %v958 = vpop.f32.mrb[0].mxu0
        %v959 = vand.u32 %v333, 4294901760
        %v960 = vsub.f32 %v333, %v959
        %v961 = vand.u32 %v960, 4294901760
        %v962 = vsub.f32 %v960, %v961
        %v963 = vand.u32 %v962, 4294901760
        %964 = vmatprep.mubr.f32.mxu0 %v963
        %v965 = vand.u32 %v332, 4294901760
        %v966 = vsub.f32 %v332, %v965
        %v967 = vand.u32 %v966, 4294901760
        %v968 = vsub.f32 %v966, %v967
        %v969 = vand.u32 %v968, 4294901760
        %970 = vmatmul.mubr.f32.gmra.mrb[0].mxu0 %v969
        %v971 = vpop.f32.mrb[0].mxu0
        %v972 = vadd.f32 %v397, %v971
        %v973 = vpop.f32.mrb[0].mxu0
        %974 = vdwg.mxu0
        %975 = vmatprep.subr.mxu0 0.0
        %v976 = vand.u32 %v334, 4294901760
        %v977 = vsub.f32 %v334, %v976
        %v978 = vand.u32 %v977, 4294901760
        %v979 = vsub.f32 %v977, %v978
        %v980 = vand.u32 %v979, 4294901760
        %981 = vmatpush1.msra.mxu0 %v980
        %982 = vmatprep.subr.mxu0 0.0
        %v983 = vand.u32 %v335, 4294901760
        %v984 = vsub.f32 %v335, %v983
        %v985 = vand.u32 %v984, 4294901760
        %v986 = vsub.f32 %v984, %v985
        %v987 = vand.u32 %v986, 4294901760
        %988 = vmatpush1.msra.mxu0 %v987
        %989 = vmatprep.subr.mxu0 0.0
        %v990 = vand.u32 %v336, 4294901760
        %v991 = vsub.f32 %v336, %v990
        %v992 = vand.u32 %v991, 4294901760
        %v993 = vsub.f32 %v991, %v992
        %v994 = vand.u32 %v993, 4294901760
        %995 = vmatpush1.msra.mxu0 %v994
        %996 = vmatprep.subr.mxu0 0.0
        %v997 = vand.u32 %v337, 4294901760
        %v998 = vsub.f32 %v337, %v997
        %v999 = vand.u32 %v998, 4294901760
        %v1000 = vsub.f32 %v998, %v999
        %v1001 = vand.u32 %v1000, 4294901760
        %1002 = vmatpush1.msra.mxu0 %v1001
        %1003 = vmatprep.subr.mxu0 0.0
        %v1004 = vand.u32 %v338, 4294901760
        %v1005 = vsub.f32 %v338, %v1004
        %v1006 = vand.u32 %v1005, 4294901760
        %v1007 = vsub.f32 %v1005, %v1006
        %v1008 = vand.u32 %v1007, 4294901760
        %1009 = vmatpush1.msra.mxu0 %v1008
        %1010 = vmatprep.subr.mxu0 0.0
        %v1011 = vand.u32 %v339, 4294901760
        %v1012 = vsub.f32 %v339, %v1011
        %v1013 = vand.u32 %v1012, 4294901760
        %v1014 = vsub.f32 %v1012, %v1013
        %v1015 = vand.u32 %v1014, 4294901760
        %1016 = vmatpush1.msra.mxu0 %v1015
        %1017 = vmatprep.subr.mxu0 0.0
        %v1018 = vand.u32 %v340, 4294901760
        %v1019 = vsub.f32 %v340, %v1018
        %v1020 = vand.u32 %v1019, 4294901760
        %v1021 = vsub.f32 %v1019, %v1020
        %v1022 = vand.u32 %v1021, 4294901760
        %1023 = vmatpush1.msra.mxu0 %v1022
        %1024 = vmatprep.subr.mxu0 0.0
        %v1025 = vand.u32 %v341, 4294901760
        %v1026 = vsub.f32 %v341, %v1025
        %v1027 = vand.u32 %v1026, 4294901760
        %v1028 = vsub.f32 %v1026, %v1027
        %v1029 = vand.u32 %v1028, 4294901760
        %1030 = vmatpush1.msra.mxu0 %v1029
        %1031 = vmatprep.subr.mxu0 0.0
        %v1032 = vand.u32 %v342, 4294901760
        %v1033 = vsub.f32 %v342, %v1032
        %v1034 = vand.u32 %v1033, 4294901760
        %v1035 = vsub.f32 %v1033, %v1034
        %v1036 = vand.u32 %v1035, 4294901760
        %1037 = vmatpush1.msra.mxu0 %v1036
        %1038 = vmatprep.subr.mxu0 0.0
        %v1039 = vand.u32 %v343, 4294901760
        %v1040 = vsub.f32 %v343, %v1039
        %v1041 = vand.u32 %v1040, 4294901760
        %v1042 = vsub.f32 %v1040, %v1041
        %v1043 = vand.u32 %v1042, 4294901760
        %1044 = vmatpush1.msra.mxu0 %v1043
        %1045 = vmatprep.subr.mxu0 0.0
        %v1046 = vand.u32 %v344, 4294901760
        %v1047 = vsub.f32 %v344, %v1046
        %v1048 = vand.u32 %v1047, 4294901760
        %v1049 = vsub.f32 %v1047, %v1048
        %v1050 = vand.u32 %v1049, 4294901760
        %1051 = vmatpush1.msra.mxu0 %v1050
        %1052 = vmatprep.subr.mxu0 0.0
        %v1053 = vand.u32 %v345, 4294901760
        %v1054 = vsub.f32 %v345, %v1053
        %v1055 = vand.u32 %v1054, 4294901760
        %v1056 = vsub.f32 %v1054, %v1055
        %v1057 = vand.u32 %v1056, 4294901760
        %1058 = vmatpush1.msra.mxu0 %v1057
        %1059 = vmatprep.subr.mxu0 0.0
        %v1060 = vand.u32 %v346, 4294901760
        %v1061 = vsub.f32 %v346, %v1060
        %v1062 = vand.u32 %v1061, 4294901760
        %v1063 = vsub.f32 %v1061, %v1062
        %v1064 = vand.u32 %v1063, 4294901760
        %1065 = vmatpush1.msra.mxu0 %v1064
        %1066 = vmatprep.subr.mxu0 0.0
        %v1067 = vand.u32 %v347, 4294901760
        %v1068 = vsub.f32 %v347, %v1067
        %v1069 = vand.u32 %v1068, 4294901760
        %v1070 = vsub.f32 %v1068, %v1069
        %v1071 = vand.u32 %v1070, 4294901760
        %1072 = vmatpush1.msra.mxu0 %v1071
        %1073 = vmatprep.subr.mxu0 0.0
        %v1074 = vand.u32 %v348, 4294901760
        %v1075 = vsub.f32 %v348, %v1074
        %v1076 = vand.u32 %v1075, 4294901760
        %v1077 = vsub.f32 %v1075, %v1076
        %v1078 = vand.u32 %v1077, 4294901760
        %1079 = vmatpush1.msra.mxu0 %v1078
        %1080 = vmatprep.subr.mxu0 0.0
        %v1081 = vand.u32 %v349, 4294901760
        %v1082 = vsub.f32 %v349, %v1081
        %v1083 = vand.u32 %v1082, 4294901760
        %v1084 = vsub.f32 %v1082, %v1083
        %v1085 = vand.u32 %v1084, 4294901760
        %1086 = vmatpush1.msra.mxu0 %v1085
        %1087 = vmatprep.subr.mxu0 0.0
        %v1088 = vand.u32 %v350, 4294901760
        %v1089 = vsub.f32 %v350, %v1088
        %v1090 = vand.u32 %v1089, 4294901760
        %v1091 = vsub.f32 %v1089, %v1090
        %v1092 = vand.u32 %v1091, 4294901760
        %1093 = vmatpush1.msra.mxu0 %v1092
        %1094 = vmatprep.subr.mxu0 0.0
        %v1095 = vand.u32 %v351, 4294901760
        %v1096 = vsub.f32 %v351, %v1095
        %v1097 = vand.u32 %v1096, 4294901760
        %v1098 = vsub.f32 %v1096, %v1097
        %v1099 = vand.u32 %v1098, 4294901760
        %1100 = vmatpush1.msra.mxu0 %v1099
        %1101 = vmatprep.subr.mxu0 0.0
        %v1102 = vand.u32 %v352, 4294901760
        %v1103 = vsub.f32 %v352, %v1102
        %v1104 = vand.u32 %v1103, 4294901760
        %v1105 = vsub.f32 %v1103, %v1104
        %v1106 = vand.u32 %v1105, 4294901760
        %1107 = vmatpush1.msra.mxu0 %v1106
        %1108 = vmatprep.subr.mxu0 0.0
        %v1109 = vand.u32 %v353, 4294901760
        %v1110 = vsub.f32 %v353, %v1109
        %v1111 = vand.u32 %v1110, 4294901760
        %v1112 = vsub.f32 %v1110, %v1111
        %v1113 = vand.u32 %v1112, 4294901760
        %1114 = vmatpush1.msra.mxu0 %v1113
        %1115 = vmatprep.subr.mxu0 0.0
        %v1116 = vand.u32 %v354, 4294901760
        %v1117 = vsub.f32 %v354, %v1116
        %v1118 = vand.u32 %v1117, 4294901760
        %v1119 = vsub.f32 %v1117, %v1118
        %v1120 = vand.u32 %v1119, 4294901760
        %1121 = vmatpush1.msra.mxu0 %v1120
        %1122 = vmatprep.subr.mxu0 0.0
        %v1123 = vand.u32 %v355, 4294901760
        %v1124 = vsub.f32 %v355, %v1123
        %v1125 = vand.u32 %v1124, 4294901760
        %v1126 = vsub.f32 %v1124, %v1125
        %v1127 = vand.u32 %v1126, 4294901760
        %1128 = vmatpush1.msra.mxu0 %v1127
        %1129 = vmatprep.subr.mxu0 0.0
        %v1130 = vand.u32 %v356, 4294901760
        %v1131 = vsub.f32 %v356, %v1130
        %v1132 = vand.u32 %v1131, 4294901760
        %v1133 = vsub.f32 %v1131, %v1132
        %v1134 = vand.u32 %v1133, 4294901760
        %1135 = vmatpush1.msra.mxu0 %v1134
        %1136 = vmatprep.subr.mxu0 0.0
        %v1137 = vand.u32 %v357, 4294901760
        %v1138 = vsub.f32 %v357, %v1137
        %v1139 = vand.u32 %v1138, 4294901760
        %v1140 = vsub.f32 %v1138, %v1139
        %v1141 = vand.u32 %v1140, 4294901760
        %1142 = vmatpush1.msra.mxu0 %v1141
        %1143 = vmatprep.subr.mxu0 0.0
        %v1144 = vand.u32 %v358, 4294901760
        %v1145 = vsub.f32 %v358, %v1144
        %v1146 = vand.u32 %v1145, 4294901760
        %v1147 = vsub.f32 %v1145, %v1146
        %v1148 = vand.u32 %v1147, 4294901760
        %1149 = vmatpush1.msra.mxu0 %v1148
        %1150 = vmatprep.subr.mxu0 0.0
        %v1151 = vand.u32 %v359, 4294901760
        %v1152 = vsub.f32 %v359, %v1151
        %v1153 = vand.u32 %v1152, 4294901760
        %v1154 = vsub.f32 %v1152, %v1153
        %v1155 = vand.u32 %v1154, 4294901760
        %1156 = vmatpush1.msra.mxu0 %v1155
        %1157 = vmatprep.subr.mxu0 0.0
        %v1158 = vand.u32 %v360, 4294901760
        %v1159 = vsub.f32 %v360, %v1158
        %v1160 = vand.u32 %v1159, 4294901760
        %v1161 = vsub.f32 %v1159, %v1160
        %v1162 = vand.u32 %v1161, 4294901760
        %1163 = vmatpush1.msra.mxu0 %v1162
        %1164 = vmatprep.subr.mxu0 0.0
        %v1165 = vand.u32 %v361, 4294901760
        %v1166 = vsub.f32 %v361, %v1165
        %v1167 = vand.u32 %v1166, 4294901760
        %v1168 = vsub.f32 %v1166, %v1167
        %v1169 = vand.u32 %v1168, 4294901760
        %1170 = vmatpush1.msra.mxu0 %v1169
        %1171 = vmatprep.subr.mxu0 0.0
        %v1172 = vand.u32 %v362, 4294901760
        %v1173 = vsub.f32 %v362, %v1172
        %v1174 = vand.u32 %v1173, 4294901760
        %v1175 = vsub.f32 %v1173, %v1174
        %v1176 = vand.u32 %v1175, 4294901760
        %1177 = vmatpush1.msra.mxu0 %v1176
        %1178 = vmatprep.subr.mxu0 0.0
        %v1179 = vand.u32 %v363, 4294901760
        %v1180 = vsub.f32 %v363, %v1179
        %v1181 = vand.u32 %v1180, 4294901760
        %v1182 = vsub.f32 %v1180, %v1181
        %v1183 = vand.u32 %v1182, 4294901760
        %1184 = vmatpush1.msra.mxu0 %v1183
        %1185 = vmatprep.subr.mxu0 0.0
        %v1186 = vand.u32 %v364, 4294901760
        %v1187 = vsub.f32 %v364, %v1186
        %v1188 = vand.u32 %v1187, 4294901760
        %v1189 = vsub.f32 %v1187, %v1188
        %v1190 = vand.u32 %v1189, 4294901760
        %1191 = vmatpush1.msra.mxu0 %v1190
        %1192 = vmatprep.subr.mxu0 0.0
        %v1193 = vand.u32 %v365, 4294901760
        %v1194 = vsub.f32 %v365, %v1193
        %v1195 = vand.u32 %v1194, 4294901760
        %v1196 = vsub.f32 %v1194, %v1195
        %v1197 = vand.u32 %v1196, 4294901760
        %1198 = vmatpush1.msra.mxu0 %v1197
        %v1199 = vand.u32 %v271, 4294901760
        %1200 = vmatprep.mubr.f32.mxu0 %v1199
        %v1201 = vand.u32 %v270, 4294901760
        %1202 = vmatmul.mubr.f32.gmra.mrb[0].mxu0 %v1201
        %v1203 = vpop.f32.mrb[0].mxu0
        %v1204 = vadd.f32 %v507, %v1203
        %v1205 = vpop.f32.mrb[0].mxu0
        %v1206 = vand.u32 %v273, 4294901760
        %1207 = vmatprep.mubr.f32.mxu0 %v1206
        %v1208 = vand.u32 %v272, 4294901760
        %1209 = vmatmul.mubr.f32.gmra.mrb[0].mxu0 %v1208
        %v1210 = vpop.f32.mrb[0].mxu0
        %v1211 = vadd.f32 %v522, %v1210
        %v1212 = vpop.f32.mrb[0].mxu0
        %v1213 = vand.u32 %v275, 4294901760
        %1214 = vmatprep.mubr.f32.mxu0 %v1213
        %v1215 = vand.u32 %v274, 4294901760
        %1216 = vmatmul.mubr.f32.gmra.mrb[0].mxu0 %v1215
        %v1217 = vpop.f32.mrb[0].mxu0
        %v1218 = vadd.f32 %v537, %v1217
        %v1219 = vpop.f32.mrb[0].mxu0
        %v1220 = vand.u32 %v277, 4294901760
        %1221 = vmatprep.mubr.f32.mxu0 %v1220
        %v1222 = vand.u32 %v276, 4294901760
        %1223 = vmatmul.mubr.f32.gmra.mrb[0].mxu0 %v1222
        %v1224 = vpop.f32.mrb[0].mxu0
        %v1225 = vadd.f32 %v552, %v1224
        %v1226 = vpop.f32.mrb[0].mxu0
        %v1227 = vand.u32 %v279, 4294901760
        %1228 = vmatprep.mubr.f32.mxu0 %v1227
        %v1229 = vand.u32 %v278, 4294901760
        %1230 = vmatmul.mubr.f32.gmra.mrb[0].mxu0 %v1229
        %v1231 = vpop.f32.mrb[0].mxu0
        %v1232 = vadd.f32 %v567, %v1231
        %v1233 = vpop.f32.mrb[0].mxu0
        %v1234 = vand.u32 %v281, 4294901760
        %1235 = vmatprep.mubr.f32.mxu0 %v1234
        %v1236 = vand.u32 %v280, 4294901760
        %1237 = vmatmul.mubr.f32.gmra.mrb[0].mxu0 %v1236
        %v1238 = vpop.f32.mrb[0].mxu0
        %v1239 = vadd.f32 %v582, %v1238
        %v1240 = vpop.f32.mrb[0].mxu0
        %v1241 = vand.u32 %v283, 4294901760
        %1242 = vmatprep.mubr.f32.mxu0 %v1241
        %v1243 = vand.u32 %v282, 4294901760
        %1244 = vmatmul.mubr.f32.gmra.mrb[0].mxu0 %v1243
        %v1245 = vpop.f32.mrb[0].mxu0
        %v1246 = vadd.f32 %v597, %v1245
        %v1247 = vpop.f32.mrb[0].mxu0
        %v1248 = vand.u32 %v285, 4294901760
        %1249 = vmatprep.mubr.f32.mxu0 %v1248
        %v1250 = vand.u32 %v284, 4294901760
        %1251 = vmatmul.mubr.f32.gmra.mrb[0].mxu0 %v1250
        %v1252 = vpop.f32.mrb[0].mxu0
        %v1253 = vadd.f32 %v612, %v1252
        %v1254 = vpop.f32.mrb[0].mxu0
        %v1255 = vand.u32 %v287, 4294901760
        %1256 = vmatprep.mubr.f32.mxu0 %v1255
        %v1257 = vand.u32 %v286, 4294901760
        %1258 = vmatmul.mubr.f32.gmra.mrb[0].mxu0 %v1257
        %v1259 = vpop.f32.mrb[0].mxu0
        %v1260 = vadd.f32 %v627, %v1259
        %v1261 = vpop.f32.mrb[0].mxu0
        %v1262 = vand.u32 %v289, 4294901760
        %1263 = vmatprep.mubr.f32.mxu0 %v1262
        %v1264 = vand.u32 %v288, 4294901760
        %1265 = vmatmul.mubr.f32.gmra.mrb[0].mxu0 %v1264
        %v1266 = vpop.f32.mrb[0].mxu0
        %v1267 = vadd.f32 %v642, %v1266
        %v1268 = vpop.f32.mrb[0].mxu0
        %v1269 = vand.u32 %v291, 4294901760
        %1270 = vmatprep.mubr.f32.mxu0 %v1269
        %v1271 = vand.u32 %v290, 4294901760
        %1272 = vmatmul.mubr.f32.gmra.mrb[0].mxu0 %v1271
        %v1273 = vpop.f32.mrb[0].mxu0
        %v1274 = vadd.f32 %v657, %v1273
        %v1275 = vpop.f32.mrb[0].mxu0
        %v1276 = vand.u32 %v293, 4294901760
        %1277 = vmatprep.mubr.f32.mxu0 %v1276
        %v1278 = vand.u32 %v292, 4294901760
        %1279 = vmatmul.mubr.f32.gmra.mrb[0].mxu0 %v1278
        %v1280 = vpop.f32.mrb[0].mxu0
        %v1281 = vadd.f32 %v672, %v1280
        %v1282 = vpop.f32.mrb[0].mxu0
        %v1283 = vand.u32 %v295, 4294901760
        %1284 = vmatprep.mubr.f32.mxu0 %v1283
        %v1285 = vand.u32 %v294, 4294901760
        %1286 = vmatmul.mubr.f32.gmra.mrb[0].mxu0 %v1285
        %v1287 = vpop.f32.mrb[0].mxu0
        %v1288 = vadd.f32 %v687, %v1287
        %v1289 = vpop.f32.mrb[0].mxu0
        %v1290 = vand.u32 %v297, 4294901760
        %1291 = vmatprep.mubr.f32.mxu0 %v1290
        %v1292 = vand.u32 %v296, 4294901760
        %1293 = vmatmul.mubr.f32.gmra.mrb[0].mxu0 %v1292
        %v1294 = vpop.f32.mrb[0].mxu0
        %v1295 = vadd.f32 %v702, %v1294
        %v1296 = vpop.f32.mrb[0].mxu0
        %v1297 = vand.u32 %v299, 4294901760
        %1298 = vmatprep.mubr.f32.mxu0 %v1297
        %v1299 = vand.u32 %v298, 4294901760
        %1300 = vmatmul.mubr.f32.gmra.mrb[0].mxu0 %v1299
        %v1301 = vpop.f32.mrb[0].mxu0
        %v1302 = vadd.f32 %v717, %v1301
        %v1303 = vpop.f32.mrb[0].mxu0
        %v1304 = vand.u32 %v301, 4294901760
        %1305 = vmatprep.mubr.f32.mxu0 %v1304
        %v1306 = vand.u32 %v300, 4294901760
        %1307 = vmatmul.mubr.f32.gmra.mrb[0].mxu0 %v1306
        %v1308 = vpop.f32.mrb[0].mxu0
        %v1309 = vadd.f32 %v732, %v1308
        %v1310 = vpop.f32.mrb[0].mxu0
        %v1311 = vand.u32 %v303, 4294901760
        %1312 = vmatprep.mubr.f32.mxu0 %v1311
        %v1313 = vand.u32 %v302, 4294901760
        %1314 = vmatmul.mubr.f32.gmra.mrb[0].mxu0 %v1313
        %v1315 = vpop.f32.mrb[0].mxu0
        %v1316 = vadd.f32 %v747, %v1315
        %v1317 = vpop.f32.mrb[0].mxu0
        %v1318 = vand.u32 %v305, 4294901760
        %1319 = vmatprep.mubr.f32.mxu0 %v1318
        %v1320 = vand.u32 %v304, 4294901760
        %1321 = vmatmul.mubr.f32.gmra.mrb[0].mxu0 %v1320
        %v1322 = vpop.f32.mrb[0].mxu0
        %v1323 = vadd.f32 %v762, %v1322
        %v1324 = vpop.f32.mrb[0].mxu0
        %v1325 = vand.u32 %v307, 4294901760
        %1326 = vmatprep.mubr.f32.mxu0 %v1325
        %v1327 = vand.u32 %v306, 4294901760
        %1328 = vmatmul.mubr.f32.gmra.mrb[0].mxu0 %v1327
        %v1329 = vpop.f32.mrb[0].mxu0
        %v1330 = vadd.f32 %v777, %v1329
        %v1331 = vpop.f32.mrb[0].mxu0
        %v1332 = vand.u32 %v309, 4294901760
        %1333 = vmatprep.mubr.f32.mxu0 %v1332
        %v1334 = vand.u32 %v308, 4294901760
        %1335 = vmatmul.mubr.f32.gmra.mrb[0].mxu0 %v1334
        %v1336 = vpop.f32.mrb[0].mxu0
        %v1337 = vadd.f32 %v792, %v1336
        %v1338 = vpop.f32.mrb[0].mxu0
        %v1339 = vand.u32 %v311, 4294901760
        %1340 = vmatprep.mubr.f32.mxu0 %v1339
        %v1341 = vand.u32 %v310, 4294901760
        %1342 = vmatmul.mubr.f32.gmra.mrb[0].mxu0 %v1341
        %v1343 = vpop.f32.mrb[0].mxu0
        %v1344 = vadd.f32 %v807, %v1343
        %v1345 = vpop.f32.mrb[0].mxu0
        %v1346 = vand.u32 %v313, 4294901760
        %1347 = vmatprep.mubr.f32.mxu0 %v1346
        %v1348 = vand.u32 %v312, 4294901760
        %1349 = vmatmul.mubr.f32.gmra.mrb[0].mxu0 %v1348
        %v1350 = vpop.f32.mrb[0].mxu0
        %v1351 = vadd.f32 %v822, %v1350
        %v1352 = vpop.f32.mrb[0].mxu0
        %v1353 = vand.u32 %v315, 4294901760
        %1354 = vmatprep.mubr.f32.mxu0 %v1353
        %v1355 = vand.u32 %v314, 4294901760
        %1356 = vmatmul.mubr.f32.gmra.mrb[0].mxu0 %v1355
        %v1357 = vpop.f32.mrb[0].mxu0
        %v1358 = vadd.f32 %v837, %v1357
        %v1359 = vpop.f32.mrb[0].mxu0
        %v1360 = vand.u32 %v317, 4294901760
        %1361 = vmatprep.mubr.f32.mxu0 %v1360
        %v1362 = vand.u32 %v316, 4294901760
        %1363 = vmatmul.mubr.f32.gmra.mrb[0].mxu0 %v1362
        %v1364 = vpop.f32.mrb[0].mxu0
        %v1365 = vadd.f32 %v852, %v1364
        %v1366 = vpop.f32.mrb[0].mxu0
        %v1367 = vand.u32 %v319, 4294901760
        %1368 = vmatprep.mubr.f32.mxu0 %v1367
        %v1369 = vand.u32 %v318, 4294901760
        %1370 = vmatmul.mubr.f32.gmra.mrb[0].mxu0 %v1369
        %v1371 = vpop.f32.mrb[0].mxu0
        %v1372 = vadd.f32 %v867, %v1371
        %v1373 = vpop.f32.mrb[0].mxu0
        %v1374 = vand.u32 %v321, 4294901760
        %1375 = vmatprep.mubr.f32.mxu0 %v1374
        %v1376 = vand.u32 %v320, 4294901760
        %1377 = vmatmul.mubr.f32.gmra.mrb[0].mxu0 %v1376
        %v1378 = vpop.f32.mrb[0].mxu0
        %v1379 = vadd.f32 %v882, %v1378
        %v1380 = vpop.f32.mrb[0].mxu0
        %v1381 = vand.u32 %v323, 4294901760
        %1382 = vmatprep.mubr.f32.mxu0 %v1381
        %v1383 = vand.u32 %v322, 4294901760
        %1384 = vmatmul.mubr.f32.gmra.mrb[0].mxu0 %v1383
        %v1385 = vpop.f32.mrb[0].mxu0
        %v1386 = vadd.f32 %v897, %v1385
        %v1387 = vpop.f32.mrb[0].mxu0
        %v1388 = vand.u32 %v325, 4294901760
        %1389 = vmatprep.mubr.f32.mxu0 %v1388
        %v1390 = vand.u32 %v324, 4294901760
        %1391 = vmatmul.mubr.f32.gmra.mrb[0].mxu0 %v1390
        %v1392 = vpop.f32.mrb[0].mxu0
        %v1393 = vadd.f32 %v912, %v1392
        %v1394 = vpop.f32.mrb[0].mxu0
        %v1395 = vand.u32 %v327, 4294901760
        %1396 = vmatprep.mubr.f32.mxu0 %v1395
        %v1397 = vand.u32 %v326, 4294901760
        %1398 = vmatmul.mubr.f32.gmra.mrb[0].mxu0 %v1397
        %v1399 = vpop.f32.mrb[0].mxu0
        %v1400 = vadd.f32 %v927, %v1399
        %v1401 = vpop.f32.mrb[0].mxu0
        %v1402 = vand.u32 %v329, 4294901760
        %1403 = vmatprep.mubr.f32.mxu0 %v1402
        %v1404 = vand.u32 %v328, 4294901760
        %1405 = vmatmul.mubr.f32.gmra.mrb[0].mxu0 %v1404
        %v1406 = vpop.f32.mrb[0].mxu0
        %v1407 = vadd.f32 %v942, %v1406
        %v1408 = vpop.f32.mrb[0].mxu0
        %v1409 = vand.u32 %v331, 4294901760
        %1410 = vmatprep.mubr.f32.mxu0 %v1409
        %v1411 = vand.u32 %v330, 4294901760
        %1412 = vmatmul.mubr.f32.gmra.mrb[0].mxu0 %v1411
        %v1413 = vpop.f32.mrb[0].mxu0
        %v1414 = vadd.f32 %v957, %v1413
        %v1415 = vpop.f32.mrb[0].mxu0
        %v1416 = vand.u32 %v333, 4294901760
        %1417 = vmatprep.mubr.f32.mxu0 %v1416
        %v1418 = vand.u32 %v332, 4294901760
        %1419 = vmatmul.mubr.f32.gmra.mrb[0].mxu0 %v1418
        %v1420 = vpop.f32.mrb[0].mxu0
        %v1421 = vadd.f32 %v972, %v1420
        %v1422 = vpop.f32.mrb[0].mxu0
        %1423 = vdwg.mxu0
        %1424 = vmatprep.subr.mxu0 0.0
        %v1425 = vand.u32 %v334, 4294901760
        %v1426 = vsub.f32 %v334, %v1425
        %1427 = vmatpush1.msra.mxu0 %v1426
        %1428 = vmatprep.subr.mxu0 0.0
        %v1429 = vand.u32 %v335, 4294901760
        %v1430 = vsub.f32 %v335, %v1429
        %1431 = vmatpush1.msra.mxu0 %v1430
        %1432 = vmatprep.subr.mxu0 0.0
        %v1433 = vand.u32 %v336, 4294901760
        %v1434 = vsub.f32 %v336, %v1433
        %1435 = vmatpush1.msra.mxu0 %v1434
        %1436 = vmatprep.subr.mxu0 0.0
        %v1437 = vand.u32 %v337, 4294901760
        %v1438 = vsub.f32 %v337, %v1437
        %1439 = vmatpush1.msra.mxu0 %v1438
        %1440 = vmatprep.subr.mxu0 0.0
        %v1441 = vand.u32 %v338, 4294901760
        %v1442 = vsub.f32 %v338, %v1441
        %1443 = vmatpush1.msra.mxu0 %v1442
        %1444 = vmatprep.subr.mxu0 0.0
        %v1445 = vand.u32 %v339, 4294901760
        %v1446 = vsub.f32 %v339, %v1445
        %1447 = vmatpush1.msra.mxu0 %v1446
        %1448 = vmatprep.subr.mxu0 0.0
        %v1449 = vand.u32 %v340, 4294901760
        %v1450 = vsub.f32 %v340, %v1449
        %1451 = vmatpush1.msra.mxu0 %v1450
        %1452 = vmatprep.subr.mxu0 0.0
        %v1453 = vand.u32 %v341, 4294901760
        %v1454 = vsub.f32 %v341, %v1453
        %1455 = vmatpush1.msra.mxu0 %v1454
        %1456 = vmatprep.subr.mxu0 0.0
        %v1457 = vand.u32 %v342, 4294901760
        %v1458 = vsub.f32 %v342, %v1457
        %1459 = vmatpush1.msra.mxu0 %v1458
        %1460 = vmatprep.subr.mxu0 0.0
        %v1461 = vand.u32 %v343, 4294901760
        %v1462 = vsub.f32 %v343, %v1461
        %1463 = vmatpush1.msra.mxu0 %v1462
        %1464 = vmatprep.subr.mxu0 0.0
        %v1465 = vand.u32 %v344, 4294901760
        %v1466 = vsub.f32 %v344, %v1465
        %1467 = vmatpush1.msra.mxu0 %v1466
        %1468 = vmatprep.subr.mxu0 0.0
        %v1469 = vand.u32 %v345, 4294901760
        %v1470 = vsub.f32 %v345, %v1469
        %1471 = vmatpush1.msra.mxu0 %v1470
        %1472 = vmatprep.subr.mxu0 0.0
        %v1473 = vand.u32 %v346, 4294901760
        %v1474 = vsub.f32 %v346, %v1473
        %1475 = vmatpush1.msra.mxu0 %v1474
        %1476 = vmatprep.subr.mxu0 0.0
        %v1477 = vand.u32 %v347, 4294901760
        %v1478 = vsub.f32 %v347, %v1477
        %1479 = vmatpush1.msra.mxu0 %v1478
        %1480 = vmatprep.subr.mxu0 0.0
        %v1481 = vand.u32 %v348, 4294901760
        %v1482 = vsub.f32 %v348, %v1481
        %1483 = vmatpush1.msra.mxu0 %v1482
        %1484 = vmatprep.subr.mxu0 0.0
        %v1485 = vand.u32 %v349, 4294901760
        %v1486 = vsub.f32 %v349, %v1485
        %1487 = vmatpush1.msra.mxu0 %v1486
        %1488 = vmatprep.subr.mxu0 0.0
        %v1489 = vand.u32 %v350, 4294901760
        %v1490 = vsub.f32 %v350, %v1489
        %1491 = vmatpush1.msra.mxu0 %v1490
        %1492 = vmatprep.subr.mxu0 0.0
        %v1493 = vand.u32 %v351, 4294901760
        %v1494 = vsub.f32 %v351, %v1493
        %1495 = vmatpush1.msra.mxu0 %v1494
        %1496 = vmatprep.subr.mxu0 0.0
        %v1497 = vand.u32 %v352, 4294901760
        %v1498 = vsub.f32 %v352, %v1497
        %1499 = vmatpush1.msra.mxu0 %v1498
        %1500 = vmatprep.subr.mxu0 0.0
        %v1501 = vand.u32 %v353, 4294901760
        %v1502 = vsub.f32 %v353, %v1501
        %1503 = vmatpush1.msra.mxu0 %v1502
        %1504 = vmatprep.subr.mxu0 0.0
        %v1505 = vand.u32 %v354, 4294901760
        %v1506 = vsub.f32 %v354, %v1505
        %1507 = vmatpush1.msra.mxu0 %v1506
        %1508 = vmatprep.subr.mxu0 0.0
        %v1509 = vand.u32 %v355, 4294901760
        %v1510 = vsub.f32 %v355, %v1509
        %1511 = vmatpush1.msra.mxu0 %v1510
        %1512 = vmatprep.subr.mxu0 0.0
        %v1513 = vand.u32 %v356, 4294901760
        %v1514 = vsub.f32 %v356, %v1513
        %1515 = vmatpush1.msra.mxu0 %v1514
        %1516 = vmatprep.subr.mxu0 0.0
        %v1517 = vand.u32 %v357, 4294901760
        %v1518 = vsub.f32 %v357, %v1517
        %1519 = vmatpush1.msra.mxu0 %v1518
        %1520 = vmatprep.subr.mxu0 0.0
        %v1521 = vand.u32 %v358, 4294901760
        %v1522 = vsub.f32 %v358, %v1521
        %1523 = vmatpush1.msra.mxu0 %v1522
        %1524 = vmatprep.subr.mxu0 0.0
        %v1525 = vand.u32 %v359, 4294901760
        %v1526 = vsub.f32 %v359, %v1525
        %1527 = vmatpush1.msra.mxu0 %v1526
        %1528 = vmatprep.subr.mxu0 0.0
        %v1529 = vand.u32 %v360, 4294901760
        %v1530 = vsub.f32 %v360, %v1529
        %1531 = vmatpush1.msra.mxu0 %v1530
        %1532 = vmatprep.subr.mxu0 0.0
        %v1533 = vand.u32 %v361, 4294901760
        %v1534 = vsub.f32 %v361, %v1533
        %1535 = vmatpush1.msra.mxu0 %v1534
        %1536 = vmatprep.subr.mxu0 0.0
        %v1537 = vand.u32 %v362, 4294901760
        %v1538 = vsub.f32 %v362, %v1537
        %1539 = vmatpush1.msra.mxu0 %v1538
        %1540 = vmatprep.subr.mxu0 0.0
        %v1541 = vand.u32 %v363, 4294901760
        %v1542 = vsub.f32 %v363, %v1541
        %1543 = vmatpush1.msra.mxu0 %v1542
        %1544 = vmatprep.subr.mxu0 0.0
        %v1545 = vand.u32 %v364, 4294901760
        %v1546 = vsub.f32 %v364, %v1545
        %1547 = vmatpush1.msra.mxu0 %v1546
        %1548 = vmatprep.subr.mxu0 0.0
        %v1549 = vand.u32 %v365, 4294901760
        %v1550 = vsub.f32 %v365, %v1549
        %1551 = vmatpush1.msra.mxu0 %v1550
        %v1552 = vand.u32 %v271, 4294901760
        %v1553 = vsub.f32 %v271, %v1552
        %1554 = vmatprep.mubr.f32.mxu0 %v1553
        %v1555 = vand.u32 %v270, 4294901760
        %v1556 = vsub.f32 %v270, %v1555
        %1557 = vmatmul.mubr.f32.gmra.mrb[0].mxu0 %v1556
        %v1558 = vpop.f32.mrb[0].mxu0
        %v1559 = vadd.f32 %v1204, %v1558
        %v1560 = vpop.f32.mrb[0].mxu0
        %v1561 = vand.u32 %v273, 4294901760
        %v1562 = vsub.f32 %v273, %v1561
        %1563 = vmatprep.mubr.f32.mxu0 %v1562
        %v1564 = vand.u32 %v272, 4294901760
        %v1565 = vsub.f32 %v272, %v1564
        %1566 = vmatmul.mubr.f32.gmra.mrb[0].mxu0 %v1565
        %v1567 = vpop.f32.mrb[0].mxu0
        %v1568 = vadd.f32 %v1211, %v1567
        %v1569 = vpop.f32.mrb[0].mxu0
        %v1570 = vand.u32 %v275, 4294901760
        %v1571 = vsub.f32 %v275, %v1570
        %1572 = vmatprep.mubr.f32.mxu0 %v1571
        %v1573 = vand.u32 %v274, 4294901760
        %v1574 = vsub.f32 %v274, %v1573
        %1575 = vmatmul.mubr.f32.gmra.mrb[0].mxu0 %v1574
        %v1576 = vpop.f32.mrb[0].mxu0
        %v1577 = vadd.f32 %v1218, %v1576
        %v1578 = vpop.f32.mrb[0].mxu0
        %v1579 = vand.u32 %v277, 4294901760
        %v1580 = vsub.f32 %v277, %v1579
        %1581 = vmatprep.mubr.f32.mxu0 %v1580
        %v1582 = vand.u32 %v276, 4294901760
        %v1583 = vsub.f32 %v276, %v1582
        %1584 = vmatmul.mubr.f32.gmra.mrb[0].mxu0 %v1583
        %v1585 = vpop.f32.mrb[0].mxu0
        %v1586 = vadd.f32 %v1225, %v1585
        %v1587 = vpop.f32.mrb[0].mxu0
        %v1588 = vand.u32 %v279, 4294901760
        %v1589 = vsub.f32 %v279, %v1588
        %1590 = vmatprep.mubr.f32.mxu0 %v1589
        %v1591 = vand.u32 %v278, 4294901760
        %v1592 = vsub.f32 %v278, %v1591
        %1593 = vmatmul.mubr.f32.gmra.mrb[0].mxu0 %v1592
        %v1594 = vpop.f32.mrb[0].mxu0
        %v1595 = vadd.f32 %v1232, %v1594
        %v1596 = vpop.f32.mrb[0].mxu0
        %v1597 = vand.u32 %v281, 4294901760
        %v1598 = vsub.f32 %v281, %v1597
        %1599 = vmatprep.mubr.f32.mxu0 %v1598
        %v1600 = vand.u32 %v280, 4294901760
        %v1601 = vsub.f32 %v280, %v1600
        %1602 = vmatmul.mubr.f32.gmra.mrb[0].mxu0 %v1601
        %v1603 = vpop.f32.mrb[0].mxu0
        %v1604 = vadd.f32 %v1239, %v1603
        %v1605 = vpop.f32.mrb[0].mxu0
        %v1606 = vand.u32 %v283, 4294901760
        %v1607 = vsub.f32 %v283, %v1606
        %1608 = vmatprep.mubr.f32.mxu0 %v1607
        %v1609 = vand.u32 %v282, 4294901760
        %v1610 = vsub.f32 %v282, %v1609
        %1611 = vmatmul.mubr.f32.gmra.mrb[0].mxu0 %v1610
        %v1612 = vpop.f32.mrb[0].mxu0
        %v1613 = vadd.f32 %v1246, %v1612
        %v1614 = vpop.f32.mrb[0].mxu0
        %v1615 = vand.u32 %v285, 4294901760
        %v1616 = vsub.f32 %v285, %v1615
        %1617 = vmatprep.mubr.f32.mxu0 %v1616
        %v1618 = vand.u32 %v284, 4294901760
        %v1619 = vsub.f32 %v284, %v1618
        %1620 = vmatmul.mubr.f32.gmra.mrb[0].mxu0 %v1619
        %v1621 = vpop.f32.mrb[0].mxu0
        %v1622 = vadd.f32 %v1253, %v1621
        %v1623 = vpop.f32.mrb[0].mxu0
        %v1624 = vand.u32 %v287, 4294901760
        %v1625 = vsub.f32 %v287, %v1624
        %1626 = vmatprep.mubr.f32.mxu0 %v1625
        %v1627 = vand.u32 %v286, 4294901760
        %v1628 = vsub.f32 %v286, %v1627
        %1629 = vmatmul.mubr.f32.gmra.mrb[0].mxu0 %v1628
        %v1630 = vpop.f32.mrb[0].mxu0
        %v1631 = vadd.f32 %v1260, %v1630
        %v1632 = vpop.f32.mrb[0].mxu0
        %v1633 = vand.u32 %v289, 4294901760
        %v1634 = vsub.f32 %v289, %v1633
        %1635 = vmatprep.mubr.f32.mxu0 %v1634
        %v1636 = vand.u32 %v288, 4294901760
        %v1637 = vsub.f32 %v288, %v1636
        %1638 = vmatmul.mubr.f32.gmra.mrb[0].mxu0 %v1637
        %v1639 = vpop.f32.mrb[0].mxu0
        %v1640 = vadd.f32 %v1267, %v1639
        %v1641 = vpop.f32.mrb[0].mxu0
        %v1642 = vand.u32 %v291, 4294901760
        %v1643 = vsub.f32 %v291, %v1642
        %1644 = vmatprep.mubr.f32.mxu0 %v1643
        %v1645 = vand.u32 %v290, 4294901760
        %v1646 = vsub.f32 %v290, %v1645
        %1647 = vmatmul.mubr.f32.gmra.mrb[0].mxu0 %v1646
        %v1648 = vpop.f32.mrb[0].mxu0
        %v1649 = vadd.f32 %v1274, %v1648
        %v1650 = vpop.f32.mrb[0].mxu0
        %v1651 = vand.u32 %v293, 4294901760
        %v1652 = vsub.f32 %v293, %v1651
        %1653 = vmatprep.mubr.f32.mxu0 %v1652
        %v1654 = vand.u32 %v292, 4294901760
        %v1655 = vsub.f32 %v292, %v1654
        %1656 = vmatmul.mubr.f32.gmra.mrb[0].mxu0 %v1655
        %v1657 = vpop.f32.mrb[0].mxu0
        %v1658 = vadd.f32 %v1281, %v1657
        %v1659 = vpop.f32.mrb[0].mxu0
        %v1660 = vand.u32 %v295, 4294901760
        %v1661 = vsub.f32 %v295, %v1660
        %1662 = vmatprep.mubr.f32.mxu0 %v1661
        %v1663 = vand.u32 %v294, 4294901760
        %v1664 = vsub.f32 %v294, %v1663
        %1665 = vmatmul.mubr.f32.gmra.mrb[0].mxu0 %v1664
        %v1666 = vpop.f32.mrb[0].mxu0
        %v1667 = vadd.f32 %v1288, %v1666
        %v1668 = vpop.f32.mrb[0].mxu0
        %v1669 = vand.u32 %v297, 4294901760
        %v1670 = vsub.f32 %v297, %v1669
        %1671 = vmatprep.mubr.f32.mxu0 %v1670
        %v1672 = vand.u32 %v296, 4294901760
        %v1673 = vsub.f32 %v296, %v1672
        %1674 = vmatmul.mubr.f32.gmra.mrb[0].mxu0 %v1673
        %v1675 = vpop.f32.mrb[0].mxu0
        %v1676 = vadd.f32 %v1295, %v1675
        %v1677 = vpop.f32.mrb[0].mxu0
        %v1678 = vand.u32 %v299, 4294901760
        %v1679 = vsub.f32 %v299, %v1678
        %1680 = vmatprep.mubr.f32.mxu0 %v1679
        %v1681 = vand.u32 %v298, 4294901760
        %v1682 = vsub.f32 %v298, %v1681
        %1683 = vmatmul.mubr.f32.gmra.mrb[0].mxu0 %v1682
        %v1684 = vpop.f32.mrb[0].mxu0
        %v1685 = vadd.f32 %v1302, %v1684
        %v1686 = vpop.f32.mrb[0].mxu0
        %v1687 = vand.u32 %v301, 4294901760
        %v1688 = vsub.f32 %v301, %v1687
        %1689 = vmatprep.mubr.f32.mxu0 %v1688
        %v1690 = vand.u32 %v300, 4294901760
        %v1691 = vsub.f32 %v300, %v1690
        %1692 = vmatmul.mubr.f32.gmra.mrb[0].mxu0 %v1691
        %v1693 = vpop.f32.mrb[0].mxu0
        %v1694 = vadd.f32 %v1309, %v1693
        %v1695 = vpop.f32.mrb[0].mxu0
        %v1696 = vand.u32 %v303, 4294901760
        %v1697 = vsub.f32 %v303, %v1696
        %1698 = vmatprep.mubr.f32.mxu0 %v1697
        %v1699 = vand.u32 %v302, 4294901760
        %v1700 = vsub.f32 %v302, %v1699
        %1701 = vmatmul.mubr.f32.gmra.mrb[0].mxu0 %v1700
        %v1702 = vpop.f32.mrb[0].mxu0
        %v1703 = vadd.f32 %v1316, %v1702
        %v1704 = vpop.f32.mrb[0].mxu0
        %v1705 = vand.u32 %v305, 4294901760
        %v1706 = vsub.f32 %v305, %v1705
        %1707 = vmatprep.mubr.f32.mxu0 %v1706
        %v1708 = vand.u32 %v304, 4294901760
        %v1709 = vsub.f32 %v304, %v1708
        %1710 = vmatmul.mubr.f32.gmra.mrb[0].mxu0 %v1709
        %v1711 = vpop.f32.mrb[0].mxu0
        %v1712 = vadd.f32 %v1323, %v1711
        %v1713 = vpop.f32.mrb[0].mxu0
        %v1714 = vand.u32 %v307, 4294901760
        %v1715 = vsub.f32 %v307, %v1714
        %1716 = vmatprep.mubr.f32.mxu0 %v1715
        %v1717 = vand.u32 %v306, 4294901760
        %v1718 = vsub.f32 %v306, %v1717
        %1719 = vmatmul.mubr.f32.gmra.mrb[0].mxu0 %v1718
        %v1720 = vpop.f32.mrb[0].mxu0
        %v1721 = vadd.f32 %v1330, %v1720
        %v1722 = vpop.f32.mrb[0].mxu0
        %v1723 = vand.u32 %v309, 4294901760
        %v1724 = vsub.f32 %v309, %v1723
        %1725 = vmatprep.mubr.f32.mxu0 %v1724
        %v1726 = vand.u32 %v308, 4294901760
        %v1727 = vsub.f32 %v308, %v1726
        %1728 = vmatmul.mubr.f32.gmra.mrb[0].mxu0 %v1727
        %v1729 = vpop.f32.mrb[0].mxu0
        %v1730 = vadd.f32 %v1337, %v1729
        %v1731 = vpop.f32.mrb[0].mxu0
        %v1732 = vand.u32 %v311, 4294901760
        %v1733 = vsub.f32 %v311, %v1732
        %1734 = vmatprep.mubr.f32.mxu0 %v1733
        %v1735 = vand.u32 %v310, 4294901760
        %v1736 = vsub.f32 %v310, %v1735
        %1737 = vmatmul.mubr.f32.gmra.mrb[0].mxu0 %v1736
        %v1738 = vpop.f32.mrb[0].mxu0
        %v1739 = vadd.f32 %v1344, %v1738
        %v1740 = vpop.f32.mrb[0].mxu0
        %v1741 = vand.u32 %v313, 4294901760
        %v1742 = vsub.f32 %v313, %v1741
        %1743 = vmatprep.mubr.f32.mxu0 %v1742
        %v1744 = vand.u32 %v312, 4294901760
        %v1745 = vsub.f32 %v312, %v1744
        %1746 = vmatmul.mubr.f32.gmra.mrb[0].mxu0 %v1745
        %v1747 = vpop.f32.mrb[0].mxu0
        %v1748 = vadd.f32 %v1351, %v1747
        %v1749 = vpop.f32.mrb[0].mxu0
        %v1750 = vand.u32 %v315, 4294901760
        %v1751 = vsub.f32 %v315, %v1750
        %1752 = vmatprep.mubr.f32.mxu0 %v1751
        %v1753 = vand.u32 %v314, 4294901760
        %v1754 = vsub.f32 %v314, %v1753
        %1755 = vmatmul.mubr.f32.gmra.mrb[0].mxu0 %v1754
        %v1756 = vpop.f32.mrb[0].mxu0
        %v1757 = vadd.f32 %v1358, %v1756
        %v1758 = vpop.f32.mrb[0].mxu0
        %v1759 = vand.u32 %v317, 4294901760
        %v1760 = vsub.f32 %v317, %v1759
        %1761 = vmatprep.mubr.f32.mxu0 %v1760
        %v1762 = vand.u32 %v316, 4294901760
        %v1763 = vsub.f32 %v316, %v1762
        %1764 = vmatmul.mubr.f32.gmra.mrb[0].mxu0 %v1763
        %v1765 = vpop.f32.mrb[0].mxu0
        %v1766 = vadd.f32 %v1365, %v1765
        %v1767 = vpop.f32.mrb[0].mxu0
        %v1768 = vand.u32 %v319, 4294901760
        %v1769 = vsub.f32 %v319, %v1768
        %1770 = vmatprep.mubr.f32.mxu0 %v1769
        %v1771 = vand.u32 %v318, 4294901760
        %v1772 = vsub.f32 %v318, %v1771
        %1773 = vmatmul.mubr.f32.gmra.mrb[0].mxu0 %v1772
        %v1774 = vpop.f32.mrb[0].mxu0
        %v1775 = vadd.f32 %v1372, %v1774
        %v1776 = vpop.f32.mrb[0].mxu0
        %v1777 = vand.u32 %v321, 4294901760
        %v1778 = vsub.f32 %v321, %v1777
        %1779 = vmatprep.mubr.f32.mxu0 %v1778
        %v1780 = vand.u32 %v320, 4294901760
        %v1781 = vsub.f32 %v320, %v1780
        %1782 = vmatmul.mubr.f32.gmra.mrb[0].mxu0 %v1781
        %v1783 = vpop.f32.mrb[0].mxu0
        %v1784 = vadd.f32 %v1379, %v1783
        %v1785 = vpop.f32.mrb[0].mxu0
        %v1786 = vand.u32 %v323, 4294901760
        %v1787 = vsub.f32 %v323, %v1786
        %1788 = vmatprep.mubr.f32.mxu0 %v1787
        %v1789 = vand.u32 %v322, 4294901760
        %v1790 = vsub.f32 %v322, %v1789
        %1791 = vmatmul.mubr.f32.gmra.mrb[0].mxu0 %v1790
        %v1792 = vpop.f32.mrb[0].mxu0
        %v1793 = vadd.f32 %v1386, %v1792
        %v1794 = vpop.f32.mrb[0].mxu0
        %v1795 = vand.u32 %v325, 4294901760
        %v1796 = vsub.f32 %v325, %v1795
        %1797 = vmatprep.mubr.f32.mxu0 %v1796
        %v1798 = vand.u32 %v324, 4294901760
        %v1799 = vsub.f32 %v324, %v1798
        %1800 = vmatmul.mubr.f32.gmra.mrb[0].mxu0 %v1799
        %v1801 = vpop.f32.mrb[0].mxu0
        %v1802 = vadd.f32 %v1393, %v1801
        %v1803 = vpop.f32.mrb[0].mxu0
        %v1804 = vand.u32 %v327, 4294901760
        %v1805 = vsub.f32 %v327, %v1804
        %1806 = vmatprep.mubr.f32.mxu0 %v1805
        %v1807 = vand.u32 %v326, 4294901760
        %v1808 = vsub.f32 %v326, %v1807
        %1809 = vmatmul.mubr.f32.gmra.mrb[0].mxu0 %v1808
        %v1810 = vpop.f32.mrb[0].mxu0
        %v1811 = vadd.f32 %v1400, %v1810
        %v1812 = vpop.f32.mrb[0].mxu0
        %v1813 = vand.u32 %v329, 4294901760
        %v1814 = vsub.f32 %v329, %v1813
        %1815 = vmatprep.mubr.f32.mxu0 %v1814
        %v1816 = vand.u32 %v328, 4294901760
        %v1817 = vsub.f32 %v328, %v1816
        %1818 = vmatmul.mubr.f32.gmra.mrb[0].mxu0 %v1817
        %v1819 = vpop.f32.mrb[0].mxu0
        %v1820 = vadd.f32 %v1407, %v1819
        %v1821 = vpop.f32.mrb[0].mxu0
        %v1822 = vand.u32 %v331, 4294901760
        %v1823 = vsub.f32 %v331, %v1822
        %1824 = vmatprep.mubr.f32.mxu0 %v1823
        %v1825 = vand.u32 %v330, 4294901760
        %v1826 = vsub.f32 %v330, %v1825
        %1827 = vmatmul.mubr.f32.gmra.mrb[0].mxu0 %v1826
        %v1828 = vpop.f32.mrb[0].mxu0
        %v1829 = vadd.f32 %v1414, %v1828
        %v1830 = vpop.f32.mrb[0].mxu0
        %v1831 = vand.u32 %v333, 4294901760
        %v1832 = vsub.f32 %v333, %v1831
        %1833 = vmatprep.mubr.f32.mxu0 %v1832
        %v1834 = vand.u32 %v332, 4294901760
        %v1835 = vsub.f32 %v332, %v1834
        %1836 = vmatmul.mubr.f32.gmra.mrb[0].mxu0 %v1835
        %v1837 = vpop.f32.mrb[0].mxu0
        %v1838 = vadd.f32 %v1421, %v1837
        %v1839 = vpop.f32.mrb[0].mxu0
        %1840 = vdwg.mxu0
        %1841 = vmatprep.subr.mxu0 0.0
        %v1842 = vand.u32 %v334, 4294901760
        %1843 = vmatpush1.msra.mxu0 %v1842
        %1844 = vmatprep.subr.mxu0 0.0
        %v1845 = vand.u32 %v335, 4294901760
        %1846 = vmatpush1.msra.mxu0 %v1845
        %1847 = vmatprep.subr.mxu0 0.0
        %v1848 = vand.u32 %v336, 4294901760
        %1849 = vmatpush1.msra.mxu0 %v1848
        %1850 = vmatprep.subr.mxu0 0.0
        %v1851 = vand.u32 %v337, 4294901760
        %1852 = vmatpush1.msra.mxu0 %v1851
        %1853 = vmatprep.subr.mxu0 0.0
        %v1854 = vand.u32 %v338, 4294901760
        %1855 = vmatpush1.msra.mxu0 %v1854
        %1856 = vmatprep.subr.mxu0 0.0
        %v1857 = vand.u32 %v339, 4294901760
        %1858 = vmatpush1.msra.mxu0 %v1857
        %1859 = vmatprep.subr.mxu0 0.0
        %v1860 = vand.u32 %v340, 4294901760
        %1861 = vmatpush1.msra.mxu0 %v1860
        %1862 = vmatprep.subr.mxu0 0.0
        %v1863 = vand.u32 %v341, 4294901760
        %1864 = vmatpush1.msra.mxu0 %v1863
        %1865 = vmatprep.subr.mxu0 0.0
        %v1866 = vand.u32 %v342, 4294901760
        %1867 = vmatpush1.msra.mxu0 %v1866
        %1868 = vmatprep.subr.mxu0 0.0
        %v1869 = vand.u32 %v343, 4294901760
        %1870 = vmatpush1.msra.mxu0 %v1869
        %1871 = vmatprep.subr.mxu0 0.0
        %v1872 = vand.u32 %v344, 4294901760
        %1873 = vmatpush1.msra.mxu0 %v1872
        %1874 = vmatprep.subr.mxu0 0.0
        %v1875 = vand.u32 %v345, 4294901760
        %1876 = vmatpush1.msra.mxu0 %v1875
        %1877 = vmatprep.subr.mxu0 0.0
        %v1878 = vand.u32 %v346, 4294901760
        %1879 = vmatpush1.msra.mxu0 %v1878
        %1880 = vmatprep.subr.mxu0 0.0
        %v1881 = vand.u32 %v347, 4294901760
        %1882 = vmatpush1.msra.mxu0 %v1881
        %1883 = vmatprep.subr.mxu0 0.0
        %v1884 = vand.u32 %v348, 4294901760
        %1885 = vmatpush1.msra.mxu0 %v1884
        %1886 = vmatprep.subr.mxu0 0.0
        %v1887 = vand.u32 %v349, 4294901760
        %1888 = vmatpush1.msra.mxu0 %v1887
        %1889 = vmatprep.subr.mxu0 0.0
        %v1890 = vand.u32 %v350, 4294901760
        %1891 = vmatpush1.msra.mxu0 %v1890
        %1892 = vmatprep.subr.mxu0 0.0
        %v1893 = vand.u32 %v351, 4294901760
        %1894 = vmatpush1.msra.mxu0 %v1893
        %1895 = vmatprep.subr.mxu0 0.0
        %v1896 = vand.u32 %v352, 4294901760
        %1897 = vmatpush1.msra.mxu0 %v1896
        %1898 = vmatprep.subr.mxu0 0.0
        %v1899 = vand.u32 %v353, 4294901760
        %1900 = vmatpush1.msra.mxu0 %v1899
        %1901 = vmatprep.subr.mxu0 0.0
        %v1902 = vand.u32 %v354, 4294901760
        %1903 = vmatpush1.msra.mxu0 %v1902
        %1904 = vmatprep.subr.mxu0 0.0
        %v1905 = vand.u32 %v355, 4294901760
        %1906 = vmatpush1.msra.mxu0 %v1905
        %1907 = vmatprep.subr.mxu0 0.0
        %v1908 = vand.u32 %v356, 4294901760
        %1909 = vmatpush1.msra.mxu0 %v1908
        %1910 = vmatprep.subr.mxu0 0.0
        %v1911 = vand.u32 %v357, 4294901760
        %1912 = vmatpush1.msra.mxu0 %v1911
        %1913 = vmatprep.subr.mxu0 0.0
        %v1914 = vand.u32 %v358, 4294901760
        %1915 = vmatpush1.msra.mxu0 %v1914
        %1916 = vmatprep.subr.mxu0 0.0
        %v1917 = vand.u32 %v359, 4294901760
        %1918 = vmatpush1.msra.mxu0 %v1917
        %1919 = vmatprep.subr.mxu0 0.0
        %v1920 = vand.u32 %v360, 4294901760
        %1921 = vmatpush1.msra.mxu0 %v1920
        %1922 = vmatprep.subr.mxu0 0.0
        %v1923 = vand.u32 %v361, 4294901760
        %1924 = vmatpush1.msra.mxu0 %v1923
        %1925 = vmatprep.subr.mxu0 0.0
        %v1926 = vand.u32 %v362, 4294901760
        %1927 = vmatpush1.msra.mxu0 %v1926
        %1928 = vmatprep.subr.mxu0 0.0
        %v1929 = vand.u32 %v363, 4294901760
        %1930 = vmatpush1.msra.mxu0 %v1929
        %1931 = vmatprep.subr.mxu0 0.0
        %v1932 = vand.u32 %v364, 4294901760
        %1933 = vmatpush1.msra.mxu0 %v1932
        %1934 = vmatprep.subr.mxu0 0.0
        %v1935 = vand.u32 %v365, 4294901760
        %1936 = vmatpush1.msra.mxu0 %v1935
        %v1937 = vand.u32 %v271, 4294901760
        %v1938 = vsub.f32 %v271, %v1937
        %v1939 = vand.u32 %v1938, 4294901760
        %1940 = vmatprep.mubr.f32.mxu0 %v1939
        %v1941 = vand.u32 %v270, 4294901760
        %v1942 = vsub.f32 %v270, %v1941
        %v1943 = vand.u32 %v1942, 4294901760
        %1944 = vmatmul.mubr.f32.gmra.mrb[0].mxu0 %v1943
        %v1945 = vpop.f32.mrb[0].mxu0
        %v1946 = vadd.f32 %v1559, %v1945
        %v1947 = vpop.f32.mrb[0].mxu0
        %v1948 = vand.u32 %v273, 4294901760
        %v1949 = vsub.f32 %v273, %v1948
        %v1950 = vand.u32 %v1949, 4294901760
        %1951 = vmatprep.mubr.f32.mxu0 %v1950
        %v1952 = vand.u32 %v272, 4294901760
        %v1953 = vsub.f32 %v272, %v1952
        %v1954 = vand.u32 %v1953, 4294901760
        %1955 = vmatmul.mubr.f32.gmra.mrb[0].mxu0 %v1954
        %v1956 = vpop.f32.mrb[0].mxu0
        %v1957 = vadd.f32 %v1568, %v1956
        %v1958 = vpop.f32.mrb[0].mxu0
        %v1959 = vand.u32 %v275, 4294901760
        %v1960 = vsub.f32 %v275, %v1959
        %v1961 = vand.u32 %v1960, 4294901760
        %1962 = vmatprep.mubr.f32.mxu0 %v1961
        %v1963 = vand.u32 %v274, 4294901760
        %v1964 = vsub.f32 %v274, %v1963
        %v1965 = vand.u32 %v1964, 4294901760
        %1966 = vmatmul.mubr.f32.gmra.mrb[0].mxu0 %v1965
        %v1967 = vpop.f32.mrb[0].mxu0
        %v1968 = vadd.f32 %v1577, %v1967
        %v1969 = vpop.f32.mrb[0].mxu0
        %v1970 = vand.u32 %v277, 4294901760
        %v1971 = vsub.f32 %v277, %v1970
        %v1972 = vand.u32 %v1971, 4294901760
        %1973 = vmatprep.mubr.f32.mxu0 %v1972
        %v1974 = vand.u32 %v276, 4294901760
        %v1975 = vsub.f32 %v276, %v1974
        %v1976 = vand.u32 %v1975, 4294901760
        %1977 = vmatmul.mubr.f32.gmra.mrb[0].mxu0 %v1976
        %v1978 = vpop.f32.mrb[0].mxu0
        %v1979 = vadd.f32 %v1586, %v1978
        %v1980 = vpop.f32.mrb[0].mxu0
        %v1981 = vand.u32 %v279, 4294901760
        %v1982 = vsub.f32 %v279, %v1981
        %v1983 = vand.u32 %v1982, 4294901760
        %1984 = vmatprep.mubr.f32.mxu0 %v1983
        %v1985 = vand.u32 %v278, 4294901760
        %v1986 = vsub.f32 %v278, %v1985
        %v1987 = vand.u32 %v1986, 4294901760
        %1988 = vmatmul.mubr.f32.gmra.mrb[0].mxu0 %v1987
        %v1989 = vpop.f32.mrb[0].mxu0
        %v1990 = vadd.f32 %v1595, %v1989
        %v1991 = vpop.f32.mrb[0].mxu0
        %v1992 = vand.u32 %v281, 4294901760
        %v1993 = vsub.f32 %v281, %v1992
        %v1994 = vand.u32 %v1993, 4294901760
        %1995 = vmatprep.mubr.f32.mxu0 %v1994
        %v1996 = vand.u32 %v280, 4294901760
        %v1997 = vsub.f32 %v280, %v1996
        %v1998 = vand.u32 %v1997, 4294901760
        %1999 = vmatmul.mubr.f32.gmra.mrb[0].mxu0 %v1998
        %v2000 = vpop.f32.mrb[0].mxu0
        %v2001 = vadd.f32 %v1604, %v2000
        %v2002 = vpop.f32.mrb[0].mxu0
        %v2003 = vand.u32 %v283, 4294901760
        %v2004 = vsub.f32 %v283, %v2003
        %v2005 = vand.u32 %v2004, 4294901760
        %2006 = vmatprep.mubr.f32.mxu0 %v2005
        %v2007 = vand.u32 %v282, 4294901760
        %v2008 = vsub.f32 %v282, %v2007
        %v2009 = vand.u32 %v2008, 4294901760
        %2010 = vmatmul.mubr.f32.gmra.mrb[0].mxu0 %v2009
        %v2011 = vpop.f32.mrb[0].mxu0
        %v2012 = vadd.f32 %v1613, %v2011
        %v2013 = vpop.f32.mrb[0].mxu0
        %v2014 = vand.u32 %v285, 4294901760
        %v2015 = vsub.f32 %v285, %v2014
        %v2016 = vand.u32 %v2015, 4294901760
        %2017 = vmatprep.mubr.f32.mxu0 %v2016
        %v2018 = vand.u32 %v284, 4294901760
        %v2019 = vsub.f32 %v284, %v2018
        %v2020 = vand.u32 %v2019, 4294901760
        %2021 = vmatmul.mubr.f32.gmra.mrb[0].mxu0 %v2020
        %v2022 = vpop.f32.mrb[0].mxu0
        %v2023 = vadd.f32 %v1622, %v2022
        %v2024 = vpop.f32.mrb[0].mxu0
        %v2025 = vand.u32 %v287, 4294901760
        %v2026 = vsub.f32 %v287, %v2025
        %v2027 = vand.u32 %v2026, 4294901760
        %2028 = vmatprep.mubr.f32.mxu0 %v2027
        %v2029 = vand.u32 %v286, 4294901760
        %v2030 = vsub.f32 %v286, %v2029
        %v2031 = vand.u32 %v2030, 4294901760
        %2032 = vmatmul.mubr.f32.gmra.mrb[0].mxu0 %v2031
        %v2033 = vpop.f32.mrb[0].mxu0
        %v2034 = vadd.f32 %v1631, %v2033
        %v2035 = vpop.f32.mrb[0].mxu0
        %v2036 = vand.u32 %v289, 4294901760
        %v2037 = vsub.f32 %v289, %v2036
        %v2038 = vand.u32 %v2037, 4294901760
        %2039 = vmatprep.mubr.f32.mxu0 %v2038
        %v2040 = vand.u32 %v288, 4294901760
        %v2041 = vsub.f32 %v288, %v2040
        %v2042 = vand.u32 %v2041, 4294901760
        %2043 = vmatmul.mubr.f32.gmra.mrb[0].mxu0 %v2042
        %v2044 = vpop.f32.mrb[0].mxu0
        %v2045 = vadd.f32 %v1640, %v2044
        %v2046 = vpop.f32.mrb[0].mxu0
        %v2047 = vand.u32 %v291, 4294901760
        %v2048 = vsub.f32 %v291, %v2047
        %v2049 = vand.u32 %v2048, 4294901760
        %2050 = vmatprep.mubr.f32.mxu0 %v2049
        %v2051 = vand.u32 %v290, 4294901760
        %v2052 = vsub.f32 %v290, %v2051
        %v2053 = vand.u32 %v2052, 4294901760
        %2054 = vmatmul.mubr.f32.gmra.mrb[0].mxu0 %v2053
        %v2055 = vpop.f32.mrb[0].mxu0
        %v2056 = vadd.f32 %v1649, %v2055
        %v2057 = vpop.f32.mrb[0].mxu0
        %v2058 = vand.u32 %v293, 4294901760
        %v2059 = vsub.f32 %v293, %v2058
        %v2060 = vand.u32 %v2059, 4294901760
        %2061 = vmatprep.mubr.f32.mxu0 %v2060
        %v2062 = vand.u32 %v292, 4294901760
        %v2063 = vsub.f32 %v292, %v2062
        %v2064 = vand.u32 %v2063, 4294901760
        %2065 = vmatmul.mubr.f32.gmra.mrb[0].mxu0 %v2064
        %v2066 = vpop.f32.mrb[0].mxu0
        %v2067 = vadd.f32 %v1658, %v2066
        %v2068 = vpop.f32.mrb[0].mxu0
        %v2069 = vand.u32 %v295, 4294901760
        %v2070 = vsub.f32 %v295, %v2069
        %v2071 = vand.u32 %v2070, 4294901760
        %2072 = vmatprep.mubr.f32.mxu0 %v2071
        %v2073 = vand.u32 %v294, 4294901760
        %v2074 = vsub.f32 %v294, %v2073
        %v2075 = vand.u32 %v2074, 4294901760
        %2076 = vmatmul.mubr.f32.gmra.mrb[0].mxu0 %v2075
        %v2077 = vpop.f32.mrb[0].mxu0
        %v2078 = vadd.f32 %v1667, %v2077
        %v2079 = vpop.f32.mrb[0].mxu0
        %v2080 = vand.u32 %v297, 4294901760
        %v2081 = vsub.f32 %v297, %v2080
        %v2082 = vand.u32 %v2081, 4294901760
        %2083 = vmatprep.mubr.f32.mxu0 %v2082
        %v2084 = vand.u32 %v296, 4294901760
        %v2085 = vsub.f32 %v296, %v2084
        %v2086 = vand.u32 %v2085, 4294901760
        %2087 = vmatmul.mubr.f32.gmra.mrb[0].mxu0 %v2086
        %v2088 = vpop.f32.mrb[0].mxu0
        %v2089 = vadd.f32 %v1676, %v2088
        %v2090 = vpop.f32.mrb[0].mxu0
        %v2091 = vand.u32 %v299, 4294901760
        %v2092 = vsub.f32 %v299, %v2091
        %v2093 = vand.u32 %v2092, 4294901760
        %2094 = vmatprep.mubr.f32.mxu0 %v2093
        %v2095 = vand.u32 %v298, 4294901760
        %v2096 = vsub.f32 %v298, %v2095
        %v2097 = vand.u32 %v2096, 4294901760
        %2098 = vmatmul.mubr.f32.gmra.mrb[0].mxu0 %v2097
        %v2099 = vpop.f32.mrb[0].mxu0
        %v2100 = vadd.f32 %v1685, %v2099
        %v2101 = vpop.f32.mrb[0].mxu0
        %v2102 = vand.u32 %v301, 4294901760
        %v2103 = vsub.f32 %v301, %v2102
        %v2104 = vand.u32 %v2103, 4294901760
        %2105 = vmatprep.mubr.f32.mxu0 %v2104
        %v2106 = vand.u32 %v300, 4294901760
        %v2107 = vsub.f32 %v300, %v2106
        %v2108 = vand.u32 %v2107, 4294901760
        %2109 = vmatmul.mubr.f32.gmra.mrb[0].mxu0 %v2108
        %v2110 = vpop.f32.mrb[0].mxu0
        %v2111 = vadd.f32 %v1694, %v2110
        %v2112 = vpop.f32.mrb[0].mxu0
        %v2113 = vand.u32 %v303, 4294901760
        %v2114 = vsub.f32 %v303, %v2113
        %v2115 = vand.u32 %v2114, 4294901760
        %2116 = vmatprep.mubr.f32.mxu0 %v2115
        %v2117 = vand.u32 %v302, 4294901760
        %v2118 = vsub.f32 %v302, %v2117
        %v2119 = vand.u32 %v2118, 4294901760
        %2120 = vmatmul.mubr.f32.gmra.mrb[0].mxu0 %v2119
        %v2121 = vpop.f32.mrb[0].mxu0
        %v2122 = vadd.f32 %v1703, %v2121
        %v2123 = vpop.f32.mrb[0].mxu0
        %v2124 = vand.u32 %v305, 4294901760
        %v2125 = vsub.f32 %v305, %v2124
        %v2126 = vand.u32 %v2125, 4294901760
        %2127 = vmatprep.mubr.f32.mxu0 %v2126
        %v2128 = vand.u32 %v304, 4294901760
        %v2129 = vsub.f32 %v304, %v2128
        %v2130 = vand.u32 %v2129, 4294901760
        %2131 = vmatmul.mubr.f32.gmra.mrb[0].mxu0 %v2130
        %v2132 = vpop.f32.mrb[0].mxu0
        %v2133 = vadd.f32 %v1712, %v2132
        %v2134 = vpop.f32.mrb[0].mxu0
        %v2135 = vand.u32 %v307, 4294901760
        %v2136 = vsub.f32 %v307, %v2135
        %v2137 = vand.u32 %v2136, 4294901760
        %2138 = vmatprep.mubr.f32.mxu0 %v2137
        %v2139 = vand.u32 %v306, 4294901760
        %v2140 = vsub.f32 %v306, %v2139
        %v2141 = vand.u32 %v2140, 4294901760
        %2142 = vmatmul.mubr.f32.gmra.mrb[0].mxu0 %v2141
        %v2143 = vpop.f32.mrb[0].mxu0
        %v2144 = vadd.f32 %v1721, %v2143
        %v2145 = vpop.f32.mrb[0].mxu0
        %v2146 = vand.u32 %v309, 4294901760
        %v2147 = vsub.f32 %v309, %v2146
        %v2148 = vand.u32 %v2147, 4294901760
        %2149 = vmatprep.mubr.f32.mxu0 %v2148
        %v2150 = vand.u32 %v308, 4294901760
        %v2151 = vsub.f32 %v308, %v2150
        %v2152 = vand.u32 %v2151, 4294901760
        %2153 = vmatmul.mubr.f32.gmra.mrb[0].mxu0 %v2152
        %v2154 = vpop.f32.mrb[0].mxu0
        %v2155 = vadd.f32 %v1730, %v2154
        %v2156 = vpop.f32.mrb[0].mxu0
        %v2157 = vand.u32 %v311, 4294901760
        %v2158 = vsub.f32 %v311, %v2157
        %v2159 = vand.u32 %v2158, 4294901760
        %2160 = vmatprep.mubr.f32.mxu0 %v2159
        %v2161 = vand.u32 %v310, 4294901760
        %v2162 = vsub.f32 %v310, %v2161
        %v2163 = vand.u32 %v2162, 4294901760
        %2164 = vmatmul.mubr.f32.gmra.mrb[0].mxu0 %v2163
        %v2165 = vpop.f32.mrb[0].mxu0
        %v2166 = vadd.f32 %v1739, %v2165
        %v2167 = vpop.f32.mrb[0].mxu0
        %v2168 = vand.u32 %v313, 4294901760
        %v2169 = vsub.f32 %v313, %v2168
        %v2170 = vand.u32 %v2169, 4294901760
        %2171 = vmatprep.mubr.f32.mxu0 %v2170
        %v2172 = vand.u32 %v312, 4294901760
        %v2173 = vsub.f32 %v312, %v2172
        %v2174 = vand.u32 %v2173, 4294901760
        %2175 = vmatmul.mubr.f32.gmra.mrb[0].mxu0 %v2174
        %v2176 = vpop.f32.mrb[0].mxu0
        %v2177 = vadd.f32 %v1748, %v2176
        %v2178 = vpop.f32.mrb[0].mxu0
        %v2179 = vand.u32 %v315, 4294901760
        %v2180 = vsub.f32 %v315, %v2179
        %v2181 = vand.u32 %v2180, 4294901760
        %2182 = vmatprep.mubr.f32.mxu0 %v2181
        %v2183 = vand.u32 %v314, 4294901760
        %v2184 = vsub.f32 %v314, %v2183
        %v2185 = vand.u32 %v2184, 4294901760
        %2186 = vmatmul.mubr.f32.gmra.mrb[0].mxu0 %v2185
        %v2187 = vpop.f32.mrb[0].mxu0
        %v2188 = vadd.f32 %v1757, %v2187
        %v2189 = vpop.f32.mrb[0].mxu0
        %v2190 = vand.u32 %v317, 4294901760
        %v2191 = vsub.f32 %v317, %v2190
        %v2192 = vand.u32 %v2191, 4294901760
        %2193 = vmatprep.mubr.f32.mxu0 %v2192
        %v2194 = vand.u32 %v316, 4294901760
        %v2195 = vsub.f32 %v316, %v2194
        %v2196 = vand.u32 %v2195, 4294901760
        %2197 = vmatmul.mubr.f32.gmra.mrb[0].mxu0 %v2196
        %v2198 = vpop.f32.mrb[0].mxu0
        %v2199 = vadd.f32 %v1766, %v2198
        %v2200 = vpop.f32.mrb[0].mxu0
        %v2201 = vand.u32 %v319, 4294901760
        %v2202 = vsub.f32 %v319, %v2201
        %v2203 = vand.u32 %v2202, 4294901760
        %2204 = vmatprep.mubr.f32.mxu0 %v2203
        %v2205 = vand.u32 %v318, 4294901760
        %v2206 = vsub.f32 %v318, %v2205
        %v2207 = vand.u32 %v2206, 4294901760
        %2208 = vmatmul.mubr.f32.gmra.mrb[0].mxu0 %v2207
        %v2209 = vpop.f32.mrb[0].mxu0
        %v2210 = vadd.f32 %v1775, %v2209
        %v2211 = vpop.f32.mrb[0].mxu0
        %v2212 = vand.u32 %v321, 4294901760
        %v2213 = vsub.f32 %v321, %v2212
        %v2214 = vand.u32 %v2213, 4294901760
        %2215 = vmatprep.mubr.f32.mxu0 %v2214
        %v2216 = vand.u32 %v320, 4294901760
        %v2217 = vsub.f32 %v320, %v2216
        %v2218 = vand.u32 %v2217, 4294901760
        %2219 = vmatmul.mubr.f32.gmra.mrb[0].mxu0 %v2218
        %v2220 = vpop.f32.mrb[0].mxu0
        %v2221 = vadd.f32 %v1784, %v2220
        %v2222 = vpop.f32.mrb[0].mxu0
        %v2223 = vand.u32 %v323, 4294901760
        %v2224 = vsub.f32 %v323, %v2223
        %v2225 = vand.u32 %v2224, 4294901760
        %2226 = vmatprep.mubr.f32.mxu0 %v2225
        %v2227 = vand.u32 %v322, 4294901760
        %v2228 = vsub.f32 %v322, %v2227
        %v2229 = vand.u32 %v2228, 4294901760
        %2230 = vmatmul.mubr.f32.gmra.mrb[0].mxu0 %v2229
        %v2231 = vpop.f32.mrb[0].mxu0
        %v2232 = vadd.f32 %v1793, %v2231
        %v2233 = vpop.f32.mrb[0].mxu0
        %v2234 = vand.u32 %v325, 4294901760
        %v2235 = vsub.f32 %v325, %v2234
        %v2236 = vand.u32 %v2235, 4294901760
        %2237 = vmatprep.mubr.f32.mxu0 %v2236
        %v2238 = vand.u32 %v324, 4294901760
        %v2239 = vsub.f32 %v324, %v2238
        %v2240 = vand.u32 %v2239, 4294901760
        %2241 = vmatmul.mubr.f32.gmra.mrb[0].mxu0 %v2240
        %v2242 = vpop.f32.mrb[0].mxu0
        %v2243 = vadd.f32 %v1802, %v2242
        %v2244 = vpop.f32.mrb[0].mxu0
        %v2245 = vand.u32 %v327, 4294901760
        %v2246 = vsub.f32 %v327, %v2245
        %v2247 = vand.u32 %v2246, 4294901760
        %2248 = vmatprep.mubr.f32.mxu0 %v2247
        %v2249 = vand.u32 %v326, 4294901760
        %v2250 = vsub.f32 %v326, %v2249
        %v2251 = vand.u32 %v2250, 4294901760
        %2252 = vmatmul.mubr.f32.gmra.mrb[0].mxu0 %v2251
        %v2253 = vpop.f32.mrb[0].mxu0
        %v2254 = vadd.f32 %v1811, %v2253
        %v2255 = vpop.f32.mrb[0].mxu0
        %v2256 = vand.u32 %v329, 4294901760
        %v2257 = vsub.f32 %v329, %v2256
        %v2258 = vand.u32 %v2257, 4294901760
        %2259 = vmatprep.mubr.f32.mxu0 %v2258
        %v2260 = vand.u32 %v328, 4294901760
        %v2261 = vsub.f32 %v328, %v2260
        %v2262 = vand.u32 %v2261, 4294901760
        %2263 = vmatmul.mubr.f32.gmra.mrb[0].mxu0 %v2262
        %v2264 = vpop.f32.mrb[0].mxu0
        %v2265 = vadd.f32 %v1820, %v2264
        %v2266 = vpop.f32.mrb[0].mxu0
        %v2267 = vand.u32 %v331, 4294901760
        %v2268 = vsub.f32 %v331, %v2267
        %v2269 = vand.u32 %v2268, 4294901760
        %2270 = vmatprep.mubr.f32.mxu0 %v2269
        %v2271 = vand.u32 %v330, 4294901760
        %v2272 = vsub.f32 %v330, %v2271
        %v2273 = vand.u32 %v2272, 4294901760
        %2274 = vmatmul.mubr.f32.gmra.mrb[0].mxu0 %v2273
        %v2275 = vpop.f32.mrb[0].mxu0
        %v2276 = vadd.f32 %v1829, %v2275
        %v2277 = vpop.f32.mrb[0].mxu0
        %v2278 = vand.u32 %v333, 4294901760
        %v2279 = vsub.f32 %v333, %v2278
        %v2280 = vand.u32 %v2279, 4294901760
        %2281 = vmatprep.mubr.f32.mxu0 %v2280
        %v2282 = vand.u32 %v332, 4294901760
        %v2283 = vsub.f32 %v332, %v2282
        %v2284 = vand.u32 %v2283, 4294901760
        %2285 = vmatmul.mubr.f32.gmra.mrb[0].mxu0 %v2284
        %v2286 = vpop.f32.mrb[0].mxu0
        %v2287 = vadd.f32 %v1838, %v2286
        %v2288 = vpop.f32.mrb[0].mxu0
        %2289 = vdwg.mxu0
        %2290 = vmatprep.subr.mxu0 0.0
        %v2291 = vand.u32 %v334, 4294901760
        %v2292 = vsub.f32 %v334, %v2291
        %v2293 = vand.u32 %v2292, 4294901760
        %2294 = vmatpush1.msra.mxu0 %v2293
        %2295 = vmatprep.subr.mxu0 0.0
        %v2296 = vand.u32 %v335, 4294901760
        %v2297 = vsub.f32 %v335, %v2296
        %v2298 = vand.u32 %v2297, 4294901760
        %2299 = vmatpush1.msra.mxu0 %v2298
        %2300 = vmatprep.subr.mxu0 0.0
        %v2301 = vand.u32 %v336, 4294901760
        %v2302 = vsub.f32 %v336, %v2301
        %v2303 = vand.u32 %v2302, 4294901760
        %2304 = vmatpush1.msra.mxu0 %v2303
        %2305 = vmatprep.subr.mxu0 0.0
        %v2306 = vand.u32 %v337, 4294901760
        %v2307 = vsub.f32 %v337, %v2306
        %v2308 = vand.u32 %v2307, 4294901760
        %2309 = vmatpush1.msra.mxu0 %v2308
        %2310 = vmatprep.subr.mxu0 0.0
        %v2311 = vand.u32 %v338, 4294901760
        %v2312 = vsub.f32 %v338, %v2311
        %v2313 = vand.u32 %v2312, 4294901760
        %2314 = vmatpush1.msra.mxu0 %v2313
        %2315 = vmatprep.subr.mxu0 0.0
        %v2316 = vand.u32 %v339, 4294901760
        %v2317 = vsub.f32 %v339, %v2316
        %v2318 = vand.u32 %v2317, 4294901760
        %2319 = vmatpush1.msra.mxu0 %v2318
        %2320 = vmatprep.subr.mxu0 0.0
        %v2321 = vand.u32 %v340, 4294901760
        %v2322 = vsub.f32 %v340, %v2321
        %v2323 = vand.u32 %v2322, 4294901760
        %2324 = vmatpush1.msra.mxu0 %v2323
        %2325 = vmatprep.subr.mxu0 0.0
        %v2326 = vand.u32 %v341, 4294901760
        %v2327 = vsub.f32 %v341, %v2326
        %v2328 = vand.u32 %v2327, 4294901760
        %2329 = vmatpush1.msra.mxu0 %v2328
        %2330 = vmatprep.subr.mxu0 0.0
        %v2331 = vand.u32 %v342, 4294901760
        %v2332 = vsub.f32 %v342, %v2331
        %v2333 = vand.u32 %v2332, 4294901760
        %2334 = vmatpush1.msra.mxu0 %v2333
        %2335 = vmatprep.subr.mxu0 0.0
        %v2336 = vand.u32 %v343, 4294901760
        %v2337 = vsub.f32 %v343, %v2336
        %v2338 = vand.u32 %v2337, 4294901760
        %2339 = vmatpush1.msra.mxu0 %v2338
        %2340 = vmatprep.subr.mxu0 0.0
        %v2341 = vand.u32 %v344, 4294901760
        %v2342 = vsub.f32 %v344, %v2341
        %v2343 = vand.u32 %v2342, 4294901760
        %2344 = vmatpush1.msra.mxu0 %v2343
        %2345 = vmatprep.subr.mxu0 0.0
        %v2346 = vand.u32 %v345, 4294901760
        %v2347 = vsub.f32 %v345, %v2346
        %v2348 = vand.u32 %v2347, 4294901760
        %2349 = vmatpush1.msra.mxu0 %v2348
        %2350 = vmatprep.subr.mxu0 0.0
        %v2351 = vand.u32 %v346, 4294901760
        %v2352 = vsub.f32 %v346, %v2351
        %v2353 = vand.u32 %v2352, 4294901760
        %2354 = vmatpush1.msra.mxu0 %v2353
        %2355 = vmatprep.subr.mxu0 0.0
        %v2356 = vand.u32 %v347, 4294901760
        %v2357 = vsub.f32 %v347, %v2356
        %v2358 = vand.u32 %v2357, 4294901760
        %2359 = vmatpush1.msra.mxu0 %v2358
        %2360 = vmatprep.subr.mxu0 0.0
        %v2361 = vand.u32 %v348, 4294901760
        %v2362 = vsub.f32 %v348, %v2361
        %v2363 = vand.u32 %v2362, 4294901760
        %2364 = vmatpush1.msra.mxu0 %v2363
        %2365 = vmatprep.subr.mxu0 0.0
        %v2366 = vand.u32 %v349, 4294901760
        %v2367 = vsub.f32 %v349, %v2366
        %v2368 = vand.u32 %v2367, 4294901760
        %2369 = vmatpush1.msra.mxu0 %v2368
        %2370 = vmatprep.subr.mxu0 0.0
        %v2371 = vand.u32 %v350, 4294901760
        %v2372 = vsub.f32 %v350, %v2371
        %v2373 = vand.u32 %v2372, 4294901760
        %2374 = vmatpush1.msra.mxu0 %v2373
        %2375 = vmatprep.subr.mxu0 0.0
        %v2376 = vand.u32 %v351, 4294901760
        %v2377 = vsub.f32 %v351, %v2376
        %v2378 = vand.u32 %v2377, 4294901760
        %2379 = vmatpush1.msra.mxu0 %v2378
        %2380 = vmatprep.subr.mxu0 0.0
        %v2381 = vand.u32 %v352, 4294901760
        %v2382 = vsub.f32 %v352, %v2381
        %v2383 = vand.u32 %v2382, 4294901760
        %2384 = vmatpush1.msra.mxu0 %v2383
        %2385 = vmatprep.subr.mxu0 0.0
        %v2386 = vand.u32 %v353, 4294901760
        %v2387 = vsub.f32 %v353, %v2386
        %v2388 = vand.u32 %v2387, 4294901760
        %2389 = vmatpush1.msra.mxu0 %v2388
        %2390 = vmatprep.subr.mxu0 0.0
        %v2391 = vand.u32 %v354, 4294901760
        %v2392 = vsub.f32 %v354, %v2391
        %v2393 = vand.u32 %v2392, 4294901760
        %2394 = vmatpush1.msra.mxu0 %v2393
        %2395 = vmatprep.subr.mxu0 0.0
        %v2396 = vand.u32 %v355, 4294901760
        %v2397 = vsub.f32 %v355, %v2396
        %v2398 = vand.u32 %v2397, 4294901760
        %2399 = vmatpush1.msra.mxu0 %v2398
        %2400 = vmatprep.subr.mxu0 0.0
        %v2401 = vand.u32 %v356, 4294901760
        %v2402 = vsub.f32 %v356, %v2401
        %v2403 = vand.u32 %v2402, 4294901760
        %2404 = vmatpush1.msra.mxu0 %v2403
        %2405 = vmatprep.subr.mxu0 0.0
        %v2406 = vand.u32 %v357, 4294901760
        %v2407 = vsub.f32 %v357, %v2406
        %v2408 = vand.u32 %v2407, 4294901760
        %2409 = vmatpush1.msra.mxu0 %v2408
        %2410 = vmatprep.subr.mxu0 0.0
        %v2411 = vand.u32 %v358, 4294901760
        %v2412 = vsub.f32 %v358, %v2411
        %v2413 = vand.u32 %v2412, 4294901760
        %2414 = vmatpush1.msra.mxu0 %v2413
        %2415 = vmatprep.subr.mxu0 0.0
        %v2416 = vand.u32 %v359, 4294901760
        %v2417 = vsub.f32 %v359, %v2416
        %v2418 = vand.u32 %v2417, 4294901760
        %2419 = vmatpush1.msra.mxu0 %v2418
        %2420 = vmatprep.subr.mxu0 0.0
        %v2421 = vand.u32 %v360, 4294901760
        %v2422 = vsub.f32 %v360, %v2421
        %v2423 = vand.u32 %v2422, 4294901760
        %2424 = vmatpush1.msra.mxu0 %v2423
        %2425 = vmatprep.subr.mxu0 0.0
        %v2426 = vand.u32 %v361, 4294901760
        %v2427 = vsub.f32 %v361, %v2426
        %v2428 = vand.u32 %v2427, 4294901760
        %2429 = vmatpush1.msra.mxu0 %v2428
        %2430 = vmatprep.subr.mxu0 0.0
        %v2431 = vand.u32 %v362, 4294901760
        %v2432 = vsub.f32 %v362, %v2431
        %v2433 = vand.u32 %v2432, 4294901760
        %2434 = vmatpush1.msra.mxu0 %v2433
        %2435 = vmatprep.subr.mxu0 0.0
        %v2436 = vand.u32 %v363, 4294901760
        %v2437 = vsub.f32 %v363, %v2436
        %v2438 = vand.u32 %v2437, 4294901760
        %2439 = vmatpush1.msra.mxu0 %v2438
        %2440 = vmatprep.subr.mxu0 0.0
        %v2441 = vand.u32 %v364, 4294901760
        %v2442 = vsub.f32 %v364, %v2441
        %v2443 = vand.u32 %v2442, 4294901760
        %2444 = vmatpush1.msra.mxu0 %v2443
        %2445 = vmatprep.subr.mxu0 0.0
        %v2446 = vand.u32 %v365, 4294901760
        %v2447 = vsub.f32 %v365, %v2446
        %v2448 = vand.u32 %v2447, 4294901760
        %2449 = vmatpush1.msra.mxu0 %v2448
        %v2450 = vand.u32 %v271, 4294901760
        %2451 = vmatprep.mubr.f32.mxu0 %v2450
        %v2452 = vand.u32 %v270, 4294901760
        %2453 = vmatmul.mubr.f32.gmra.mrb[0].mxu0 %v2452
        %v2454 = vpop.f32.mrb[0].mxu0
        %v2455 = vadd.f32 %v1946, %v2454
        %v2456 = vpop.f32.mrb[0].mxu0
        %v2457 = vand.u32 %v273, 4294901760
        %2458 = vmatprep.mubr.f32.mxu0 %v2457
        %v2459 = vand.u32 %v272, 4294901760
        %2460 = vmatmul.mubr.f32.gmra.mrb[0].mxu0 %v2459
        %v2461 = vpop.f32.mrb[0].mxu0
        %v2462 = vadd.f32 %v1957, %v2461
        %v2463 = vpop.f32.mrb[0].mxu0
        %v2464 = vand.u32 %v275, 4294901760
        %2465 = vmatprep.mubr.f32.mxu0 %v2464
        %v2466 = vand.u32 %v274, 4294901760
        %2467 = vmatmul.mubr.f32.gmra.mrb[0].mxu0 %v2466
        %v2468 = vpop.f32.mrb[0].mxu0
        %v2469 = vadd.f32 %v1968, %v2468
        %v2470 = vpop.f32.mrb[0].mxu0
        %v2471 = vand.u32 %v277, 4294901760
        %2472 = vmatprep.mubr.f32.mxu0 %v2471
        %v2473 = vand.u32 %v276, 4294901760
        %2474 = vmatmul.mubr.f32.gmra.mrb[0].mxu0 %v2473
        %v2475 = vpop.f32.mrb[0].mxu0
        %v2476 = vadd.f32 %v1979, %v2475
        %v2477 = vpop.f32.mrb[0].mxu0
        %v2478 = vand.u32 %v279, 4294901760
        %2479 = vmatprep.mubr.f32.mxu0 %v2478
        %v2480 = vand.u32 %v278, 4294901760
        %2481 = vmatmul.mubr.f32.gmra.mrb[0].mxu0 %v2480
        %v2482 = vpop.f32.mrb[0].mxu0
        %v2483 = vadd.f32 %v1990, %v2482
        %v2484 = vpop.f32.mrb[0].mxu0
        %v2485 = vand.u32 %v281, 4294901760
        %2486 = vmatprep.mubr.f32.mxu0 %v2485
        %v2487 = vand.u32 %v280, 4294901760
        %2488 = vmatmul.mubr.f32.gmra.mrb[0].mxu0 %v2487
        %v2489 = vpop.f32.mrb[0].mxu0
        %v2490 = vadd.f32 %v2001, %v2489
        %v2491 = vpop.f32.mrb[0].mxu0
        %v2492 = vand.u32 %v283, 4294901760
        %2493 = vmatprep.mubr.f32.mxu0 %v2492
        %v2494 = vand.u32 %v282, 4294901760
        %2495 = vmatmul.mubr.f32.gmra.mrb[0].mxu0 %v2494
        %v2496 = vpop.f32.mrb[0].mxu0
        %v2497 = vadd.f32 %v2012, %v2496
        %v2498 = vpop.f32.mrb[0].mxu0
        %v2499 = vand.u32 %v285, 4294901760
        %2500 = vmatprep.mubr.f32.mxu0 %v2499
        %v2501 = vand.u32 %v284, 4294901760
        %2502 = vmatmul.mubr.f32.gmra.mrb[0].mxu0 %v2501
        %v2503 = vpop.f32.mrb[0].mxu0
        %v2504 = vadd.f32 %v2023, %v2503
        %v2505 = vpop.f32.mrb[0].mxu0
        %v2506 = vand.u32 %v287, 4294901760
        %2507 = vmatprep.mubr.f32.mxu0 %v2506
        %v2508 = vand.u32 %v286, 4294901760
        %2509 = vmatmul.mubr.f32.gmra.mrb[0].mxu0 %v2508
        %v2510 = vpop.f32.mrb[0].mxu0
        %v2511 = vadd.f32 %v2034, %v2510
        %v2512 = vpop.f32.mrb[0].mxu0
        %v2513 = vand.u32 %v289, 4294901760
        %2514 = vmatprep.mubr.f32.mxu0 %v2513
        %v2515 = vand.u32 %v288, 4294901760
        %2516 = vmatmul.mubr.f32.gmra.mrb[0].mxu0 %v2515
        %v2517 = vpop.f32.mrb[0].mxu0
        %v2518 = vadd.f32 %v2045, %v2517
        %v2519 = vpop.f32.mrb[0].mxu0
        %v2520 = vand.u32 %v291, 4294901760
        %2521 = vmatprep.mubr.f32.mxu0 %v2520
        %v2522 = vand.u32 %v290, 4294901760
        %2523 = vmatmul.mubr.f32.gmra.mrb[0].mxu0 %v2522
        %v2524 = vpop.f32.mrb[0].mxu0
        %v2525 = vadd.f32 %v2056, %v2524
        %v2526 = vpop.f32.mrb[0].mxu0
        %v2527 = vand.u32 %v293, 4294901760
        %2528 = vmatprep.mubr.f32.mxu0 %v2527
        %v2529 = vand.u32 %v292, 4294901760
        %2530 = vmatmul.mubr.f32.gmra.mrb[0].mxu0 %v2529
        %v2531 = vpop.f32.mrb[0].mxu0
        %v2532 = vadd.f32 %v2067, %v2531
        %v2533 = vpop.f32.mrb[0].mxu0
        %v2534 = vand.u32 %v295, 4294901760
        %2535 = vmatprep.mubr.f32.mxu0 %v2534
        %v2536 = vand.u32 %v294, 4294901760
        %2537 = vmatmul.mubr.f32.gmra.mrb[0].mxu0 %v2536
        %v2538 = vpop.f32.mrb[0].mxu0
        %v2539 = vadd.f32 %v2078, %v2538
        %v2540 = vpop.f32.mrb[0].mxu0
        %v2541 = vand.u32 %v297, 4294901760
        %2542 = vmatprep.mubr.f32.mxu0 %v2541
        %v2543 = vand.u32 %v296, 4294901760
        %2544 = vmatmul.mubr.f32.gmra.mrb[0].mxu0 %v2543
        %v2545 = vpop.f32.mrb[0].mxu0
        %v2546 = vadd.f32 %v2089, %v2545
        %v2547 = vpop.f32.mrb[0].mxu0
        %v2548 = vand.u32 %v299, 4294901760
        %2549 = vmatprep.mubr.f32.mxu0 %v2548
        %v2550 = vand.u32 %v298, 4294901760
        %2551 = vmatmul.mubr.f32.gmra.mrb[0].mxu0 %v2550
        %v2552 = vpop.f32.mrb[0].mxu0
        %v2553 = vadd.f32 %v2100, %v2552
        %v2554 = vpop.f32.mrb[0].mxu0
        %v2555 = vand.u32 %v301, 4294901760
        %2556 = vmatprep.mubr.f32.mxu0 %v2555
        %v2557 = vand.u32 %v300, 4294901760
        %2558 = vmatmul.mubr.f32.gmra.mrb[0].mxu0 %v2557
        %v2559 = vpop.f32.mrb[0].mxu0
        %v2560 = vadd.f32 %v2111, %v2559
        %v2561 = vpop.f32.mrb[0].mxu0
        %v2562 = vand.u32 %v303, 4294901760
        %2563 = vmatprep.mubr.f32.mxu0 %v2562
        %v2564 = vand.u32 %v302, 4294901760
        %2565 = vmatmul.mubr.f32.gmra.mrb[0].mxu0 %v2564
        %v2566 = vpop.f32.mrb[0].mxu0
        %v2567 = vadd.f32 %v2122, %v2566
        %v2568 = vpop.f32.mrb[0].mxu0
        %v2569 = vand.u32 %v305, 4294901760
        %2570 = vmatprep.mubr.f32.mxu0 %v2569
        %v2571 = vand.u32 %v304, 4294901760
        %2572 = vmatmul.mubr.f32.gmra.mrb[0].mxu0 %v2571
        %v2573 = vpop.f32.mrb[0].mxu0
        %v2574 = vadd.f32 %v2133, %v2573
        %v2575 = vpop.f32.mrb[0].mxu0
        %v2576 = vand.u32 %v307, 4294901760
        %2577 = vmatprep.mubr.f32.mxu0 %v2576
        %v2578 = vand.u32 %v306, 4294901760
        %2579 = vmatmul.mubr.f32.gmra.mrb[0].mxu0 %v2578
        %v2580 = vpop.f32.mrb[0].mxu0
        %v2581 = vadd.f32 %v2144, %v2580
        %v2582 = vpop.f32.mrb[0].mxu0
        %v2583 = vand.u32 %v309, 4294901760
        %2584 = vmatprep.mubr.f32.mxu0 %v2583
        %v2585 = vand.u32 %v308, 4294901760
        %2586 = vmatmul.mubr.f32.gmra.mrb[0].mxu0 %v2585
        %v2587 = vpop.f32.mrb[0].mxu0
        %v2588 = vadd.f32 %v2155, %v2587
        %v2589 = vpop.f32.mrb[0].mxu0
        %v2590 = vand.u32 %v311, 4294901760
        %2591 = vmatprep.mubr.f32.mxu0 %v2590
        %v2592 = vand.u32 %v310, 4294901760
        %2593 = vmatmul.mubr.f32.gmra.mrb[0].mxu0 %v2592
        %v2594 = vpop.f32.mrb[0].mxu0
        %v2595 = vadd.f32 %v2166, %v2594
        %v2596 = vpop.f32.mrb[0].mxu0
        %v2597 = vand.u32 %v313, 4294901760
        %2598 = vmatprep.mubr.f32.mxu0 %v2597
        %v2599 = vand.u32 %v312, 4294901760
        %2600 = vmatmul.mubr.f32.gmra.mrb[0].mxu0 %v2599
        %v2601 = vpop.f32.mrb[0].mxu0
        %v2602 = vadd.f32 %v2177, %v2601
        %v2603 = vpop.f32.mrb[0].mxu0
        %v2604 = vand.u32 %v315, 4294901760
        %2605 = vmatprep.mubr.f32.mxu0 %v2604
        %v2606 = vand.u32 %v314, 4294901760
        %2607 = vmatmul.mubr.f32.gmra.mrb[0].mxu0 %v2606
        %v2608 = vpop.f32.mrb[0].mxu0
        %v2609 = vadd.f32 %v2188, %v2608
        %v2610 = vpop.f32.mrb[0].mxu0
        %v2611 = vand.u32 %v317, 4294901760
        %2612 = vmatprep.mubr.f32.mxu0 %v2611
        %v2613 = vand.u32 %v316, 4294901760
        %2614 = vmatmul.mubr.f32.gmra.mrb[0].mxu0 %v2613
        %v2615 = vpop.f32.mrb[0].mxu0
        %v2616 = vadd.f32 %v2199, %v2615
        %v2617 = vpop.f32.mrb[0].mxu0
        %v2618 = vand.u32 %v319, 4294901760
        %2619 = vmatprep.mubr.f32.mxu0 %v2618
        %v2620 = vand.u32 %v318, 4294901760
        %2621 = vmatmul.mubr.f32.gmra.mrb[0].mxu0 %v2620
        %v2622 = vpop.f32.mrb[0].mxu0
        %v2623 = vadd.f32 %v2210, %v2622
        %v2624 = vpop.f32.mrb[0].mxu0
        %v2625 = vand.u32 %v321, 4294901760
        %2626 = vmatprep.mubr.f32.mxu0 %v2625
        %v2627 = vand.u32 %v320, 4294901760
        %2628 = vmatmul.mubr.f32.gmra.mrb[0].mxu0 %v2627
        %v2629 = vpop.f32.mrb[0].mxu0
        %v2630 = vadd.f32 %v2221, %v2629
        %v2631 = vpop.f32.mrb[0].mxu0
        %v2632 = vand.u32 %v323, 4294901760
        %2633 = vmatprep.mubr.f32.mxu0 %v2632
        %v2634 = vand.u32 %v322, 4294901760
        %2635 = vmatmul.mubr.f32.gmra.mrb[0].mxu0 %v2634
        %v2636 = vpop.f32.mrb[0].mxu0
        %v2637 = vadd.f32 %v2232, %v2636
        %v2638 = vpop.f32.mrb[0].mxu0
        %v2639 = vand.u32 %v325, 4294901760
        %2640 = vmatprep.mubr.f32.mxu0 %v2639
        %v2641 = vand.u32 %v324, 4294901760
        %2642 = vmatmul.mubr.f32.gmra.mrb[0].mxu0 %v2641
        %v2643 = vpop.f32.mrb[0].mxu0
        %v2644 = vadd.f32 %v2243, %v2643
        %v2645 = vpop.f32.mrb[0].mxu0
        %v2646 = vand.u32 %v327, 4294901760
        %2647 = vmatprep.mubr.f32.mxu0 %v2646
        %v2648 = vand.u32 %v326, 4294901760
        %2649 = vmatmul.mubr.f32.gmra.mrb[0].mxu0 %v2648
        %v2650 = vpop.f32.mrb[0].mxu0
        %v2651 = vadd.f32 %v2254, %v2650
        %v2652 = vpop.f32.mrb[0].mxu0
        %v2653 = vand.u32 %v329, 4294901760
        %2654 = vmatprep.mubr.f32.mxu0 %v2653
        %v2655 = vand.u32 %v328, 4294901760
        %2656 = vmatmul.mubr.f32.gmra.mrb[0].mxu0 %v2655
        %v2657 = vpop.f32.mrb[0].mxu0
        %v2658 = vadd.f32 %v2265, %v2657
        %v2659 = vpop.f32.mrb[0].mxu0
        %v2660 = vand.u32 %v331, 4294901760
        %2661 = vmatprep.mubr.f32.mxu0 %v2660
        %v2662 = vand.u32 %v330, 4294901760
        %2663 = vmatmul.mubr.f32.gmra.mrb[0].mxu0 %v2662
        %v2664 = vpop.f32.mrb[0].mxu0
        %v2665 = vadd.f32 %v2276, %v2664
        %v2666 = vpop.f32.mrb[0].mxu0
        %v2667 = vand.u32 %v333, 4294901760
        %2668 = vmatprep.mubr.f32.mxu0 %v2667
        %v2669 = vand.u32 %v332, 4294901760
        %2670 = vmatmul.mubr.f32.gmra.mrb[0].mxu0 %v2669
        %v2671 = vpop.f32.mrb[0].mxu0
        %v2672 = vadd.f32 %v2287, %v2671
        %v2673 = vpop.f32.mrb[0].mxu0
        %2674 = vdwg.mxu0
        %2675 = vmatprep.subr.mxu0 0.0
        %v2676 = vand.u32 %v334, 4294901760
        %2677 = vmatpush1.msra.mxu0 %v2676
        %2678 = vmatprep.subr.mxu0 0.0
        %v2679 = vand.u32 %v335, 4294901760
        %2680 = vmatpush1.msra.mxu0 %v2679
        %2681 = vmatprep.subr.mxu0 0.0
        %v2682 = vand.u32 %v336, 4294901760
        %2683 = vmatpush1.msra.mxu0 %v2682
        %2684 = vmatprep.subr.mxu0 0.0
        %v2685 = vand.u32 %v337, 4294901760
        %2686 = vmatpush1.msra.mxu0 %v2685
        %2687 = vmatprep.subr.mxu0 0.0
        %v2688 = vand.u32 %v338, 4294901760
        %2689 = vmatpush1.msra.mxu0 %v2688
        %2690 = vmatprep.subr.mxu0 0.0
        %v2691 = vand.u32 %v339, 4294901760
        %2692 = vmatpush1.msra.mxu0 %v2691
        %2693 = vmatprep.subr.mxu0 0.0
        %v2694 = vand.u32 %v340, 4294901760
        %2695 = vmatpush1.msra.mxu0 %v2694
        %2696 = vmatprep.subr.mxu0 0.0
        %v2697 = vand.u32 %v341, 4294901760
        %2698 = vmatpush1.msra.mxu0 %v2697
        %2699 = vmatprep.subr.mxu0 0.0
        %v2700 = vand.u32 %v342, 4294901760
        %2701 = vmatpush1.msra.mxu0 %v2700
        %2702 = vmatprep.subr.mxu0 0.0
        %v2703 = vand.u32 %v343, 4294901760
        %2704 = vmatpush1.msra.mxu0 %v2703
        %2705 = vmatprep.subr.mxu0 0.0
        %v2706 = vand.u32 %v344, 4294901760
        %2707 = vmatpush1.msra.mxu0 %v2706
        %2708 = vmatprep.subr.mxu0 0.0
        %v2709 = vand.u32 %v345, 4294901760
        %2710 = vmatpush1.msra.mxu0 %v2709
        %2711 = vmatprep.subr.mxu0 0.0
        %v2712 = vand.u32 %v346, 4294901760
        %2713 = vmatpush1.msra.mxu0 %v2712
        %2714 = vmatprep.subr.mxu0 0.0
        %v2715 = vand.u32 %v347, 4294901760
        %2716 = vmatpush1.msra.mxu0 %v2715
        %2717 = vmatprep.subr.mxu0 0.0
        %v2718 = vand.u32 %v348, 4294901760
        %2719 = vmatpush1.msra.mxu0 %v2718
        %2720 = vmatprep.subr.mxu0 0.0
        %v2721 = vand.u32 %v349, 4294901760
        %2722 = vmatpush1.msra.mxu0 %v2721
        %2723 = vmatprep.subr.mxu0 0.0
        %v2724 = vand.u32 %v350, 4294901760
        %2725 = vmatpush1.msra.mxu0 %v2724
        %2726 = vmatprep.subr.mxu0 0.0
        %v2727 = vand.u32 %v351, 4294901760
        %2728 = vmatpush1.msra.mxu0 %v2727
        %2729 = vmatprep.subr.mxu0 0.0
        %v2730 = vand.u32 %v352, 4294901760
        %2731 = vmatpush1.msra.mxu0 %v2730
        %2732 = vmatprep.subr.mxu0 0.0
        %v2733 = vand.u32 %v353, 4294901760
        %2734 = vmatpush1.msra.mxu0 %v2733
        %2735 = vmatprep.subr.mxu0 0.0
        %v2736 = vand.u32 %v354, 4294901760
        %2737 = vmatpush1.msra.mxu0 %v2736
        %2738 = vmatprep.subr.mxu0 0.0
        %v2739 = vand.u32 %v355, 4294901760
        %2740 = vmatpush1.msra.mxu0 %v2739
        %2741 = vmatprep.subr.mxu0 0.0
        %v2742 = vand.u32 %v356, 4294901760
        %2743 = vmatpush1.msra.mxu0 %v2742
        %2744 = vmatprep.subr.mxu0 0.0
        %v2745 = vand.u32 %v357, 4294901760
        %2746 = vmatpush1.msra.mxu0 %v2745
        %2747 = vmatprep.subr.mxu0 0.0
        %v2748 = vand.u32 %v358, 4294901760
        %2749 = vmatpush1.msra.mxu0 %v2748
        %2750 = vmatprep.subr.mxu0 0.0
        %v2751 = vand.u32 %v359, 4294901760
        %2752 = vmatpush1.msra.mxu0 %v2751
        %2753 = vmatprep.subr.mxu0 0.0
        %v2754 = vand.u32 %v360, 4294901760
        %2755 = vmatpush1.msra.mxu0 %v2754
        %2756 = vmatprep.subr.mxu0 0.0
        %v2757 = vand.u32 %v361, 4294901760
        %2758 = vmatpush1.msra.mxu0 %v2757
        %2759 = vmatprep.subr.mxu0 0.0
        %v2760 = vand.u32 %v362, 4294901760
        %2761 = vmatpush1.msra.mxu0 %v2760
        %2762 = vmatprep.subr.mxu0 0.0
        %v2763 = vand.u32 %v363, 4294901760
        %2764 = vmatpush1.msra.mxu0 %v2763
        %2765 = vmatprep.subr.mxu0 0.0
        %v2766 = vand.u32 %v364, 4294901760
        %2767 = vmatpush1.msra.mxu0 %v2766
        %2768 = vmatprep.subr.mxu0 0.0
        %v2769 = vand.u32 %v365, 4294901760
        %2770 = vmatpush1.msra.mxu0 %v2769
        %v2771 = vand.u32 %v271, 4294901760
        %2772 = vmatprep.mubr.f32.mxu0 %v2771
        %v2773 = vand.u32 %v270, 4294901760
        %2774 = vmatmul.mubr.f32.gmra.mrb[0].mxu0 %v2773
        %v2775 = vpop.f32.mrb[0].mxu0
        %v2776 = vadd.f32 %v2455, %v2775
        %v2777 = vpop.f32.mrb[0].mxu0
        %v2778 = vand.u32 %v273, 4294901760
        %2779 = vmatprep.mubr.f32.mxu0 %v2778
        %v2780 = vand.u32 %v272, 4294901760
        %2781 = vmatmul.mubr.f32.gmra.mrb[0].mxu0 %v2780
        %v2782 = vpop.f32.mrb[0].mxu0
        %v2783 = vadd.f32 %v2462, %v2782
        %v2784 = vpop.f32.mrb[0].mxu0
        %v2785 = vand.u32 %v275, 4294901760
        %2786 = vmatprep.mubr.f32.mxu0 %v2785
        %v2787 = vand.u32 %v274, 4294901760
        %2788 = vmatmul.mubr.f32.gmra.mrb[0].mxu0 %v2787
        %v2789 = vpop.f32.mrb[0].mxu0
        %v2790 = vadd.f32 %v2469, %v2789
        %v2791 = vpop.f32.mrb[0].mxu0
        %v2792 = vand.u32 %v277, 4294901760
        %2793 = vmatprep.mubr.f32.mxu0 %v2792
        %v2794 = vand.u32 %v276, 4294901760
        %2795 = vmatmul.mubr.f32.gmra.mrb[0].mxu0 %v2794
        %v2796 = vpop.f32.mrb[0].mxu0
        %v2797 = vadd.f32 %v2476, %v2796
        %v2798 = vpop.f32.mrb[0].mxu0
        %v2799 = vand.u32 %v279, 4294901760
        %2800 = vmatprep.mubr.f32.mxu0 %v2799
        %v2801 = vand.u32 %v278, 4294901760
        %2802 = vmatmul.mubr.f32.gmra.mrb[0].mxu0 %v2801
        %v2803 = vpop.f32.mrb[0].mxu0
        %v2804 = vadd.f32 %v2483, %v2803
        %v2805 = vpop.f32.mrb[0].mxu0
        %v2806 = vand.u32 %v281, 4294901760
        %2807 = vmatprep.mubr.f32.mxu0 %v2806
        %v2808 = vand.u32 %v280, 4294901760
        %2809 = vmatmul.mubr.f32.gmra.mrb[0].mxu0 %v2808
        %v2810 = vpop.f32.mrb[0].mxu0
        %v2811 = vadd.f32 %v2490, %v2810
        %v2812 = vpop.f32.mrb[0].mxu0
        %v2813 = vand.u32 %v283, 4294901760
        %2814 = vmatprep.mubr.f32.mxu0 %v2813
        %v2815 = vand.u32 %v282, 4294901760
        %2816 = vmatmul.mubr.f32.gmra.mrb[0].mxu0 %v2815
        %v2817 = vpop.f32.mrb[0].mxu0
        %v2818 = vadd.f32 %v2497, %v2817
        %v2819 = vpop.f32.mrb[0].mxu0
        %v2820 = vand.u32 %v285, 4294901760
        %2821 = vmatprep.mubr.f32.mxu0 %v2820
        %v2822 = vand.u32 %v284, 4294901760
        %2823 = vmatmul.mubr.f32.gmra.mrb[0].mxu0 %v2822
        %v2824 = vpop.f32.mrb[0].mxu0
        %v2825 = vadd.f32 %v2504, %v2824
        %v2826 = vpop.f32.mrb[0].mxu0
        %v2827 = vand.u32 %v287, 4294901760
        %2828 = vmatprep.mubr.f32.mxu0 %v2827
        %v2829 = vand.u32 %v286, 4294901760
        %2830 = vmatmul.mubr.f32.gmra.mrb[0].mxu0 %v2829
        %v2831 = vpop.f32.mrb[0].mxu0
        %v2832 = vadd.f32 %v2511, %v2831
        %v2833 = vpop.f32.mrb[0].mxu0
        %v2834 = vand.u32 %v289, 4294901760
        %2835 = vmatprep.mubr.f32.mxu0 %v2834
        %v2836 = vand.u32 %v288, 4294901760
        %2837 = vmatmul.mubr.f32.gmra.mrb[0].mxu0 %v2836
        %v2838 = vpop.f32.mrb[0].mxu0
        %v2839 = vadd.f32 %v2518, %v2838
        %v2840 = vpop.f32.mrb[0].mxu0
        %v2841 = vand.u32 %v291, 4294901760
        %2842 = vmatprep.mubr.f32.mxu0 %v2841
        %v2843 = vand.u32 %v290, 4294901760
        %2844 = vmatmul.mubr.f32.gmra.mrb[0].mxu0 %v2843
        %v2845 = vpop.f32.mrb[0].mxu0
        %v2846 = vadd.f32 %v2525, %v2845
        %v2847 = vpop.f32.mrb[0].mxu0
        %v2848 = vand.u32 %v293, 4294901760
        %2849 = vmatprep.mubr.f32.mxu0 %v2848
        %v2850 = vand.u32 %v292, 4294901760
        %2851 = vmatmul.mubr.f32.gmra.mrb[0].mxu0 %v2850
        %v2852 = vpop.f32.mrb[0].mxu0
        %v2853 = vadd.f32 %v2532, %v2852
        %v2854 = vpop.f32.mrb[0].mxu0
        %v2855 = vand.u32 %v295, 4294901760
        %2856 = vmatprep.mubr.f32.mxu0 %v2855
        %v2857 = vand.u32 %v294, 4294901760
        %2858 = vmatmul.mubr.f32.gmra.mrb[0].mxu0 %v2857
        %v2859 = vpop.f32.mrb[0].mxu0
        %v2860 = vadd.f32 %v2539, %v2859
        %v2861 = vpop.f32.mrb[0].mxu0
        %v2862 = vand.u32 %v297, 4294901760
        %2863 = vmatprep.mubr.f32.mxu0 %v2862
        %v2864 = vand.u32 %v296, 4294901760
        %2865 = vmatmul.mubr.f32.gmra.mrb[0].mxu0 %v2864
        %v2866 = vpop.f32.mrb[0].mxu0
        %v2867 = vadd.f32 %v2546, %v2866
        %v2868 = vpop.f32.mrb[0].mxu0
        %v2869 = vand.u32 %v299, 4294901760
        %2870 = vmatprep.mubr.f32.mxu0 %v2869
        %v2871 = vand.u32 %v298, 4294901760
        %2872 = vmatmul.mubr.f32.gmra.mrb[0].mxu0 %v2871
        %v2873 = vpop.f32.mrb[0].mxu0
        %v2874 = vadd.f32 %v2553, %v2873
        %v2875 = vpop.f32.mrb[0].mxu0
        %v2876 = vand.u32 %v301, 4294901760
        %2877 = vmatprep.mubr.f32.mxu0 %v2876
        %v2878 = vand.u32 %v300, 4294901760
        %2879 = vmatmul.mubr.f32.gmra.mrb[0].mxu0 %v2878
        %v2880 = vpop.f32.mrb[0].mxu0
        %v2881 = vadd.f32 %v2560, %v2880
        %v2882 = vpop.f32.mrb[0].mxu0
        %v2883 = vand.u32 %v303, 4294901760
        %2884 = vmatprep.mubr.f32.mxu0 %v2883
        %v2885 = vand.u32 %v302, 4294901760
        %2886 = vmatmul.mubr.f32.gmra.mrb[0].mxu0 %v2885
        %v2887 = vpop.f32.mrb[0].mxu0
        %v2888 = vadd.f32 %v2567, %v2887
        %v2889 = vpop.f32.mrb[0].mxu0
        %v2890 = vand.u32 %v305, 4294901760
        %2891 = vmatprep.mubr.f32.mxu0 %v2890
        %v2892 = vand.u32 %v304, 4294901760
        %2893 = vmatmul.mubr.f32.gmra.mrb[0].mxu0 %v2892
        %v2894 = vpop.f32.mrb[0].mxu0
        %v2895 = vadd.f32 %v2574, %v2894
        %v2896 = vpop.f32.mrb[0].mxu0
        %v2897 = vand.u32 %v307, 4294901760
        %2898 = vmatprep.mubr.f32.mxu0 %v2897
        %v2899 = vand.u32 %v306, 4294901760
        %2900 = vmatmul.mubr.f32.gmra.mrb[0].mxu0 %v2899
        %v2901 = vpop.f32.mrb[0].mxu0
        %v2902 = vadd.f32 %v2581, %v2901
        %v2903 = vpop.f32.mrb[0].mxu0
        %v2904 = vand.u32 %v309, 4294901760
        %2905 = vmatprep.mubr.f32.mxu0 %v2904
        %v2906 = vand.u32 %v308, 4294901760
        %2907 = vmatmul.mubr.f32.gmra.mrb[0].mxu0 %v2906
        %v2908 = vpop.f32.mrb[0].mxu0
        %v2909 = vadd.f32 %v2588, %v2908
        %v2910 = vpop.f32.mrb[0].mxu0
        %v2911 = vand.u32 %v311, 4294901760
        %2912 = vmatprep.mubr.f32.mxu0 %v2911
        %v2913 = vand.u32 %v310, 4294901760
        %2914 = vmatmul.mubr.f32.gmra.mrb[0].mxu0 %v2913
        %v2915 = vpop.f32.mrb[0].mxu0
        %v2916 = vadd.f32 %v2595, %v2915
        %v2917 = vpop.f32.mrb[0].mxu0
        %v2918 = vand.u32 %v313, 4294901760
        %2919 = vmatprep.mubr.f32.mxu0 %v2918
        %v2920 = vand.u32 %v312, 4294901760
        %2921 = vmatmul.mubr.f32.gmra.mrb[0].mxu0 %v2920
        %v2922 = vpop.f32.mrb[0].mxu0
        %v2923 = vadd.f32 %v2602, %v2922
        %v2924 = vpop.f32.mrb[0].mxu0
        %v2925 = vand.u32 %v315, 4294901760
        %2926 = vmatprep.mubr.f32.mxu0 %v2925
        %v2927 = vand.u32 %v314, 4294901760
        %2928 = vmatmul.mubr.f32.gmra.mrb[0].mxu0 %v2927
        %v2929 = vpop.f32.mrb[0].mxu0
        %v2930 = vadd.f32 %v2609, %v2929
        %v2931 = vpop.f32.mrb[0].mxu0
        %v2932 = vand.u32 %v317, 4294901760
        %2933 = vmatprep.mubr.f32.mxu0 %v2932
        %v2934 = vand.u32 %v316, 4294901760
        %2935 = vmatmul.mubr.f32.gmra.mrb[0].mxu0 %v2934
        %v2936 = vpop.f32.mrb[0].mxu0
        %v2937 = vadd.f32 %v2616, %v2936
        %v2938 = vpop.f32.mrb[0].mxu0
        %v2939 = vand.u32 %v319, 4294901760
        %2940 = vmatprep.mubr.f32.mxu0 %v2939
        %v2941 = vand.u32 %v318, 4294901760
        %2942 = vmatmul.mubr.f32.gmra.mrb[0].mxu0 %v2941
        %v2943 = vpop.f32.mrb[0].mxu0
        %v2944 = vadd.f32 %v2623, %v2943
        %v2945 = vpop.f32.mrb[0].mxu0
        %v2946 = vand.u32 %v321, 4294901760
        %2947 = vmatprep.mubr.f32.mxu0 %v2946
        %v2948 = vand.u32 %v320, 4294901760
        %2949 = vmatmul.mubr.f32.gmra.mrb[0].mxu0 %v2948
        %v2950 = vpop.f32.mrb[0].mxu0
        %v2951 = vadd.f32 %v2630, %v2950
        %v2952 = vpop.f32.mrb[0].mxu0
        %v2953 = vand.u32 %v323, 4294901760
        %2954 = vmatprep.mubr.f32.mxu0 %v2953
        %v2955 = vand.u32 %v322, 4294901760
        %2956 = vmatmul.mubr.f32.gmra.mrb[0].mxu0 %v2955
        %v2957 = vpop.f32.mrb[0].mxu0
        %v2958 = vadd.f32 %v2637, %v2957
        %v2959 = vpop.f32.mrb[0].mxu0
        %v2960 = vand.u32 %v325, 4294901760
        %2961 = vmatprep.mubr.f32.mxu0 %v2960
        %v2962 = vand.u32 %v324, 4294901760
        %2963 = vmatmul.mubr.f32.gmra.mrb[0].mxu0 %v2962
        %v2964 = vpop.f32.mrb[0].mxu0
        %v2965 = vadd.f32 %v2644, %v2964
        %v2966 = vpop.f32.mrb[0].mxu0
        %v2967 = vand.u32 %v327, 4294901760
        %2968 = vmatprep.mubr.f32.mxu0 %v2967
        %v2969 = vand.u32 %v326, 4294901760
        %2970 = vmatmul.mubr.f32.gmra.mrb[0].mxu0 %v2969
        %v2971 = vpop.f32.mrb[0].mxu0
        %v2972 = vadd.f32 %v2651, %v2971
        %v2973 = vpop.f32.mrb[0].mxu0
        %v2974 = vand.u32 %v329, 4294901760
        %2975 = vmatprep.mubr.f32.mxu0 %v2974
        %v2976 = vand.u32 %v328, 4294901760
        %2977 = vmatmul.mubr.f32.gmra.mrb[0].mxu0 %v2976
        %v2978 = vpop.f32.mrb[0].mxu0
        %v2979 = vadd.f32 %v2658, %v2978
        %v2980 = vpop.f32.mrb[0].mxu0
        %v2981 = vand.u32 %v331, 4294901760
        %2982 = vmatprep.mubr.f32.mxu0 %v2981
        %v2983 = vand.u32 %v330, 4294901760
        %2984 = vmatmul.mubr.f32.gmra.mrb[0].mxu0 %v2983
        %v2985 = vpop.f32.mrb[0].mxu0
        %v2986 = vadd.f32 %v2665, %v2985
        %v2987 = vpop.f32.mrb[0].mxu0
        %v2988 = vand.u32 %v333, 4294901760
        %2989 = vmatprep.mubr.f32.mxu0 %v2988
        %v2990 = vand.u32 %v332, 4294901760
        %2991 = vmatmul.mubr.f32.gmra.mrb[0].mxu0 %v2990
        %v2992 = vpop.f32.mrb[0].mxu0
        %v2993 = vadd.f32 %v2672, %v2992
        %v2994 = vpop.f32.mrb[0].mxu0
        %2995 = vdwg.mxu0
        %v2996 = vmul.f32 %v2776, 0.5
        %v2997 = vmul.f32 %v2783, 0.5
        %v2998 = vmul.f32 %v2790, 0.5
        %v2999 = vmul.f32 %v2797, 0.5
        %v3000 = vmul.f32 %v2804, 0.5
        %v3001 = vmul.f32 %v2811, 0.5
        %v3002 = vmul.f32 %v2818, 0.5
        %v3003 = vmul.f32 %v2825, 0.5
        %v3004 = vmul.f32 %v2832, 0.5
        %v3005 = vmul.f32 %v2839, 0.5
        %v3006 = vmul.f32 %v2846, 0.5
        %v3007 = vmul.f32 %v2853, 0.5
        %v3008 = vmul.f32 %v2860, 0.5
        %v3009 = vmul.f32 %v2867, 0.5
        %v3010 = vmul.f32 %v2874, 0.5
        %v3011 = vmul.f32 %v2881, 0.5
        %v3012 = vmul.f32 %v2888, 0.5
        %v3013 = vmul.f32 %v2895, 0.5
        %v3014 = vmul.f32 %v2902, 0.5
        %v3015 = vmul.f32 %v2909, 0.5
        %v3016 = vmul.f32 %v2916, 0.5
        %v3017 = vmul.f32 %v2923, 0.5
        %v3018 = vmul.f32 %v2930, 0.5
        %v3019 = vmul.f32 %v2937, 0.5
        %v3020 = vmul.f32 %v2944, 0.5
        %v3021 = vmul.f32 %v2951, 0.5
        %v3022 = vmul.f32 %v2958, 0.5
        %v3023 = vmul.f32 %v2965, 0.5
        %v3024 = vmul.f32 %v2972, 0.5
        %v3025 = vmul.f32 %v2979, 0.5
        %v3026 = vmul.f32 %v2986, 0.5
        %v3027 = vmul.f32 %v2993, 0.5
        %v3028 = vmul.f32 %v2776, %v2776
        %v3029 = vmul.f32 %v2783, %v2783
        %v3030 = vmul.f32 %v2790, %v2790
        %v3031 = vmul.f32 %v2797, %v2797
        %v3032 = vmul.f32 %v2804, %v2804
        %v3033 = vmul.f32 %v2811, %v2811
        %v3034 = vmul.f32 %v2818, %v2818
        %v3035 = vmul.f32 %v2825, %v2825
        %v3036 = vmul.f32 %v2832, %v2832
        %v3037 = vmul.f32 %v2839, %v2839
        %v3038 = vmul.f32 %v2846, %v2846
        %v3039 = vmul.f32 %v2853, %v2853
        %v3040 = vmul.f32 %v2860, %v2860
        %v3041 = vmul.f32 %v2867, %v2867
        %v3042 = vmul.f32 %v2874, %v2874
        %v3043 = vmul.f32 %v2881, %v2881
        %v3044 = vmul.f32 %v2888, %v2888
        %v3045 = vmul.f32 %v2895, %v2895
        %v3046 = vmul.f32 %v2902, %v2902
        %v3047 = vmul.f32 %v2909, %v2909
        %v3048 = vmul.f32 %v2916, %v2916
        %v3049 = vmul.f32 %v2923, %v2923
        %v3050 = vmul.f32 %v2930, %v2930
        %v3051 = vmul.f32 %v2937, %v2937
        %v3052 = vmul.f32 %v2944, %v2944
        %v3053 = vmul.f32 %v2951, %v2951
        %v3054 = vmul.f32 %v2958, %v2958
        %v3055 = vmul.f32 %v2965, %v2965
        %v3056 = vmul.f32 %v2972, %v2972
        %v3057 = vmul.f32 %v2979, %v2979
        %v3058 = vmul.f32 %v2986, %v2986
        %v3059 = vmul.f32 %v2993, %v2993
        %v3060 = vmul.f32 %v3028, %v2776
        %v3061 = vmul.f32 %v3029, %v2783
        %v3062 = vmul.f32 %v3030, %v2790
        %v3063 = vmul.f32 %v3031, %v2797
        %v3064 = vmul.f32 %v3032, %v2804
        %v3065 = vmul.f32 %v3033, %v2811
        %v3066 = vmul.f32 %v3034, %v2818
        %v3067 = vmul.f32 %v3035, %v2825
        %v3068 = vmul.f32 %v3036, %v2832
        %v3069 = vmul.f32 %v3037, %v2839
        %v3070 = vmul.f32 %v3038, %v2846
        %v3071 = vmul.f32 %v3039, %v2853
        %v3072 = vmul.f32 %v3040, %v2860
        %v3073 = vmul.f32 %v3041, %v2867
        %v3074 = vmul.f32 %v3042, %v2874
        %v3075 = vmul.f32 %v3043, %v2881
        %v3076 = vmul.f32 %v3044, %v2888
        %v3077 = vmul.f32 %v3045, %v2895
        %v3078 = vmul.f32 %v3046, %v2902
        %v3079 = vmul.f32 %v3047, %v2909
        %v3080 = vmul.f32 %v3048, %v2916
        %v3081 = vmul.f32 %v3049, %v2923
        %v3082 = vmul.f32 %v3050, %v2930
        %v3083 = vmul.f32 %v3051, %v2937
        %v3084 = vmul.f32 %v3052, %v2944
        %v3085 = vmul.f32 %v3053, %v2951
        %v3086 = vmul.f32 %v3054, %v2958
        %v3087 = vmul.f32 %v3055, %v2965
        %v3088 = vmul.f32 %v3056, %v2972
        %v3089 = vmul.f32 %v3057, %v2979
        %v3090 = vmul.f32 %v3058, %v2986
        %v3091 = vmul.f32 %v3059, %v2993
        %v3092 = vmul.f32 %v3060, 0.044715
        %v3093 = vmul.f32 %v3061, 0.044715
        %v3094 = vmul.f32 %v3062, 0.044715
        %v3095 = vmul.f32 %v3063, 0.044715
        %v3096 = vmul.f32 %v3064, 0.044715
        %v3097 = vmul.f32 %v3065, 0.044715
        %v3098 = vmul.f32 %v3066, 0.044715
        %v3099 = vmul.f32 %v3067, 0.044715
        %v3100 = vmul.f32 %v3068, 0.044715
        %v3101 = vmul.f32 %v3069, 0.044715
        %v3102 = vmul.f32 %v3070, 0.044715
        %v3103 = vmul.f32 %v3071, 0.044715
        %v3104 = vmul.f32 %v3072, 0.044715
        %v3105 = vmul.f32 %v3073, 0.044715
        %v3106 = vmul.f32 %v3074, 0.044715
        %v3107 = vmul.f32 %v3075, 0.044715
        %v3108 = vmul.f32 %v3076, 0.044715
        %v3109 = vmul.f32 %v3077, 0.044715
        %v3110 = vmul.f32 %v3078, 0.044715
        %v3111 = vmul.f32 %v3079, 0.044715
        %v3112 = vmul.f32 %v3080, 0.044715
        %v3113 = vmul.f32 %v3081, 0.044715
        %v3114 = vmul.f32 %v3082, 0.044715
        %v3115 = vmul.f32 %v3083, 0.044715
        %v3116 = vmul.f32 %v3084, 0.044715
        %v3117 = vmul.f32 %v3085, 0.044715
        %v3118 = vmul.f32 %v3086, 0.044715
        %v3119 = vmul.f32 %v3087, 0.044715
        %v3120 = vmul.f32 %v3088, 0.044715
        %v3121 = vmul.f32 %v3089, 0.044715
        %v3122 = vmul.f32 %v3090, 0.044715
        %v3123 = vmul.f32 %v3091, 0.044715
        %v3124 = vadd.f32 %v2776, %v3092
        %v3125 = vadd.f32 %v2783, %v3093
        %v3126 = vadd.f32 %v2790, %v3094
        %v3127 = vadd.f32 %v2797, %v3095
        %v3128 = vadd.f32 %v2804, %v3096
        %v3129 = vadd.f32 %v2811, %v3097
        %v3130 = vadd.f32 %v2818, %v3098
        %v3131 = vadd.f32 %v2825, %v3099
        %v3132 = vadd.f32 %v2832, %v3100
        %v3133 = vadd.f32 %v2839, %v3101
        %v3134 = vadd.f32 %v2846, %v3102
        %v3135 = vadd.f32 %v2853, %v3103
        %v3136 = vadd.f32 %v2860, %v3104
        %v3137 = vadd.f32 %v2867, %v3105
        %v3138 = vadd.f32 %v2874, %v3106
        %v3139 = vadd.f32 %v2881, %v3107
        %v3140 = vadd.f32 %v2888, %v3108
        %v3141 = vadd.f32 %v2895, %v3109
        %v3142 = vadd.f32 %v2902, %v3110
        %v3143 = vadd.f32 %v2909, %v3111
        %v3144 = vadd.f32 %v2916, %v3112
        %v3145 = vadd.f32 %v2923, %v3113
        %v3146 = vadd.f32 %v2930, %v3114
        %v3147 = vadd.f32 %v2937, %v3115
        %v3148 = vadd.f32 %v2944, %v3116
        %v3149 = vadd.f32 %v2951, %v3117
        %v3150 = vadd.f32 %v2958, %v3118
        %v3151 = vadd.f32 %v2965, %v3119
        %v3152 = vadd.f32 %v2972, %v3120
        %v3153 = vadd.f32 %v2979, %v3121
        %v3154 = vadd.f32 %v2986, %v3122
        %v3155 = vadd.f32 %v2993, %v3123
        %v3156 = vmul.f32 %v3124, 0.7978846
        %v3157 = vmul.f32 %v3125, 0.7978846
        %v3158 = vmul.f32 %v3126, 0.7978846
        %v3159 = vmul.f32 %v3127, 0.7978846
        %v3160 = vmul.f32 %v3128, 0.7978846
        %v3161 = vmul.f32 %v3129, 0.7978846
        %v3162 = vmul.f32 %v3130, 0.7978846
        %v3163 = vmul.f32 %v3131, 0.7978846
        %v3164 = vmul.f32 %v3132, 0.7978846
        %v3165 = vmul.f32 %v3133, 0.7978846
        %v3166 = vmul.f32 %v3134, 0.7978846
        %v3167 = vmul.f32 %v3135, 0.7978846
        %v3168 = vmul.f32 %v3136, 0.7978846
        %v3169 = vmul.f32 %v3137, 0.7978846
        %v3170 = vmul.f32 %v3138, 0.7978846
        %v3171 = vmul.f32 %v3139, 0.7978846
        %v3172 = vmul.f32 %v3140, 0.7978846
        %v3173 = vmul.f32 %v3141, 0.7978846
        %v3174 = vmul.f32 %v3142, 0.7978846
        %v3175 = vmul.f32 %v3143, 0.7978846
        %v3176 = vmul.f32 %v3144, 0.7978846
        %v3177 = vmul.f32 %v3145, 0.7978846
        %v3178 = vmul.f32 %v3146, 0.7978846
        %v3179 = vmul.f32 %v3147, 0.7978846
        %v3180 = vmul.f32 %v3148, 0.7978846
        %v3181 = vmul.f32 %v3149, 0.7978846
        %v3182 = vmul.f32 %v3150, 0.7978846
        %v3183 = vmul.f32 %v3151, 0.7978846
        %v3184 = vmul.f32 %v3152, 0.7978846
        %v3185 = vmul.f32 %v3153, 0.7978846
        %v3186 = vmul.f32 %v3154, 0.7978846
        %v3187 = vmul.f32 %v3155, 0.7978846
        %v3188 = vtanh.pop %v3156
        %v3189 = vtanh.pop %v3157
        %v3190 = vtanh.pop %v3158
        %v3191 = vtanh.pop %v3159
        %v3192 = vtanh.pop %v3160
        %v3193 = vtanh.pop %v3161
        %v3194 = vtanh.pop %v3162
        %v3195 = vtanh.pop %v3163
        %v3196 = vtanh.pop %v3164
        %v3197 = vtanh.pop %v3165
        %v3198 = vtanh.pop %v3166
        %v3199 = vtanh.pop %v3167
        %v3200 = vtanh.pop %v3168
        %v3201 = vtanh.pop %v3169
        %v3202 = vtanh.pop %v3170
        %v3203 = vtanh.pop %v3171
        %v3204 = vtanh.pop %v3172
        %v3205 = vtanh.pop %v3173
        %v3206 = vtanh.pop %v3174
        %v3207 = vtanh.pop %v3175
        %v3208 = vtanh.pop %v3176
        %v3209 = vtanh.pop %v3177
        %v3210 = vtanh.pop %v3178
        %v3211 = vtanh.pop %v3179
        %v3212 = vtanh.pop %v3180
        %v3213 = vtanh.pop %v3181
        %v3214 = vtanh.pop %v3182
        %v3215 = vtanh.pop %v3183
        %v3216 = vtanh.pop %v3184
        %v3217 = vtanh.pop %v3185
        %v3218 = vtanh.pop %v3186
        %v3219 = vtanh.pop %v3187
        %v3220 = vadd.f32 %v3188, 1.0
        %v3221 = vadd.f32 %v3189, 1.0
        %v3222 = vadd.f32 %v3190, 1.0
        %v3223 = vadd.f32 %v3191, 1.0
        %v3224 = vadd.f32 %v3192, 1.0
        %v3225 = vadd.f32 %v3193, 1.0
        %v3226 = vadd.f32 %v3194, 1.0
        %v3227 = vadd.f32 %v3195, 1.0
        %v3228 = vadd.f32 %v3196, 1.0
        %v3229 = vadd.f32 %v3197, 1.0
        %v3230 = vadd.f32 %v3198, 1.0
        %v3231 = vadd.f32 %v3199, 1.0
        %v3232 = vadd.f32 %v3200, 1.0
        %v3233 = vadd.f32 %v3201, 1.0
        %v3234 = vadd.f32 %v3202, 1.0
        %v3235 = vadd.f32 %v3203, 1.0
        %v3236 = vadd.f32 %v3204, 1.0
        %v3237 = vadd.f32 %v3205, 1.0
        %v3238 = vadd.f32 %v3206, 1.0
        %v3239 = vadd.f32 %v3207, 1.0
        %v3240 = vadd.f32 %v3208, 1.0
        %v3241 = vadd.f32 %v3209, 1.0
        %v3242 = vadd.f32 %v3210, 1.0
        %v3243 = vadd.f32 %v3211, 1.0
        %v3244 = vadd.f32 %v3212, 1.0
        %v3245 = vadd.f32 %v3213, 1.0
        %v3246 = vadd.f32 %v3214, 1.0
        %v3247 = vadd.f32 %v3215, 1.0
        %v3248 = vadd.f32 %v3216, 1.0
        %v3249 = vadd.f32 %v3217, 1.0
        %v3250 = vadd.f32 %v3218, 1.0
        %v3251 = vadd.f32 %v3219, 1.0
        %v3252 = vmul.f32 %v2996, %v3220
        %v3253 = vmul.f32 %v2997, %v3221
        %v3254 = vmul.f32 %v2998, %v3222
        %v3255 = vmul.f32 %v2999, %v3223
        %v3256 = vmul.f32 %v3000, %v3224
        %v3257 = vmul.f32 %v3001, %v3225
        %v3258 = vmul.f32 %v3002, %v3226
        %v3259 = vmul.f32 %v3003, %v3227
        %v3260 = vmul.f32 %v3004, %v3228
        %v3261 = vmul.f32 %v3005, %v3229
        %v3262 = vmul.f32 %v3006, %v3230
        %v3263 = vmul.f32 %v3007, %v3231
        %v3264 = vmul.f32 %v3008, %v3232
        %v3265 = vmul.f32 %v3009, %v3233
        %v3266 = vmul.f32 %v3010, %v3234
        %v3267 = vmul.f32 %v3011, %v3235
        %v3268 = vmul.f32 %v3012, %v3236
        %v3269 = vmul.f32 %v3013, %v3237
        %v3270 = vmul.f32 %v3014, %v3238
        %v3271 = vmul.f32 %v3015, %v3239
        %v3272 = vmul.f32 %v3016, %v3240
        %v3273 = vmul.f32 %v3017, %v3241
        %v3274 = vmul.f32 %v3018, %v3242
        %v3275 = vmul.f32 %v3019, %v3243
        %v3276 = vmul.f32 %v3020, %v3244
        %v3277 = vmul.f32 %v3021, %v3245
        %v3278 = vmul.f32 %v3022, %v3246
        %v3279 = vmul.f32 %v3023, %v3247
        %v3280 = vmul.f32 %v3024, %v3248
        %v3281 = vmul.f32 %v3025, %v3249
        %v3282 = vmul.f32 %v3026, %v3250
        %v3283 = vmul.f32 %v3027, %v3251
        %3284 = vst [vmem:[%s266] sm:$0xff] %v3252
        %3285 = vst [vmem:[%s266 + $0x8] sm:$0xff] %v3253
        %3286 = vst [vmem:[%s266 + $0x10] sm:$0xff] %v3254
        %3287 = vst [vmem:[%s266 + $0x18] sm:$0xff] %v3255
        %3288 = vst [vmem:[%s266 + $0x20] sm:$0xff] %v3256
        %3289 = vst [vmem:[%s266 + $0x28] sm:$0xff] %v3257
        %3290 = vst [vmem:[%s266 + $0x30] sm:$0xff] %v3258
        %3291 = vst [vmem:[%s266 + $0x38] sm:$0xff] %v3259
        %3292 = vst [vmem:[%s266 + $0x40] sm:$0xff] %v3260
        %3293 = vst [vmem:[%s266 + $0x48] sm:$0xff] %v3261
        %3294 = vst [vmem:[%s266 + $0x50] sm:$0xff] %v3262
        %3295 = vst [vmem:[%s266 + $0x58] sm:$0xff] %v3263
        %3296 = vst [vmem:[%s266 + $0x60] sm:$0xff] %v3264
        %3297 = vst [vmem:[%s266 + $0x68] sm:$0xff] %v3265
        %3298 = vst [vmem:[%s266 + $0x70] sm:$0xff] %v3266
        %3299 = vst [vmem:[%s266 + $0x78] sm:$0xff] %v3267
        %3300 = vst [vmem:[%s266 + $0x80] sm:$0xff] %v3268
        %3301 = vst [vmem:[%s266 + $0x88] sm:$0xff] %v3269
        %3302 = vst [vmem:[%s266 + $0x90] sm:$0xff] %v3270
        %3303 = vst [vmem:[%s266 + $0x98] sm:$0xff] %v3271
        %3304 = vst [vmem:[%s266 + $0xa0] sm:$0xff] %v3272
        %3305 = vst [vmem:[%s266 + $0xa8] sm:$0xff] %v3273
        %3306 = vst [vmem:[%s266 + $0xb0] sm:$0xff] %v3274
        %3307 = vst [vmem:[%s266 + $0xb8] sm:$0xff] %v3275
        %3308 = vst [vmem:[%s266 + $0xc0] sm:$0xff] %v3276
        %3309 = vst [vmem:[%s266 + $0xc8] sm:$0xff] %v3277
        %3310 = vst [vmem:[%s266 + $0xd0] sm:$0xff] %v3278
        %3311 = vst [vmem:[%s266 + $0xd8] sm:$0xff] %v3279
        %3312 = vst [vmem:[%s266 + $0xe0] sm:$0xff] %v3280
        %3313 = vst [vmem:[%s266 + $0xe8] sm:$0xff] %v3281
        %3314 = vst [vmem:[%s266 + $0xf0] sm:$0xff] %v3282
        %3315 = vst [vmem:[%s266 + $0xf8] sm:$0xff] %v3283
        %s3316 = sand.u32 %s123, 1
        %s3317 = scalar_lea.sflag [#allocation4], %s3316
        %s3318 = sand.u32 %s123, 1
        %s3319 = smul.addr %s3318, 256
        %s3320 = scalar_lea.vmem [#allocation8], %s3319
        // Predicated region
        $region45: #{matmul_relu_model.1} parent=31 // pred_check
          %p3321 = pneg %p133
        $region46: #{matmul_relu_model.1} parent=31 // pred_check_branch
          %3323 = sbr.rel (%p3321) target = $region48
        $region47: #{matmul_relu_model.1} parent=31 // pred_region
          %s3324 = smul.u32 32, %s25
          %s3326 = ssub.s32 4096, 4096
          %3327 = vsyncadd %s3317, %s3326
          %s3328 = smul.addr %s3324, 2
          %s3329 = sadd.s32 %s26, %s3328
          %s3330 = smul.addr %s3329, 128
          %s3331 = scalar_lea.hbm %s3, %s3330
          %s3332 = sshll.u32 %s3320, 4
          %s3333 = int_to_ptr.vmem [resolvable:$true] %s3332
          %3338 = dma.vmem_to_hbm [thread:$0]  %s3333, 4096, %s3331, %s3317, 128, 256, 8
        $region48: #{matmul_relu_model.1} parent=31 // pred_fallthru
          _
      $region32: #{matmul_relu_model.1} parent=5 // pred_fallthru
        _
      %p3339 = scmp.le.s32.totalorder 2, %s16
      // Predicated region
      $region49: #{matmul_relu_model.1} parent=5 // pred_check
        %p3340 = pneg %p3339
      $region50: #{matmul_relu_model.1} parent=5 // pred_check_branch
        %3342 = sbr.rel (%p3340) target = $region52
      $region51: #{matmul_relu_model.1} parent=5 // pred_region
        %s3343 = ssub.s32 %s16, 2
        // Predicated region
        $region53: #{matmul_relu_model.1} parent=51 // pred_check
          %p3344 = pneg %p139
        $region54: #{matmul_relu_model.1} parent=51 // pred_check_branch
          %3346 = sbr.rel (%p3344) target = $region56
        $region55: #{matmul_relu_model.1} parent=51 // pred_region
          %s3347 = sand.u32 %s124, 1
          %s3348 = scalar_lea.sflag [#allocation4], %s3347
          %s3349 = sand.u32 %s124, 1
          %s3350 = smul.addr %s3349, 256
          %s3351 = scalar_lea.vmem [#allocation8], %s3350
          %3352 = dma.done %s3348, 4096
        $region56: #{matmul_relu_model.1} parent=51 // pred_fallthru
          _
      $region52: #{matmul_relu_model.1} parent=5 // pred_fallthru
        _
    $region6: #{matmul_relu_model.1} parent=1 // loop_footer
      %s20 = sadd.s32 1, %s16
    $region7: #{matmul_relu_model.1} parent=1 // loop_footer_branch
      %15 = sbr.rel target = $region3
    $region8: #{matmul_relu_model.1} parent=1 // loop_exit
      _
    %3353 = vsyncpa [#allocation3], 1
    %s3354 = scalar_lea.sflag [#allocation3], 1
    %3355 = vsyncpa %s3354, 1
    %3356 = vsyncpa [#allocation6], 1
    %s3357 = scalar_lea.sflag [#allocation6], 1
    %3358 = vsyncpa %s3357, 1
    %3359 = vsyncpa [#allocation4], 1
    %s3360 = scalar_lea.sflag [#allocation4], 1
    %3361 = vsyncpa %s3360, 1

</llo_original>
